<compile_context>
chip_gen: v7x
topology: tpu7x:2x2x1
jax: 0.10.0
libtpu: 0.0.40
codegen_flags: <defaults>
</compile_context>

<pallas_src>
import jax
import jax.numpy as jnp
from jax import lax
from jax.experimental import pallas as pl
from jax.experimental.pallas import tpu as pltpu

_NEG_BIG = -1e30  # large finite negative for causal masking (NaN-safe vs -inf)


# ---------------------------------------------------------------------------
# Kernel 1: packed QKV projection
# ---------------------------------------------------------------------------
def _qkv_proj_kernel(x_ref, w_ref, q_ref, k_ref, v_ref):
    # x_ref: (tr, C) bf16; w_ref: (C, 3*H*hs) bf16 (scale folded into Q columns)
    r = jnp.dot(x_ref[...], w_ref[...], preferred_element_type=jnp.float32)
    hhs = q_ref.shape[-1]
    # 128-lane-aligned column slices; cast per slice (no full bf16 copy kept live).
    q_ref[...] = r[:, :hhs].astype(q_ref.dtype)
    k_ref[...] = r[:, hhs:2 * hhs].astype(k_ref.dtype)
    v_ref[...] = r[:, 2 * hhs:].astype(v_ref.dtype)


# ---------------------------------------------------------------------------
# Kernel 2: flash attention (online softmax, causal block skip) + fused proj
# ---------------------------------------------------------------------------
def _flash_attn_kernel(q_ref, k_ref, v_ref, wp_ref, b_ref, o_ref,
                       m_ref, l_ref, acc_h_ref, acc_o_ref):
    # q_ref : (1, 1, tq, hs)  bf16  query tile for (batch b, head h); scale folded in
    # k_ref : (1, 1, T,  hs)  bf16  full-sequence keys for (b, h)
    # v_ref : (1, 1, T,  hs)  bf16  full-sequence values for (b, h)
    # wp_ref: (1, hs, n_out)  bf16  this head's slice of the output projection weight
    # b_ref : (1, n_out)      f32   output projection bias
    # o_ref : (1, tq, n_out)  bf16  output tile (written on the last head)
    # m/l/acc_h : per-(b, q-tile, head) online-softmax state (VMEM scratch)
    # acc_o     : per-(b, q-tile) output-projection accumulator across heads
    qi = pl.program_id(1)
    h = pl.program_id(2)

    @pl.when(h == 0)
    def _init_out_acc():
        acc_o_ref[...] = jnp.zeros_like(acc_o_ref)

    tq = q_ref.shape[2]
    tk = tq
    hs = q_ref.shape[3]

    # Reset online-softmax state for this (b, q-tile, head).
    m_ref[...] = jnp.full(m_ref.shape, _NEG_BIG, jnp.float32)
    l_ref[...] = jnp.zeros_like(l_ref)
    acc_h_ref[...] = jnp.zeros_like(acc_h_ref)

    q = q_ref[0, 0]                                                 # (tq, hs) bf16
    q_start = qi * tq
    rows = q_start + lax.broadcasted_iota(jnp.int32, (tq, tk), 0)   # hoisted out of loop
    cols = lax.broadcasted_iota(jnp.int32, (tq, tk), 1)

    # Causal block skipping: q tile qi only ever attends to kv tiles 0..qi.
    num_kv = qi + 1

    @pl.loop(0, num_kv)
    def _kv_step(i):
        kv_start = pl.multiple_of(i * tk, tk)
        k_t = k_ref[0, 0, pl.ds(kv_start, tk), :]                   # (tk, hs) bf16
        v_t = v_ref[0, 0, pl.ds(kv_start, tk), :]                   # (tk, hs) bf16

        # scores = q @ k^T (attention scale already folded into the Q projection)
        s = lax.dot_general(q, k_t, (((1,), (1,)), ((), ())),
                            preferred_element_type=jnp.float32)     # (tq, tk) f32
        s = jnp.where((cols + kv_start) <= rows, s, _NEG_BIG)

        m_prev = m_ref[...]
        m_new = jnp.maximum(m_prev, jnp.max(s, axis=-1, keepdims=True))
        alpha = jnp.exp(m_prev - m_new)
        p = jnp.exp(s - m_new)                                       # (tq, tk) f32
        l_ref[...] = alpha * l_ref[...] + jnp.sum(p, axis=-1, keepdims=True)
        acc_h_ref[...] = alpha * acc_h_ref[...] + jnp.dot(
            p.astype(jnp.bfloat16), v_t, preferred_element_type=jnp.float32)
        m_ref[...] = m_new
        # TODO(synk): attention dropout is stochastic; eval-mode identity here.

    # Per-head fused output projection: no (T, H*hs) concat is ever built.
    o_h = acc_h_ref[...] * pl.reciprocal(l_ref[...], approx=True)    # (tq, hs) f32
    acc_o_ref[...] += jnp.dot(o_h.astype(jnp.bfloat16), wp_ref[0],
                              preferred_element_type=jnp.float32)    # (tq, n_out) f32

    @pl.when(h == pl.num_programs(2) - 1)
    def _finalize():
        # TODO(synk): output dropout is stochastic; eval-mode identity here.
        o_ref[0] = (acc_o_ref[...] + b_ref[...]).astype(o_ref.dtype)


# ---------------------------------------------------------------------------
# Wrapper
# ---------------------------------------------------------------------------
def _pick_tile(n, candidates):
    for c in candidates:
        if n % c == 0:
            return c
    return n


def multi_head_attention(x, wq, wk, wv, wproj_t, bproj, *, block_q=256):
    """x: (B,T,C); wq/wk/wv: (H, C, hs) (torch Linear weight transposed, per head);
    wproj_t: (H*hs, n_embd) (torch proj weight transposed); bproj: (n_embd,)."""
    B, T, C = x.shape
    H, _, hs = wq.shape
    Hhs = H * hs
    n_out = wproj_t.shape[1]
    scale = hs ** (-0.5)

    # --- trace-time weight packing: [Q | K | V], heads head-major, scale folded in Q ---
    def _pack(w):  # (H, C, hs) -> (C, H*hs)
        return jnp.transpose(w, (1, 0, 2)).reshape(C, Hhs)

    wqkv = jnp.concatenate(
        [_pack(wq * scale), _pack(wk), _pack(wv)], axis=-1).astype(jnp.bfloat16)
    wproj_h = wproj_t.reshape(H, hs, n_out).astype(jnp.bfloat16)
    bproj2 = bproj.reshape(1, n_out).astype(jnp.float32)

    # --- kernel 1: packed QKV projection over flattened (B*T) rows ---
    BT = B * T
    x2 = x.reshape(BT, C).astype(jnp.bfloat16)
    tr = _pick_tile(BT, (512, 256, 128, 64, 32, 16))
    qkv_cost = pl.CostEstimate(
        flops=2 * BT * C * 3 * Hhs,
        transcendentals=0,
        bytes_accessed=2 * (BT * C + C * 3 * Hhs + 3 * BT * Hhs))
    q2, k2, v2 = pl.pallas_call(
        _qkv_proj_kernel,
        out_shape=[jax.ShapeDtypeStruct((BT, Hhs), jnp.bfloat16)] * 3,
        grid=(BT // tr,),
        in_specs=[pl.BlockSpec((tr, C), lambda i: (i, 0)),
                  pl.BlockSpec((C, 3 * Hhs), lambda i: (0, 0))],
        out_specs=[pl.BlockSpec((tr, Hhs), lambda i: (i, 0))] * 3,
        compiler_params=pltpu.CompilerParams(dimension_semantics=("parallel",)),
        cost_estimate=qkv_cost,
    )(x2, wqkv)

    # Head-major (B, H, T, hs) layout so the flash kernel never slices heads at 64-lane
    # offsets in-kernel (per-head blocks arrive straight from the BlockSpec DMA).
    # TODO(synk): fold this transpose into the producer kernel to avoid the HBM round trip.
    def _to_heads(a):
        return a.reshape(B, T, H, hs).transpose(0, 2, 1, 3)

    qh, kh, vh = _to_heads(q2), _to_heads(k2), _to_heads(v2)

    # --- kernel 2: flash attention + fused per-head output projection ---
    tq = block_q if (T % block_q == 0 and block_q % 16 == 0) else \
        _pick_tile(T, (256, 128, 64, 32, 16))
    nq = T // tq

    attn_cost = pl.CostEstimate(
        flops=2 * B * H * T * T * hs + 2 * B * T * Hhs * n_out,  # causal ~halves the first term
        transcendentals=B * H * T * T // 2,
        bytes_accessed=2 * (B * nq * H * 2 * T * hs + B * T * Hhs
                            + H * hs * n_out + B * T * n_out) + 4 * n_out)

    # Explicit VMEM budget (blocks double-buffered + scratch + headroom), kept well under
    # v7x's 64 MiB physical VMEM; never below the 32 MiB default scoped limit.
    per_step = (tq * hs + 2 * T * hs + hs * n_out) * 2 + n_out * 4 + tq * n_out * 2
    scratch_bytes = (2 * tq * 128 + tq * hs + tq * n_out) * 4
    vmem_budget = int(min(48 * 1024 * 1024,
                          max(32 * 1024 * 1024,
                              2 * per_step + scratch_bytes + (1 << 22))))

    out = pl.pallas_call(
        _flash_attn_kernel,
        out_shape=jax.ShapeDtypeStruct((B, T, n_out), jnp.bfloat16),
        grid=(B, nq, H),
        in_specs=[
            pl.BlockSpec((1, 1, tq, hs), lambda b, qi, h: (b, h, qi, 0)),   # q tile
            pl.BlockSpec((1, 1, T, hs), lambda b, qi, h: (b, h, 0, 0)),     # k (full seq)
            pl.BlockSpec((1, 1, T, hs), lambda b, qi, h: (b, h, 0, 0)),     # v (full seq)
            pl.BlockSpec((1, hs, n_out), lambda b, qi, h: (h, 0, 0)),       # Wproj[h]
            pl.BlockSpec((1, n_out), lambda b, qi, h: (0, 0)),              # bias
        ],
        out_specs=pl.BlockSpec((1, tq, n_out), lambda b, qi, h: (b, qi, 0)),
        scratch_shapes=[
            pltpu.VMEM((tq, 1), jnp.float32),      # m: running max
            pltpu.VMEM((tq, 1), jnp.float32),      # l: running denom
            pltpu.VMEM((tq, hs), jnp.float32),     # per-head attention accumulator
            pltpu.VMEM((tq, n_out), jnp.float32),  # output-projection accumulator
        ],
        compiler_params=pltpu.CompilerParams(
            dimension_semantics=("parallel", "parallel", "arbitrary"),
            vmem_limit_bytes=vmem_budget),
        cost_estimate=attn_cost,
    )(qh, kh, vh, wproj_h, bproj2)

    return out


# ---------------------------------------------------------------------------
# Pure-JAX f32 reference (eval-mode dropout == identity)
# ---------------------------------------------------------------------------
def reference(x, wq, wk, wv, wproj_t, bproj):
    B, T, C = x.shape
    H, _, hs = wq.shape
    tril = jnp.tril(jnp.ones((T, T), dtype=bool))
    outs = []
    for h in range(H):
        q = x @ wq[h]
        k = x @ wk[h]
        v = x @ wv[h]
        wei = (q @ jnp.swapaxes(k, -1, -2)) * (hs ** -0.5)
        wei = jnp.where(tril[None], wei, -jnp.inf)
        wei = jax.nn.softmax(wei, axis=-1)
        outs.append(wei @ v)
    cat = jnp.concatenate(outs, axis=-1)
    return cat @ wproj_t + bproj


# ---------------------------------------------------------------------------
if __name__ == "__main__":
    # Module-consistent small shapes: n_embd = 384, num_heads = 6, head_size = 64.
    # T=128 with block_q=64 exercises query tiling, multi-tile online softmax and
    # causal block skipping while staying small.
    B, T = 2, 128
    n_embd = 384
    num_heads = 6
    head_size = 64

    key = jax.random.PRNGKey(0)
    kx, kq, kk, kv, kp, kb = jax.random.split(key, 6)

    x = jax.random.normal(kx, (B, T, n_embd), dtype=jnp.float32)
    # per-head projection weights, stored already transposed: (H, n_embd, head_size)
    wq = jax.random.normal(kq, (num_heads, n_embd, head_size), jnp.float32) * 0.02
    wk = jax.random.normal(kk, (num_heads, n_embd, head_size), jnp.float32) * 0.02
    wv = jax.random.normal(kv, (num_heads, n_embd, head_size), jnp.float32) * 0.02
    # output projection: torch Linear(H*hs -> n_embd); store W^T = (H*hs, n_embd)
    wproj_t = jax.random.normal(kp, (num_heads * head_size, n_embd), jnp.float32) * 0.02
    bproj = jax.random.normal(kb, (n_embd,), jnp.float32) * 0.02

    out = multi_head_attention(x, wq, wk, wv, wproj_t, bproj, block_q=64)
    out = jax.block_until_ready(out)
    assert out.shape == (B, T, n_embd) and out.dtype == jnp.bfloat16

    ref = reference(x, wq, wk, wv, wproj_t, bproj)
    out_f32 = out.astype(jnp.float32)
    max_diff = float(jnp.max(jnp.abs(out_f32 - ref)))
    # bf16 MXU operands + bf16 output -> compare with bf16-level tolerance.
    assert jnp.allclose(out_f32, ref, atol=3e-2, rtol=3e-2), (
        f"mismatch vs reference; max abs diff = {max_diff}")

    print("KERNEL_OK")
</pallas_src>

<mosaic_0001>
module attributes {stable_mosaic.version = 11 : i64} {
  func.func @_qkv_proj_kernel(%arg0: i32, %arg1: memref<256x384xbf16, #tpu.memory_space<vmem>>, %arg2: memref<384x1152xbf16, #tpu.memory_space<vmem>>, %arg3: memref<256x384xbf16, #tpu.memory_space<vmem>>, %arg4: memref<256x384xbf16, #tpu.memory_space<vmem>>, %arg5: memref<256x384xbf16, #tpu.memory_space<vmem>>) attributes {dimension_semantics = [#tpu.dimension_semantics<parallel>], iteration_bounds = array<i64: 1>, scalar_prefetch = 0 : i64, scratch_operands = 0 : i64, tpu.core_type = #tpu.core_type<tc>, window_params = [{transform_indices = @transform_0, window_bounds = array<i64: 256, 384>}, {pipeline_mode = #tpu.pipeline_mode<synchronous>, transform_indices = @transform_1, window_bounds = array<i64: 384, 1152>}, {transform_indices = @transform_2, window_bounds = array<i64: 256, 384>}, {transform_indices = @transform_3, window_bounds = array<i64: 256, 384>}, {transform_indices = @transform_4, window_bounds = array<i64: 256, 384>}]} {
    %c0 = arith.constant 0 : index
    %c0_0 = arith.constant 0 : index
    %0 = vector.load %arg1[%c0, %c0_0] : memref<256x384xbf16, #tpu.memory_space<vmem>>, vector<256x384xbf16>
    %c0_1 = arith.constant 0 : index
    %c0_2 = arith.constant 0 : index
    %1 = vector.load %arg2[%c0_1, %c0_2] : memref<384x1152xbf16, #tpu.memory_space<vmem>>, vector<384x1152xbf16>
    %cst = arith.constant dense<0.000000e+00> : vector<256x1152xf32>
    %2 = tpu.matmul %0, %1, %cst {dimension_numbers = #tpu.dot_dimension_numbers<[1], [0], [0], [1], [0, 0, 1, 1], [], []>} : vector<256x384xbf16>, vector<384x1152xbf16>, vector<256x1152xf32> -> vector<256x1152xf32>
    %3 = vector.extract_strided_slice %2 {offsets = [0, 0], sizes = [256, 384], strides = [1, 1]} : vector<256x1152xf32> to vector<256x384xf32>
    %4 = arith.truncf %3 : vector<256x384xf32> to vector<256x384xbf16>
    %c0_3 = arith.constant 0 : index
    %c0_4 = arith.constant 0 : index
    %5 = vector.load %arg3[%c0_3, %c0_4] : memref<256x384xbf16, #tpu.memory_space<vmem>>, vector<256x384xbf16>
    tpu.vector_store %arg3[%c0_3, %c0_4], %4 {strides = array<i32>} : memref<256x384xbf16, #tpu.memory_space<vmem>>, vector<256x384xbf16>,
    %6 = vector.extract_strided_slice %2 {offsets = [0, 384], sizes = [256, 384], strides = [1, 1]} : vector<256x1152xf32> to vector<256x384xf32>
    %7 = arith.truncf %6 : vector<256x384xf32> to vector<256x384xbf16>
    %c0_5 = arith.constant 0 : index
    %c0_6 = arith.constant 0 : index
    %8 = vector.load %arg4[%c0_5, %c0_6] : memref<256x384xbf16, #tpu.memory_space<vmem>>, vector<256x384xbf16>
    tpu.vector_store %arg4[%c0_5, %c0_6], %7 {strides = array<i32>} : memref<256x384xbf16, #tpu.memory_space<vmem>>, vector<256x384xbf16>,
    %9 = vector.extract_strided_slice %2 {offsets = [0, 768], sizes = [256, 384], strides = [1, 1]} : vector<256x1152xf32> to vector<256x384xf32>
    %10 = arith.truncf %9 : vector<256x384xf32> to vector<256x384xbf16>
    %c0_7 = arith.constant 0 : index
    %c0_8 = arith.constant 0 : index
    %11 = vector.load %arg5[%c0_7, %c0_8] : memref<256x384xbf16, #tpu.memory_space<vmem>>, vector<256x384xbf16>
    tpu.vector_store %arg5[%c0_7, %c0_8], %10 {strides = array<i32>} : memref<256x384xbf16, #tpu.memory_space<vmem>>, vector<256x384xbf16>,
    return
  }
  func.func @transform_0(%arg0: i32) -> (i32, i32) {
    %c0_i32 = arith.constant 0 : i32
    %c0_i32_0 = arith.constant 0 : i32
    return %arg0, %c0_i32 : i32, i32
  }
  func.func @transform_1(%arg0: i32) -> (i32, i32) {
    %c0_i32 = arith.constant 0 : i32
    %c0_i32_0 = arith.constant 0 : i32
    %c0_i32_1 = arith.constant 0 : i32
    return %c0_i32, %c0_i32_0 : i32, i32
  }
  func.func @transform_2(%arg0: i32) -> (i32, i32) {
    %c0_i32 = arith.constant 0 : i32
    %c0_i32_0 = arith.constant 0 : i32
    return %arg0, %c0_i32 : i32, i32
  }
  func.func @transform_3(%arg0: i32) -> (i32, i32) {
    %c0_i32 = arith.constant 0 : i32
    %c0_i32_0 = arith.constant 0 : i32
    return %arg0, %c0_i32 : i32, i32
  }
  func.func @transform_4(%arg0: i32) -> (i32, i32) {
    %c0_i32 = arith.constant 0 : i32
    %c0_i32_0 = arith.constant 0 : i32
    return %arg0, %c0_i32 : i32, i32
  }
}

</mosaic_0001>

<llo_original>
// kernel: tpu_custom_call.1
$region0: #{tpu_custom_call.1}
  #allocation0 [shape = 'u32[]', space=smem, size = 0x4, offset = 0x4, fixed_abs, tag = 'smem constant byte address 0x4 - core index']
  #allocation1 [shape = 'u32[144,128]{1,0:T(1,128)}', space=vmem, size = 0x12000, scoped, tag = 'internal scratch']
  %s0 = inlined_call_operand.hbm [shape: bf16[256,384], index: 0, kind: input, shape index: {}]
  %s1 = inlined_call_operand.hbm [shape: bf16[384,1152], index: 1, kind: input, shape index: {}]
  %s2 = inlined_call_operand.hbm [shape: bf16[256,384], index: 2, kind: output, shape index: {0}]
  %s3 = inlined_call_operand.hbm [shape: bf16[256,384], index: 3, kind: output, shape index: {1}]
  %s4 = inlined_call_operand.hbm [shape: bf16[256,384], index: 4, kind: output, shape index: {2}]
  %5 = xla_tuple %s2, %s3, %s4
  %s6 = sld [smem:[#allocation0]]
  $region42: #{tpu_custom_call.1} parent=0
    _
  %s8 = ssub.s32 1, %s6
  %s9 = scalar_select 0, %s8, %s6
  $region1: #{tpu_custom_call.1} parent=0
    #allocation2 [shape = 'u8[196608]{0}', space=vmem, size = 0x30000, scoped, tag = 'input window, operand 0, single buffered']
    #allocation3 [shape = 's32[1]{0}', space=sflag, size = 0x4, scoped, tag = 'scoped memory for tpu_custom_call.1']
    #allocation4 [shape = 's32[1]{0}', space=sflag, size = 0x4, scoped, tag = 'scoped memory for tpu_custom_call.1']
    #allocation5 [shape = 'u8[884736]{0}', space=vmem, size = 0xd8000, scoped, tag = 'input window, operand 1, single buffered']
    #allocation6 [shape = 's32[1]{0}', space=sflag, size = 0x4, scoped, tag = 'scoped memory for tpu_custom_call.1']
    #allocation7 [shape = 'u8[196608]{0}', space=vmem, size = 0x30000, scoped, tag = 'output window, operand 0, single buffered']
    #allocation8 [shape = 'u8[196608]{0}', space=vmem, size = 0x30000, scoped, tag = 'output window, operand 1, single buffered']
    #allocation9 [shape = 's32[1]{0}', space=sflag, size = 0x4, scoped, tag = 'scoped memory for tpu_custom_call.1']
    #allocation10 [shape = 'u8[196608]{0}', space=vmem, size = 0x30000, scoped, tag = 'output window, operand 2, single buffered']
    %10 = vsyncpa [#allocation3], 0
    %11 = vsyncpa [#allocation6], 0
    %12 = vsyncpa [#allocation4], 0
    %13 = vsyncpa [#allocation9], 0
    // Predicated region
    $region2: #{tpu_custom_call.1} parent=1 // pred_check
      _
    $region3: #{tpu_custom_call.1} parent=1 // pred_check_branch
      %15 = sbr.rel (0) target = $region5
    $region4: #{tpu_custom_call.1} parent=1 // pred_region
      %s17 = ssub.s32 6144, 6144
      %18 = vsyncadd [#allocation3], %s17
      %s19 = sshll.u32 [#allocation2], 4
      %s20 = int_to_ptr.vmem [resolvable:$true] %s19
      %25 = dma.hbm_to_vmem [thread:$0]  %s0, 6144, %s20, [#allocation3], 192, 192, 12
    $region5: #{tpu_custom_call.1} parent=1 // pred_fallthru
      _
    // Predicated region
    $region6: #{tpu_custom_call.1} parent=1 // pred_check
      _
    $region7: #{tpu_custom_call.1} parent=1 // pred_check_branch
      %27 = sbr.rel (0) target = $region9
    $region8: #{tpu_custom_call.1} parent=1 // pred_region
      %s29 = ssub.s32 27648, 27648
      %30 = vsyncadd [#allocation6], %s29
      %s31 = sshll.u32 [#allocation5], 4
      %s32 = int_to_ptr.vmem [resolvable:$true] %s31
      %37 = dma.hbm_to_vmem [thread:$0]  %s1, 27648, %s32, [#allocation6], 576, 576, 36
    $region9: #{tpu_custom_call.1} parent=1 // pred_fallthru
      _
    // Predicated region
    $region10: #{tpu_custom_call.1} parent=1 // pred_check
      _
    $region11: #{tpu_custom_call.1} parent=1 // pred_check_branch
      %39 = sbr.rel (0) target = $region13
    $region12: #{tpu_custom_call.1} parent=1 // pred_region
      %40 = dma.done [#allocation3], 6144
    $region13: #{tpu_custom_call.1} parent=1 // pred_fallthru
      _
    // Predicated region
    $region14: #{tpu_custom_call.1} parent=1 // pred_check
      _
    $region15: #{tpu_custom_call.1} parent=1 // pred_check_branch
      %42 = sbr.rel (0) target = $region17
    $region16: #{tpu_custom_call.1} parent=1 // pred_region
      %43 = dma.done [#allocation6], 27648
    $region17: #{tpu_custom_call.1} parent=1 // pred_fallthru
      _
    %v45 = vld [vmem:[#allocation2] sm:$0xff]
    %v46 = vld [vmem:[#allocation2 + $0x8] sm:$0xf]
    %v47 = vld [vmem:[#allocation2 + $0xc] sm:$0xff]
    %v48 = vld [vmem:[#allocation2 + $0x14] sm:$0xf]
    %v49 = vld [vmem:[#allocation2 + $0x18] sm:$0xff]
    %v50 = vld [vmem:[#allocation2 + $0x20] sm:$0xf]
    %v51 = vld [vmem:[#allocation2 + $0x24] sm:$0xff]
    %v52 = vld [vmem:[#allocation2 + $0x2c] sm:$0xf]
    %v53 = vld [vmem:[#allocation2 + $0x30] sm:$0xff]
    %v54 = vld [vmem:[#allocation2 + $0x38] sm:$0xf]
    %v55 = vld [vmem:[#allocation2 + $0x3c] sm:$0xff]
    %v56 = vld [vmem:[#allocation2 + $0x44] sm:$0xf]
    %v57 = vld [vmem:[#allocation2 + $0x48] sm:$0xff]
    %v58 = vld [vmem:[#allocation2 + $0x50] sm:$0xf]
    %v59 = vld [vmem:[#allocation2 + $0x54] sm:$0xff]
    %v60 = vld [vmem:[#allocation2 + $0x5c] sm:$0xf]
    %v61 = vld [vmem:[#allocation2 + $0x60] sm:$0xff]
    %v62 = vld [vmem:[#allocation2 + $0x68] sm:$0xf]
    %v63 = vld [vmem:[#allocation2 + $0x6c] sm:$0xff]
    %v64 = vld [vmem:[#allocation2 + $0x74] sm:$0xf]
    %v65 = vld [vmem:[#allocation2 + $0x78] sm:$0xff]
    %v66 = vld [vmem:[#allocation2 + $0x80] sm:$0xf]
    %v67 = vld [vmem:[#allocation2 + $0x84] sm:$0xff]
    %v68 = vld [vmem:[#allocation2 + $0x8c] sm:$0xf]
    %v69 = vld [vmem:[#allocation2 + $0x90] sm:$0xff]
    %v70 = vld [vmem:[#allocation2 + $0x98] sm:$0xf]
    %v71 = vld [vmem:[#allocation2 + $0x9c] sm:$0xff]
    %v72 = vld [vmem:[#allocation2 + $0xa4] sm:$0xf]
    %v73 = vld [vmem:[#allocation2 + $0xa8] sm:$0xff]
    %v74 = vld [vmem:[#allocation2 + $0xb0] sm:$0xf]
    %v75 = vld [vmem:[#allocation2 + $0xb4] sm:$0xff]
    %v76 = vld [vmem:[#allocation2 + $0xbc] sm:$0xf]
    %v77 = vld [vmem:[#allocation2 + $0xc0] sm:$0xff]
    %v78 = vld [vmem:[#allocation2 + $0xc8] sm:$0xf]
    %v79 = vld [vmem:[#allocation2 + $0xcc] sm:$0xff]
    %v80 = vld [vmem:[#allocation2 + $0xd4] sm:$0xf]
    %v81 = vld [vmem:[#allocation2 + $0xd8] sm:$0xff]
    %v82 = vld [vmem:[#allocation2 + $0xe0] sm:$0xf]
    %v83 = vld [vmem:[#allocation2 + $0xe4] sm:$0xff]
    %v84 = vld [vmem:[#allocation2 + $0xec] sm:$0xf]
    %v85 = vld [vmem:[#allocation2 + $0xf0] sm:$0xff]
    %v86 = vld [vmem:[#allocation2 + $0xf8] sm:$0xf]
    %v87 = vld [vmem:[#allocation2 + $0xfc] sm:$0xff]
    %v88 = vld [vmem:[#allocation2 + $0x104] sm:$0xf]
    %v89 = vld [vmem:[#allocation2 + $0x108] sm:$0xff]
    %v90 = vld [vmem:[#allocation2 + $0x110] sm:$0xf]
    %v91 = vld [vmem:[#allocation2 + $0x114] sm:$0xff]
    %v92 = vld [vmem:[#allocation2 + $0x11c] sm:$0xf]
    %v93 = vld [vmem:[#allocation2 + $0x120] sm:$0xff]
    %v94 = vld [vmem:[#allocation2 + $0x128] sm:$0xf]
    %v95 = vld [vmem:[#allocation2 + $0x12c] sm:$0xff]
    %v96 = vld [vmem:[#allocation2 + $0x134] sm:$0xf]
    %v97 = vld [vmem:[#allocation2 + $0x138] sm:$0xff]
    %v98 = vld [vmem:[#allocation2 + $0x140] sm:$0xf]
    %v99 = vld [vmem:[#allocation2 + $0x144] sm:$0xff]
    %v100 = vld [vmem:[#allocation2 + $0x14c] sm:$0xf]
    %v101 = vld [vmem:[#allocation2 + $0x150] sm:$0xff]
    %v102 = vld [vmem:[#allocation2 + $0x158] sm:$0xf]
    %v103 = vld [vmem:[#allocation2 + $0x15c] sm:$0xff]
    %v104 = vld [vmem:[#allocation2 + $0x164] sm:$0xf]
    %v105 = vld [vmem:[#allocation2 + $0x168] sm:$0xff]
    %v106 = vld [vmem:[#allocation2 + $0x170] sm:$0xf]
    %v107 = vld [vmem:[#allocation2 + $0x174] sm:$0xff]
    %v108 = vld [vmem:[#allocation2 + $0x17c] sm:$0xf]
    %v109 = vld [vmem:[#allocation5] sm:$0xff]
    %v110 = vld [vmem:[#allocation5 + $0x8] sm:$0xff]
    %v111 = vld [vmem:[#allocation5 + $0x10] sm:$0xff]
    %v112 = vld [vmem:[#allocation5 + $0x18] sm:$0xff]
    %v113 = vld [vmem:[#allocation5 + $0x20] sm:$0xf]
    %v114 = vld [vmem:[#allocation5 + $0x24] sm:$0xff]
    %v115 = vld [vmem:[#allocation5 + $0x2c] sm:$0xff]
    %v116 = vld [vmem:[#allocation5 + $0x34] sm:$0xff]
    %v117 = vld [vmem:[#allocation5 + $0x3c] sm:$0xff]
    %v118 = vld [vmem:[#allocation5 + $0x44] sm:$0xf]
    %v119 = vld [vmem:[#allocation5 + $0x48] sm:$0xff]
    %v120 = vld [vmem:[#allocation5 + $0x50] sm:$0xff]
    %v121 = vld [vmem:[#allocation5 + $0x58] sm:$0xff]
    %v122 = vld [vmem:[#allocation5 + $0x60] sm:$0xff]
    %v123 = vld [vmem:[#allocation5 + $0x68] sm:$0xf]
    %v124 = vld [vmem:[#allocation5 + $0x6c] sm:$0xff]
    %v125 = vld [vmem:[#allocation5 + $0x74] sm:$0xff]
    %v126 = vld [vmem:[#allocation5 + $0x7c] sm:$0xff]
    %v127 = vld [vmem:[#allocation5 + $0x84] sm:$0xff]
    %v128 = vld [vmem:[#allocation5 + $0x8c] sm:$0xf]
    %v129 = vld [vmem:[#allocation5 + $0x90] sm:$0xff]
    %v130 = vld [vmem:[#allocation5 + $0x98] sm:$0xff]
    %v131 = vld [vmem:[#allocation5 + $0xa0] sm:$0xff]
    %v132 = vld [vmem:[#allocation5 + $0xa8] sm:$0xff]
    %v133 = vld [vmem:[#allocation5 + $0xb0] sm:$0xf]
    %v134 = vld [vmem:[#allocation5 + $0xb4] sm:$0xff]
    %v135 = vld [vmem:[#allocation5 + $0xbc] sm:$0xff]
    %v136 = vld [vmem:[#allocation5 + $0xc4] sm:$0xff]
    %v137 = vld [vmem:[#allocation5 + $0xcc] sm:$0xff]
    %v138 = vld [vmem:[#allocation5 + $0xd4] sm:$0xf]
    %v139 = vld [vmem:[#allocation5 + $0xd8] sm:$0xff]
    %v140 = vld [vmem:[#allocation5 + $0xe0] sm:$0xff]
    %v141 = vld [vmem:[#allocation5 + $0xe8] sm:$0xff]
    %v142 = vld [vmem:[#allocation5 + $0xf0] sm:$0xff]
    %v143 = vld [vmem:[#allocation5 + $0xf8] sm:$0xf]
    %v144 = vld [vmem:[#allocation5 + $0xfc] sm:$0xff]
    %v145 = vld [vmem:[#allocation5 + $0x104] sm:$0xff]
    %v146 = vld [vmem:[#allocation5 + $0x10c] sm:$0xff]
    %v147 = vld [vmem:[#allocation5 + $0x114] sm:$0xff]
    %v148 = vld [vmem:[#allocation5 + $0x11c] sm:$0xf]
    %v149 = vld [vmem:[#allocation5 + $0x120] sm:$0xff]
    %v150 = vld [vmem:[#allocation5 + $0x128] sm:$0xff]
    %v151 = vld [vmem:[#allocation5 + $0x130] sm:$0xff]
    %v152 = vld [vmem:[#allocation5 + $0x138] sm:$0xff]
    %v153 = vld [vmem:[#allocation5 + $0x140] sm:$0xf]
    %v154 = vld [vmem:[#allocation5 + $0x144] sm:$0xff]
    %v155 = vld [vmem:[#allocation5 + $0x14c] sm:$0xff]
    %v156 = vld [vmem:[#allocation5 + $0x154] sm:$0xff]
    %v157 = vld [vmem:[#allocation5 + $0x15c] sm:$0xff]
    %v158 = vld [vmem:[#allocation5 + $0x164] sm:$0xf]
    %v159 = vld [vmem:[#allocation5 + $0x168] sm:$0xff]
    %v160 = vld [vmem:[#allocation5 + $0x170] sm:$0xff]
    %v161 = vld [vmem:[#allocation5 + $0x178] sm:$0xff]
    %v162 = vld [vmem:[#allocation5 + $0x180] sm:$0xff]
    %v163 = vld [vmem:[#allocation5 + $0x188] sm:$0xf]
    %v164 = vld [vmem:[#allocation5 + $0x18c] sm:$0xff]
    %v165 = vld [vmem:[#allocation5 + $0x194] sm:$0xff]
    %v166 = vld [vmem:[#allocation5 + $0x19c] sm:$0xff]
    %v167 = vld [vmem:[#allocation5 + $0x1a4] sm:$0xff]
    %v168 = vld [vmem:[#allocation5 + $0x1ac] sm:$0xf]
    %v169 = vld [vmem:[#allocation5 + $0x1b0] sm:$0xff]
    %v170 = vld [vmem:[#allocation5 + $0x1b8] sm:$0xff]
    %v171 = vld [vmem:[#allocation5 + $0x1c0] sm:$0xff]
    %v172 = vld [vmem:[#allocation5 + $0x1c8] sm:$0xff]
    %v173 = vld [vmem:[#allocation5 + $0x1d0] sm:$0xf]
    %v174 = vld [vmem:[#allocation5 + $0x1d4] sm:$0xff]
    %v175 = vld [vmem:[#allocation5 + $0x1dc] sm:$0xff]
    %v176 = vld [vmem:[#allocation5 + $0x1e4] sm:$0xff]
    %v177 = vld [vmem:[#allocation5 + $0x1ec] sm:$0xff]
    %v178 = vld [vmem:[#allocation5 + $0x1f4] sm:$0xf]
    %v179 = vld [vmem:[#allocation5 + $0x1f8] sm:$0xff]
    %v180 = vld [vmem:[#allocation5 + $0x200] sm:$0xff]
    %v181 = vld [vmem:[#allocation5 + $0x208] sm:$0xff]
    %v182 = vld [vmem:[#allocation5 + $0x210] sm:$0xff]
    %v183 = vld [vmem:[#allocation5 + $0x218] sm:$0xf]
    %v184 = vld [vmem:[#allocation5 + $0x21c] sm:$0xff]
    %v185 = vld [vmem:[#allocation5 + $0x224] sm:$0xff]
    %v186 = vld [vmem:[#allocation5 + $0x22c] sm:$0xff]
    %v187 = vld [vmem:[#allocation5 + $0x234] sm:$0xff]
    %v188 = vld [vmem:[#allocation5 + $0x23c] sm:$0xf]
    %v189 = vld [vmem:[#allocation5 + $0x240] sm:$0xff]
    %v190 = vld [vmem:[#allocation5 + $0x248] sm:$0xff]
    %v191 = vld [vmem:[#allocation5 + $0x250] sm:$0xff]
    %v192 = vld [vmem:[#allocation5 + $0x258] sm:$0xff]
    %v193 = vld [vmem:[#allocation5 + $0x260] sm:$0xf]
    %v194 = vld [vmem:[#allocation5 + $0x264] sm:$0xff]
    %v195 = vld [vmem:[#allocation5 + $0x26c] sm:$0xff]
    %v196 = vld [vmem:[#allocation5 + $0x274] sm:$0xff]
    %v197 = vld [vmem:[#allocation5 + $0x27c] sm:$0xff]
    %v198 = vld [vmem:[#allocation5 + $0x284] sm:$0xf]
    %v199 = vld [vmem:[#allocation5 + $0x288] sm:$0xff]
    %v200 = vld [vmem:[#allocation5 + $0x290] sm:$0xff]
    %v201 = vld [vmem:[#allocation5 + $0x298] sm:$0xff]
    %v202 = vld [vmem:[#allocation5 + $0x2a0] sm:$0xff]
    %v203 = vld [vmem:[#allocation5 + $0x2a8] sm:$0xf]
    %v204 = vld [vmem:[#allocation5 + $0x2ac] sm:$0xff]
    %v205 = vld [vmem:[#allocation5 + $0x2b4] sm:$0xff]
    %v206 = vld [vmem:[#allocation5 + $0x2bc] sm:$0xff]
    %v207 = vld [vmem:[#allocation5 + $0x2c4] sm:$0xff]
    %v208 = vld [vmem:[#allocation5 + $0x2cc] sm:$0xf]
    %v209 = vld [vmem:[#allocation5 + $0x2d0] sm:$0xff]
    %v210 = vld [vmem:[#allocation5 + $0x2d8] sm:$0xff]
    %v211 = vld [vmem:[#allocation5 + $0x2e0] sm:$0xff]
    %v212 = vld [vmem:[#allocation5 + $0x2e8] sm:$0xff]
    %v213 = vld [vmem:[#allocation5 + $0x2f0] sm:$0xf]
    %v214 = vld [vmem:[#allocation5 + $0x2f4] sm:$0xff]
    %v215 = vld [vmem:[#allocation5 + $0x2fc] sm:$0xff]
    %v216 = vld [vmem:[#allocation5 + $0x304] sm:$0xff]
    %v217 = vld [vmem:[#allocation5 + $0x30c] sm:$0xff]
    %v218 = vld [vmem:[#allocation5 + $0x314] sm:$0xf]
    %v219 = vld [vmem:[#allocation5 + $0x318] sm:$0xff]
    %v220 = vld [vmem:[#allocation5 + $0x320] sm:$0xff]
    %v221 = vld [vmem:[#allocation5 + $0x328] sm:$0xff]
    %v222 = vld [vmem:[#allocation5 + $0x330] sm:$0xff]
    %v223 = vld [vmem:[#allocation5 + $0x338] sm:$0xf]
    %v224 = vld [vmem:[#allocation5 + $0x33c] sm:$0xff]
    %v225 = vld [vmem:[#allocation5 + $0x344] sm:$0xff]
    %v226 = vld [vmem:[#allocation5 + $0x34c] sm:$0xff]
    %v227 = vld [vmem:[#allocation5 + $0x354] sm:$0xff]
    %v228 = vld [vmem:[#allocation5 + $0x35c] sm:$0xf]
    %v229 = vld [vmem:[#allocation5 + $0x360] sm:$0xff]
    %v230 = vld [vmem:[#allocation5 + $0x368] sm:$0xff]
    %v231 = vld [vmem:[#allocation5 + $0x370] sm:$0xff]
    %v232 = vld [vmem:[#allocation5 + $0x378] sm:$0xff]
    %v233 = vld [vmem:[#allocation5 + $0x380] sm:$0xf]
    %v234 = vld [vmem:[#allocation5 + $0x384] sm:$0xff]
    %v235 = vld [vmem:[#allocation5 + $0x38c] sm:$0xff]
    %v236 = vld [vmem:[#allocation5 + $0x394] sm:$0xff]
    %v237 = vld [vmem:[#allocation5 + $0x39c] sm:$0xff]
    %v238 = vld [vmem:[#allocation5 + $0x3a4] sm:$0xf]
    %v239 = vld [vmem:[#allocation5 + $0x3a8] sm:$0xff]
    %v240 = vld [vmem:[#allocation5 + $0x3b0] sm:$0xff]
    %v241 = vld [vmem:[#allocation5 + $0x3b8] sm:$0xff]
    %v242 = vld [vmem:[#allocation5 + $0x3c0] sm:$0xff]
    %v243 = vld [vmem:[#allocation5 + $0x3c8] sm:$0xf]
    %v244 = vld [vmem:[#allocation5 + $0x3cc] sm:$0xff]
    %v245 = vld [vmem:[#allocation5 + $0x3d4] sm:$0xff]
    %v246 = vld [vmem:[#allocation5 + $0x3dc] sm:$0xff]
    %v247 = vld [vmem:[#allocation5 + $0x3e4] sm:$0xff]
    %v248 = vld [vmem:[#allocation5 + $0x3ec] sm:$0xf]
    %v249 = vld [vmem:[#allocation5 + $0x3f0] sm:$0xff]
    %v250 = vld [vmem:[#allocation5 + $0x3f8] sm:$0xff]
    %v251 = vld [vmem:[#allocation5 + $0x400] sm:$0xff]
    %v252 = vld [vmem:[#allocation5 + $0x408] sm:$0xff]
    %v253 = vld [vmem:[#allocation5 + $0x410] sm:$0xf]
    %v254 = vld [vmem:[#allocation5 + $0x414] sm:$0xff]
    %v255 = vld [vmem:[#allocation5 + $0x41c] sm:$0xff]
    %v256 = vld [vmem:[#allocation5 + $0x424] sm:$0xff]
    %v257 = vld [vmem:[#allocation5 + $0x42c] sm:$0xff]
    %v258 = vld [vmem:[#allocation5 + $0x434] sm:$0xf]
    %v259 = vld [vmem:[#allocation5 + $0x438] sm:$0xff]
    %v260 = vld [vmem:[#allocation5 + $0x440] sm:$0xff]
    %v261 = vld [vmem:[#allocation5 + $0x448] sm:$0xff]
    %v262 = vld [vmem:[#allocation5 + $0x450] sm:$0xff]
    %v263 = vld [vmem:[#allocation5 + $0x458] sm:$0xf]
    %v264 = vld [vmem:[#allocation5 + $0x45c] sm:$0xff]
    %v265 = vld [vmem:[#allocation5 + $0x464] sm:$0xff]
    %v266 = vld [vmem:[#allocation5 + $0x46c] sm:$0xff]
    %v267 = vld [vmem:[#allocation5 + $0x474] sm:$0xff]
    %v268 = vld [vmem:[#allocation5 + $0x47c] sm:$0xf]
    %v269 = vld [vmem:[#allocation5 + $0x480] sm:$0xff]
    %v270 = vld [vmem:[#allocation5 + $0x488] sm:$0xff]
    %v271 = vld [vmem:[#allocation5 + $0x490] sm:$0xff]
    %v272 = vld [vmem:[#allocation5 + $0x498] sm:$0xff]
    %v273 = vld [vmem:[#allocation5 + $0x4a0] sm:$0xf]
    %v274 = vld [vmem:[#allocation5 + $0x4a4] sm:$0xff]
    %v275 = vld [vmem:[#allocation5 + $0x4ac] sm:$0xff]
    %v276 = vld [vmem:[#allocation5 + $0x4b4] sm:$0xff]
    %v277 = vld [vmem:[#allocation5 + $0x4bc] sm:$0xff]
    %v278 = vld [vmem:[#allocation5 + $0x4c4] sm:$0xf]
    %v279 = vld [vmem:[#allocation5 + $0x4c8] sm:$0xff]
    %v280 = vld [vmem:[#allocation5 + $0x4d0] sm:$0xff]
    %v281 = vld [vmem:[#allocation5 + $0x4d8] sm:$0xff]
    %v282 = vld [vmem:[#allocation5 + $0x4e0] sm:$0xff]
    %v283 = vld [vmem:[#allocation5 + $0x4e8] sm:$0xf]
    %v284 = vld [vmem:[#allocation5 + $0x4ec] sm:$0xff]
    %v285 = vld [vmem:[#allocation5 + $0x4f4] sm:$0xff]
    %v286 = vld [vmem:[#allocation5 + $0x4fc] sm:$0xff]
    %v287 = vld [vmem:[#allocation5 + $0x504] sm:$0xff]
    %v288 = vld [vmem:[#allocation5 + $0x50c] sm:$0xf]
    %v289 = vld [vmem:[#allocation5 + $0x510] sm:$0xff]
    %v290 = vld [vmem:[#allocation5 + $0x518] sm:$0xff]
    %v291 = vld [vmem:[#allocation5 + $0x520] sm:$0xff]
    %v292 = vld [vmem:[#allocation5 + $0x528] sm:$0xff]
    %v293 = vld [vmem:[#allocation5 + $0x530] sm:$0xf]
    %v294 = vld [vmem:[#allocation5 + $0x534] sm:$0xff]
    %v295 = vld [vmem:[#allocation5 + $0x53c] sm:$0xff]
    %v296 = vld [vmem:[#allocation5 + $0x544] sm:$0xff]
    %v297 = vld [vmem:[#allocation5 + $0x54c] sm:$0xff]
    %v298 = vld [vmem:[#allocation5 + $0x554] sm:$0xf]
    %v299 = vld [vmem:[#allocation5 + $0x558] sm:$0xff]
    %v300 = vld [vmem:[#allocation5 + $0x560] sm:$0xff]
    %v301 = vld [vmem:[#allocation5 + $0x568] sm:$0xff]
    %v302 = vld [vmem:[#allocation5 + $0x570] sm:$0xff]
    %v303 = vld [vmem:[#allocation5 + $0x578] sm:$0xf]
    %v304 = vld [vmem:[#allocation5 + $0x57c] sm:$0xff]
    %v305 = vld [vmem:[#allocation5 + $0x584] sm:$0xff]
    %v306 = vld [vmem:[#allocation5 + $0x58c] sm:$0xff]
    %v307 = vld [vmem:[#allocation5 + $0x594] sm:$0xff]
    %v308 = vld [vmem:[#allocation5 + $0x59c] sm:$0xf]
    %v309 = vld [vmem:[#allocation5 + $0x5a0] sm:$0xff]
    %v310 = vld [vmem:[#allocation5 + $0x5a8] sm:$0xff]
    %v311 = vld [vmem:[#allocation5 + $0x5b0] sm:$0xff]
    %v312 = vld [vmem:[#allocation5 + $0x5b8] sm:$0xff]
    %v313 = vld [vmem:[#allocation5 + $0x5c0] sm:$0xf]
    %v314 = vld [vmem:[#allocation5 + $0x5c4] sm:$0xff]
    %v315 = vld [vmem:[#allocation5 + $0x5cc] sm:$0xff]
    %v316 = vld [vmem:[#allocation5 + $0x5d4] sm:$0xff]
    %v317 = vld [vmem:[#allocation5 + $0x5dc] sm:$0xff]
    %v318 = vld [vmem:[#allocation5 + $0x5e4] sm:$0xf]
    %v319 = vld [vmem:[#allocation5 + $0x5e8] sm:$0xff]
    %v320 = vld [vmem:[#allocation5 + $0x5f0] sm:$0xff]
    %v321 = vld [vmem:[#allocation5 + $0x5f8] sm:$0xff]
    %v322 = vld [vmem:[#allocation5 + $0x600] sm:$0xff]
    %v323 = vld [vmem:[#allocation5 + $0x608] sm:$0xf]
    %v324 = vld [vmem:[#allocation5 + $0x60c] sm:$0xff]
    %v325 = vld [vmem:[#allocation5 + $0x614] sm:$0xff]
    %v326 = vld [vmem:[#allocation5 + $0x61c] sm:$0xff]
    %v327 = vld [vmem:[#allocation5 + $0x624] sm:$0xff]
    %v328 = vld [vmem:[#allocation5 + $0x62c] sm:$0xf]
    %v329 = vld [vmem:[#allocation5 + $0x630] sm:$0xff]
    %v330 = vld [vmem:[#allocation5 + $0x638] sm:$0xff]
    %v331 = vld [vmem:[#allocation5 + $0x640] sm:$0xff]
    %v332 = vld [vmem:[#allocation5 + $0x648] sm:$0xff]
    %v333 = vld [vmem:[#allocation5 + $0x650] sm:$0xf]
    %v334 = vld [vmem:[#allocation5 + $0x654] sm:$0xff]
    %v335 = vld [vmem:[#allocation5 + $0x65c] sm:$0xff]
    %v336 = vld [vmem:[#allocation5 + $0x664] sm:$0xff]
    %v337 = vld [vmem:[#allocation5 + $0x66c] sm:$0xff]
    %v338 = vld [vmem:[#allocation5 + $0x674] sm:$0xf]
    %v339 = vld [vmem:[#allocation5 + $0x678] sm:$0xff]
    %v340 = vld [vmem:[#allocation5 + $0x680] sm:$0xff]
    %v341 = vld [vmem:[#allocation5 + $0x688] sm:$0xff]
    %v342 = vld [vmem:[#allocation5 + $0x690] sm:$0xff]
    %v343 = vld [vmem:[#allocation5 + $0x698] sm:$0xf]
    %v344 = vld [vmem:[#allocation5 + $0x69c] sm:$0xff]
    %v345 = vld [vmem:[#allocation5 + $0x6a4] sm:$0xff]
    %v346 = vld [vmem:[#allocation5 + $0x6ac] sm:$0xff]
    %v347 = vld [vmem:[#allocation5 + $0x6b4] sm:$0xff]
    %v348 = vld [vmem:[#allocation5 + $0x6bc] sm:$0xf]
    %v413 = vunpack.c.l.b16 %v45
    %v414 = vunpack.c.h.b16 %v45
    %v415 = vunpack.c.l.b16 %v46
    %v416 = vunpack.c.l.b16 %v47
    %v417 = vunpack.c.h.b16 %v47
    %v418 = vunpack.c.l.b16 %v48
    %v419 = vunpack.c.l.b16 %v49
    %v420 = vunpack.c.h.b16 %v49
    %v421 = vunpack.c.l.b16 %v50
    %v422 = vunpack.c.l.b16 %v51
    %v423 = vunpack.c.h.b16 %v51
    %v424 = vunpack.c.l.b16 %v52
    %v425 = vunpack.c.l.b16 %v53
    %v426 = vunpack.c.h.b16 %v53
    %v427 = vunpack.c.l.b16 %v54
    %v428 = vunpack.c.l.b16 %v55
    %v429 = vunpack.c.h.b16 %v55
    %v430 = vunpack.c.l.b16 %v56
    %v431 = vunpack.c.l.b16 %v57
    %v432 = vunpack.c.h.b16 %v57
    %v433 = vunpack.c.l.b16 %v58
    %v434 = vunpack.c.l.b16 %v59
    %v435 = vunpack.c.h.b16 %v59
    %v436 = vunpack.c.l.b16 %v60
    %v437 = vunpack.c.l.b16 %v61
    %v438 = vunpack.c.h.b16 %v61
    %v439 = vunpack.c.l.b16 %v62
    %v440 = vunpack.c.l.b16 %v63
    %v441 = vunpack.c.h.b16 %v63
    %v442 = vunpack.c.l.b16 %v64
    %v443 = vunpack.c.l.b16 %v65
    %v444 = vunpack.c.h.b16 %v65
    %v445 = vunpack.c.l.b16 %v66
    %v446 = vunpack.c.l.b16 %v67
    %v447 = vunpack.c.h.b16 %v67
    %v448 = vunpack.c.l.b16 %v68
    %v449 = vunpack.c.l.b16 %v69
    %v450 = vunpack.c.h.b16 %v69
    %v451 = vunpack.c.l.b16 %v70
    %v452 = vunpack.c.l.b16 %v71
    %v453 = vunpack.c.h.b16 %v71
    %v454 = vunpack.c.l.b16 %v72
    %v455 = vunpack.c.l.b16 %v73
    %v456 = vunpack.c.h.b16 %v73
    %v457 = vunpack.c.l.b16 %v74
    %v458 = vunpack.c.l.b16 %v75
    %v459 = vunpack.c.h.b16 %v75
    %v460 = vunpack.c.l.b16 %v76
    %v461 = vunpack.c.l.b16 %v77
    %v462 = vunpack.c.h.b16 %v77
    %v463 = vunpack.c.l.b16 %v78
    %v464 = vunpack.c.l.b16 %v79
    %v465 = vunpack.c.h.b16 %v79
    %v466 = vunpack.c.l.b16 %v80
    %v467 = vunpack.c.l.b16 %v81
    %v468 = vunpack.c.h.b16 %v81
    %v469 = vunpack.c.l.b16 %v82
    %v470 = vunpack.c.l.b16 %v83
    %v471 = vunpack.c.h.b16 %v83
    %v472 = vunpack.c.l.b16 %v84
    %v473 = vunpack.c.l.b16 %v85
    %v474 = vunpack.c.h.b16 %v85
    %v475 = vunpack.c.l.b16 %v86
    %v476 = vunpack.c.l.b16 %v87
    %v477 = vunpack.c.h.b16 %v87
    %v478 = vunpack.c.l.b16 %v88
    %v479 = vunpack.c.l.b16 %v89
    %v480 = vunpack.c.h.b16 %v89
    %v481 = vunpack.c.l.b16 %v90
    %v482 = vunpack.c.l.b16 %v91
    %v483 = vunpack.c.h.b16 %v91
    %v484 = vunpack.c.l.b16 %v92
    %v485 = vunpack.c.l.b16 %v93
    %v486 = vunpack.c.h.b16 %v93
    %v487 = vunpack.c.l.b16 %v94
    %v488 = vunpack.c.l.b16 %v95
    %v489 = vunpack.c.h.b16 %v95
    %v490 = vunpack.c.l.b16 %v96
    %v491 = vunpack.c.l.b16 %v97
    %v492 = vunpack.c.h.b16 %v97
    %v493 = vunpack.c.l.b16 %v98
    %v494 = vunpack.c.l.b16 %v99
    %v495 = vunpack.c.h.b16 %v99
    %v496 = vunpack.c.l.b16 %v100
    %v497 = vunpack.c.l.b16 %v101
    %v498 = vunpack.c.h.b16 %v101
    %v499 = vunpack.c.l.b16 %v102
    %v500 = vunpack.c.l.b16 %v103
    %v501 = vunpack.c.h.b16 %v103
    %v502 = vunpack.c.l.b16 %v104
    %v503 = vunpack.c.l.b16 %v105
    %v504 = vunpack.c.h.b16 %v105
    %v505 = vunpack.c.l.b16 %v106
    %v506 = vunpack.c.l.b16 %v107
    %v507 = vunpack.c.h.b16 %v107
    %v508 = vunpack.c.l.b16 %v108
    %v509 = vpack.c.b16 %v416, %v413
    %v510 = vpack.c.b16 %v417, %v414
    %v511 = vpack.c.b16 %v418, %v415
    %v512 = vpack.c.b16 %v422, %v419
    %v513 = vpack.c.b16 %v423, %v420
    %v514 = vpack.c.b16 %v424, %v421
    %v515 = vpack.c.b16 %v428, %v425
    %v516 = vpack.c.b16 %v429, %v426
    %v517 = vpack.c.b16 %v430, %v427
    %v518 = vpack.c.b16 %v434, %v431
    %v519 = vpack.c.b16 %v435, %v432
    %v520 = vpack.c.b16 %v436, %v433
    %v521 = vpack.c.b16 %v440, %v437
    %v522 = vpack.c.b16 %v441, %v438
    %v523 = vpack.c.b16 %v442, %v439
    %v524 = vpack.c.b16 %v446, %v443
    %v525 = vpack.c.b16 %v447, %v444
    %v526 = vpack.c.b16 %v448, %v445
    %v527 = vpack.c.b16 %v452, %v449
    %v528 = vpack.c.b16 %v453, %v450
    %v529 = vpack.c.b16 %v454, %v451
    %v530 = vpack.c.b16 %v458, %v455
    %v531 = vpack.c.b16 %v459, %v456
    %v532 = vpack.c.b16 %v460, %v457
    %v533 = vpack.c.b16 %v464, %v461
    %v534 = vpack.c.b16 %v465, %v462
    %v535 = vpack.c.b16 %v466, %v463
    %v536 = vpack.c.b16 %v470, %v467
    %v537 = vpack.c.b16 %v471, %v468
    %v538 = vpack.c.b16 %v472, %v469
    %v539 = vpack.c.b16 %v476, %v473
    %v540 = vpack.c.b16 %v477, %v474
    %v541 = vpack.c.b16 %v478, %v475
    %v542 = vpack.c.b16 %v482, %v479
    %v543 = vpack.c.b16 %v483, %v480
    %v544 = vpack.c.b16 %v484, %v481
    %v545 = vpack.c.b16 %v488, %v485
    %v546 = vpack.c.b16 %v489, %v486
    %v547 = vpack.c.b16 %v490, %v487
    %v548 = vpack.c.b16 %v494, %v491
    %v549 = vpack.c.b16 %v495, %v492
    %v550 = vpack.c.b16 %v496, %v493
    %v551 = vpack.c.b16 %v500, %v497
    %v552 = vpack.c.b16 %v501, %v498
    %v553 = vpack.c.b16 %v502, %v499
    %v554 = vpack.c.b16 %v506, %v503
    %v555 = vpack.c.b16 %v507, %v504
    %v556 = vpack.c.b16 %v508, %v505
    %v845 = vunpack.c.l.b16 %v109
    %v846 = vunpack.c.h.b16 %v109
    %v847 = vunpack.c.l.b16 %v110
    %v848 = vunpack.c.h.b16 %v110
    %v849 = vunpack.c.l.b16 %v111
    %v850 = vunpack.c.h.b16 %v111
    %v851 = vunpack.c.l.b16 %v112
    %v852 = vunpack.c.h.b16 %v112
    %v853 = vunpack.c.l.b16 %v113
    %v854 = vunpack.c.l.b16 %v114
    %v855 = vunpack.c.h.b16 %v114
    %v856 = vunpack.c.l.b16 %v115
    %v857 = vunpack.c.h.b16 %v115
    %v858 = vunpack.c.l.b16 %v116
    %v859 = vunpack.c.h.b16 %v116
    %v860 = vunpack.c.l.b16 %v117
    %v861 = vunpack.c.h.b16 %v117
    %v862 = vunpack.c.l.b16 %v118
    %v863 = vunpack.c.l.b16 %v119
    %v864 = vunpack.c.h.b16 %v119
    %v865 = vunpack.c.l.b16 %v120
    %v866 = vunpack.c.h.b16 %v120
    %v867 = vunpack.c.l.b16 %v121
    %v868 = vunpack.c.h.b16 %v121
    %v869 = vunpack.c.l.b16 %v122
    %v870 = vunpack.c.h.b16 %v122
    %v871 = vunpack.c.l.b16 %v123
    %v872 = vunpack.c.l.b16 %v124
    %v873 = vunpack.c.h.b16 %v124
    %v874 = vunpack.c.l.b16 %v125
    %v875 = vunpack.c.h.b16 %v125
    %v876 = vunpack.c.l.b16 %v126
    %v877 = vunpack.c.h.b16 %v126
    %v878 = vunpack.c.l.b16 %v127
    %v879 = vunpack.c.h.b16 %v127
    %v880 = vunpack.c.l.b16 %v128
    %v881 = vunpack.c.l.b16 %v129
    %v882 = vunpack.c.h.b16 %v129
    %v883 = vunpack.c.l.b16 %v130
    %v884 = vunpack.c.h.b16 %v130
    %v885 = vunpack.c.l.b16 %v131
    %v886 = vunpack.c.h.b16 %v131
    %v887 = vunpack.c.l.b16 %v132
    %v888 = vunpack.c.h.b16 %v132
    %v889 = vunpack.c.l.b16 %v133
    %v890 = vunpack.c.l.b16 %v134
    %v891 = vunpack.c.h.b16 %v134
    %v892 = vunpack.c.l.b16 %v135
    %v893 = vunpack.c.h.b16 %v135
    %v894 = vunpack.c.l.b16 %v136
    %v895 = vunpack.c.h.b16 %v136
    %v896 = vunpack.c.l.b16 %v137
    %v897 = vunpack.c.h.b16 %v137
    %v898 = vunpack.c.l.b16 %v138
    %v899 = vunpack.c.l.b16 %v139
    %v900 = vunpack.c.h.b16 %v139
    %v901 = vunpack.c.l.b16 %v140
    %v902 = vunpack.c.h.b16 %v140
    %v903 = vunpack.c.l.b16 %v141
    %v904 = vunpack.c.h.b16 %v141
    %v905 = vunpack.c.l.b16 %v142
    %v906 = vunpack.c.h.b16 %v142
    %v907 = vunpack.c.l.b16 %v143
    %v908 = vunpack.c.l.b16 %v144
    %v909 = vunpack.c.h.b16 %v144
    %v910 = vunpack.c.l.b16 %v145
    %v911 = vunpack.c.h.b16 %v145
    %v912 = vunpack.c.l.b16 %v146
    %v913 = vunpack.c.h.b16 %v146
    %v914 = vunpack.c.l.b16 %v147
    %v915 = vunpack.c.h.b16 %v147
    %v916 = vunpack.c.l.b16 %v148
    %v917 = vunpack.c.l.b16 %v149
    %v918 = vunpack.c.h.b16 %v149
    %v919 = vunpack.c.l.b16 %v150
    %v920 = vunpack.c.h.b16 %v150
    %v921 = vunpack.c.l.b16 %v151
    %v922 = vunpack.c.h.b16 %v151
    %v923 = vunpack.c.l.b16 %v152
    %v924 = vunpack.c.h.b16 %v152
    %v925 = vunpack.c.l.b16 %v153
    %v926 = vunpack.c.l.b16 %v154
    %v927 = vunpack.c.h.b16 %v154
    %v928 = vunpack.c.l.b16 %v155
    %v929 = vunpack.c.h.b16 %v155
    %v930 = vunpack.c.l.b16 %v156
    %v931 = vunpack.c.h.b16 %v156
    %v932 = vunpack.c.l.b16 %v157
    %v933 = vunpack.c.h.b16 %v157
    %v934 = vunpack.c.l.b16 %v158
    %v935 = vunpack.c.l.b16 %v159
    %v936 = vunpack.c.h.b16 %v159
    %v937 = vunpack.c.l.b16 %v160
    %v938 = vunpack.c.h.b16 %v160
    %v939 = vunpack.c.l.b16 %v161
    %v940 = vunpack.c.h.b16 %v161
    %v941 = vunpack.c.l.b16 %v162
    %v942 = vunpack.c.h.b16 %v162
    %v943 = vunpack.c.l.b16 %v163
    %v944 = vunpack.c.l.b16 %v164
    %v945 = vunpack.c.h.b16 %v164
    %v946 = vunpack.c.l.b16 %v165
    %v947 = vunpack.c.h.b16 %v165
    %v948 = vunpack.c.l.b16 %v166
    %v949 = vunpack.c.h.b16 %v166
    %v950 = vunpack.c.l.b16 %v167
    %v951 = vunpack.c.h.b16 %v167
    %v952 = vunpack.c.l.b16 %v168
    %v953 = vunpack.c.l.b16 %v169
    %v954 = vunpack.c.h.b16 %v169
    %v955 = vunpack.c.l.b16 %v170
    %v956 = vunpack.c.h.b16 %v170
    %v957 = vunpack.c.l.b16 %v171
    %v958 = vunpack.c.h.b16 %v171
    %v959 = vunpack.c.l.b16 %v172
    %v960 = vunpack.c.h.b16 %v172
    %v961 = vunpack.c.l.b16 %v173
    %v962 = vunpack.c.l.b16 %v174
    %v963 = vunpack.c.h.b16 %v174
    %v964 = vunpack.c.l.b16 %v175
    %v965 = vunpack.c.h.b16 %v175
    %v966 = vunpack.c.l.b16 %v176
    %v967 = vunpack.c.h.b16 %v176
    %v968 = vunpack.c.l.b16 %v177
    %v969 = vunpack.c.h.b16 %v177
    %v970 = vunpack.c.l.b16 %v178
    %v971 = vunpack.c.l.b16 %v179
    %v972 = vunpack.c.h.b16 %v179
    %v973 = vunpack.c.l.b16 %v180
    %v974 = vunpack.c.h.b16 %v180
    %v975 = vunpack.c.l.b16 %v181
    %v976 = vunpack.c.h.b16 %v181
    %v977 = vunpack.c.l.b16 %v182
    %v978 = vunpack.c.h.b16 %v182
    %v979 = vunpack.c.l.b16 %v183
    %v980 = vunpack.c.l.b16 %v184
    %v981 = vunpack.c.h.b16 %v184
    %v982 = vunpack.c.l.b16 %v185
    %v983 = vunpack.c.h.b16 %v185
    %v984 = vunpack.c.l.b16 %v186
    %v985 = vunpack.c.h.b16 %v186
    %v986 = vunpack.c.l.b16 %v187
    %v987 = vunpack.c.h.b16 %v187
    %v988 = vunpack.c.l.b16 %v188
    %v989 = vunpack.c.l.b16 %v189
    %v990 = vunpack.c.h.b16 %v189
    %v991 = vunpack.c.l.b16 %v190
    %v992 = vunpack.c.h.b16 %v190
    %v993 = vunpack.c.l.b16 %v191
    %v994 = vunpack.c.h.b16 %v191
    %v995 = vunpack.c.l.b16 %v192
    %v996 = vunpack.c.h.b16 %v192
    %v997 = vunpack.c.l.b16 %v193
    %v998 = vunpack.c.l.b16 %v194
    %v999 = vunpack.c.h.b16 %v194
    %v1000 = vunpack.c.l.b16 %v195
    %v1001 = vunpack.c.h.b16 %v195
    %v1002 = vunpack.c.l.b16 %v196
    %v1003 = vunpack.c.h.b16 %v196
    %v1004 = vunpack.c.l.b16 %v197
    %v1005 = vunpack.c.h.b16 %v197
    %v1006 = vunpack.c.l.b16 %v198
    %v1007 = vunpack.c.l.b16 %v199
    %v1008 = vunpack.c.h.b16 %v199
    %v1009 = vunpack.c.l.b16 %v200
    %v1010 = vunpack.c.h.b16 %v200
    %v1011 = vunpack.c.l.b16 %v201
    %v1012 = vunpack.c.h.b16 %v201
    %v1013 = vunpack.c.l.b16 %v202
    %v1014 = vunpack.c.h.b16 %v202
    %v1015 = vunpack.c.l.b16 %v203
    %v1016 = vunpack.c.l.b16 %v204
    %v1017 = vunpack.c.h.b16 %v204
    %v1018 = vunpack.c.l.b16 %v205
    %v1019 = vunpack.c.h.b16 %v205
    %v1020 = vunpack.c.l.b16 %v206
    %v1021 = vunpack.c.h.b16 %v206
    %v1022 = vunpack.c.l.b16 %v207
    %v1023 = vunpack.c.h.b16 %v207
    %v1024 = vunpack.c.l.b16 %v208
    %v1025 = vunpack.c.l.b16 %v209
    %v1026 = vunpack.c.h.b16 %v209
    %v1027 = vunpack.c.l.b16 %v210
    %v1028 = vunpack.c.h.b16 %v210
    %v1029 = vunpack.c.l.b16 %v211
    %v1030 = vunpack.c.h.b16 %v211
    %v1031 = vunpack.c.l.b16 %v212
    %v1032 = vunpack.c.h.b16 %v212
    %v1033 = vunpack.c.l.b16 %v213
    %v1034 = vunpack.c.l.b16 %v214
    %v1035 = vunpack.c.h.b16 %v214
    %v1036 = vunpack.c.l.b16 %v215
    %v1037 = vunpack.c.h.b16 %v215
    %v1038 = vunpack.c.l.b16 %v216
    %v1039 = vunpack.c.h.b16 %v216
    %v1040 = vunpack.c.l.b16 %v217
    %v1041 = vunpack.c.h.b16 %v217
    %v1042 = vunpack.c.l.b16 %v218
    %v1043 = vunpack.c.l.b16 %v219
    %v1044 = vunpack.c.h.b16 %v219
    %v1045 = vunpack.c.l.b16 %v220
    %v1046 = vunpack.c.h.b16 %v220
    %v1047 = vunpack.c.l.b16 %v221
    %v1048 = vunpack.c.h.b16 %v221
    %v1049 = vunpack.c.l.b16 %v222
    %v1050 = vunpack.c.h.b16 %v222
    %v1051 = vunpack.c.l.b16 %v223
    %v1052 = vunpack.c.l.b16 %v224
    %v1053 = vunpack.c.h.b16 %v224
    %v1054 = vunpack.c.l.b16 %v225
    %v1055 = vunpack.c.h.b16 %v225
    %v1056 = vunpack.c.l.b16 %v226
    %v1057 = vunpack.c.h.b16 %v226
    %v1058 = vunpack.c.l.b16 %v227
    %v1059 = vunpack.c.h.b16 %v227
    %v1060 = vunpack.c.l.b16 %v228
    %v1061 = vunpack.c.l.b16 %v229
    %v1062 = vunpack.c.h.b16 %v229
    %v1063 = vunpack.c.l.b16 %v230
    %v1064 = vunpack.c.h.b16 %v230
    %v1065 = vunpack.c.l.b16 %v231
    %v1066 = vunpack.c.h.b16 %v231
    %v1067 = vunpack.c.l.b16 %v232
    %v1068 = vunpack.c.h.b16 %v232
    %v1069 = vunpack.c.l.b16 %v233
    %v1070 = vunpack.c.l.b16 %v234
    %v1071 = vunpack.c.h.b16 %v234
    %v1072 = vunpack.c.l.b16 %v235
    %v1073 = vunpack.c.h.b16 %v235
    %v1074 = vunpack.c.l.b16 %v236
    %v1075 = vunpack.c.h.b16 %v236
    %v1076 = vunpack.c.l.b16 %v237
    %v1077 = vunpack.c.h.b16 %v237
    %v1078 = vunpack.c.l.b16 %v238
    %v1079 = vunpack.c.l.b16 %v239
    %v1080 = vunpack.c.h.b16 %v239
    %v1081 = vunpack.c.l.b16 %v240
    %v1082 = vunpack.c.h.b16 %v240
    %v1083 = vunpack.c.l.b16 %v241
    %v1084 = vunpack.c.h.b16 %v241
    %v1085 = vunpack.c.l.b16 %v242
    %v1086 = vunpack.c.h.b16 %v242
    %v1087 = vunpack.c.l.b16 %v243
    %v1088 = vunpack.c.l.b16 %v244
    %v1089 = vunpack.c.h.b16 %v244
    %v1090 = vunpack.c.l.b16 %v245
    %v1091 = vunpack.c.h.b16 %v245
    %v1092 = vunpack.c.l.b16 %v246
    %v1093 = vunpack.c.h.b16 %v246
    %v1094 = vunpack.c.l.b16 %v247
    %v1095 = vunpack.c.h.b16 %v247
    %v1096 = vunpack.c.l.b16 %v248
    %v1097 = vunpack.c.l.b16 %v249
    %v1098 = vunpack.c.h.b16 %v249
    %v1099 = vunpack.c.l.b16 %v250
    %v1100 = vunpack.c.h.b16 %v250
    %v1101 = vunpack.c.l.b16 %v251
    %v1102 = vunpack.c.h.b16 %v251
    %v1103 = vunpack.c.l.b16 %v252
    %v1104 = vunpack.c.h.b16 %v252
    %v1105 = vunpack.c.l.b16 %v253
    %v1106 = vunpack.c.l.b16 %v254
    %v1107 = vunpack.c.h.b16 %v254
    %v1108 = vunpack.c.l.b16 %v255
    %v1109 = vunpack.c.h.b16 %v255
    %v1110 = vunpack.c.l.b16 %v256
    %v1111 = vunpack.c.h.b16 %v256
    %v1112 = vunpack.c.l.b16 %v257
    %v1113 = vunpack.c.h.b16 %v257
    %v1114 = vunpack.c.l.b16 %v258
    %v1115 = vunpack.c.l.b16 %v259
    %v1116 = vunpack.c.h.b16 %v259
    %v1117 = vunpack.c.l.b16 %v260
    %v1118 = vunpack.c.h.b16 %v260
    %v1119 = vunpack.c.l.b16 %v261
    %v1120 = vunpack.c.h.b16 %v261
    %v1121 = vunpack.c.l.b16 %v262
    %v1122 = vunpack.c.h.b16 %v262
    %v1123 = vunpack.c.l.b16 %v263
    %v1124 = vunpack.c.l.b16 %v264
    %v1125 = vunpack.c.h.b16 %v264
    %v1126 = vunpack.c.l.b16 %v265
    %v1127 = vunpack.c.h.b16 %v265
    %v1128 = vunpack.c.l.b16 %v266
    %v1129 = vunpack.c.h.b16 %v266
    %v1130 = vunpack.c.l.b16 %v267
    %v1131 = vunpack.c.h.b16 %v267
    %v1132 = vunpack.c.l.b16 %v268
    %v1133 = vunpack.c.l.b16 %v269
    %v1134 = vunpack.c.h.b16 %v269
    %v1135 = vunpack.c.l.b16 %v270
    %v1136 = vunpack.c.h.b16 %v270
    %v1137 = vunpack.c.l.b16 %v271
    %v1138 = vunpack.c.h.b16 %v271
    %v1139 = vunpack.c.l.b16 %v272
    %v1140 = vunpack.c.h.b16 %v272
    %v1141 = vunpack.c.l.b16 %v273
    %v1142 = vunpack.c.l.b16 %v274
    %v1143 = vunpack.c.h.b16 %v274
    %v1144 = vunpack.c.l.b16 %v275
    %v1145 = vunpack.c.h.b16 %v275
    %v1146 = vunpack.c.l.b16 %v276
    %v1147 = vunpack.c.h.b16 %v276
    %v1148 = vunpack.c.l.b16 %v277
    %v1149 = vunpack.c.h.b16 %v277
    %v1150 = vunpack.c.l.b16 %v278
    %v1151 = vunpack.c.l.b16 %v279
    %v1152 = vunpack.c.h.b16 %v279
    %v1153 = vunpack.c.l.b16 %v280
    %v1154 = vunpack.c.h.b16 %v280
    %v1155 = vunpack.c.l.b16 %v281
    %v1156 = vunpack.c.h.b16 %v281
    %v1157 = vunpack.c.l.b16 %v282
    %v1158 = vunpack.c.h.b16 %v282
    %v1159 = vunpack.c.l.b16 %v283
    %v1160 = vunpack.c.l.b16 %v284
    %v1161 = vunpack.c.h.b16 %v284
    %v1162 = vunpack.c.l.b16 %v285
    %v1163 = vunpack.c.h.b16 %v285
    %v1164 = vunpack.c.l.b16 %v286
    %v1165 = vunpack.c.h.b16 %v286
    %v1166 = vunpack.c.l.b16 %v287
    %v1167 = vunpack.c.h.b16 %v287
    %v1168 = vunpack.c.l.b16 %v288
    %v1169 = vunpack.c.l.b16 %v289
    %v1170 = vunpack.c.h.b16 %v289
    %v1171 = vunpack.c.l.b16 %v290
    %v1172 = vunpack.c.h.b16 %v290
    %v1173 = vunpack.c.l.b16 %v291
    %v1174 = vunpack.c.h.b16 %v291
    %v1175 = vunpack.c.l.b16 %v292
    %v1176 = vunpack.c.h.b16 %v292
    %v1177 = vunpack.c.l.b16 %v293
    %v1178 = vunpack.c.l.b16 %v294
    %v1179 = vunpack.c.h.b16 %v294
    %v1180 = vunpack.c.l.b16 %v295
    %v1181 = vunpack.c.h.b16 %v295
    %v1182 = vunpack.c.l.b16 %v296
    %v1183 = vunpack.c.h.b16 %v296
    %v1184 = vunpack.c.l.b16 %v297
    %v1185 = vunpack.c.h.b16 %v297
    %v1186 = vunpack.c.l.b16 %v298
    %v1187 = vunpack.c.l.b16 %v299
    %v1188 = vunpack.c.h.b16 %v299
    %v1189 = vunpack.c.l.b16 %v300
    %v1190 = vunpack.c.h.b16 %v300
    %v1191 = vunpack.c.l.b16 %v301
    %v1192 = vunpack.c.h.b16 %v301
    %v1193 = vunpack.c.l.b16 %v302
    %v1194 = vunpack.c.h.b16 %v302
    %v1195 = vunpack.c.l.b16 %v303
    %v1196 = vunpack.c.l.b16 %v304
    %v1197 = vunpack.c.h.b16 %v304
    %v1198 = vunpack.c.l.b16 %v305
    %v1199 = vunpack.c.h.b16 %v305
    %v1200 = vunpack.c.l.b16 %v306
    %v1201 = vunpack.c.h.b16 %v306
    %v1202 = vunpack.c.l.b16 %v307
    %v1203 = vunpack.c.h.b16 %v307
    %v1204 = vunpack.c.l.b16 %v308
    %v1205 = vunpack.c.l.b16 %v309
    %v1206 = vunpack.c.h.b16 %v309
    %v1207 = vunpack.c.l.b16 %v310
    %v1208 = vunpack.c.h.b16 %v310
    %v1209 = vunpack.c.l.b16 %v311
    %v1210 = vunpack.c.h.b16 %v311
    %v1211 = vunpack.c.l.b16 %v312
    %v1212 = vunpack.c.h.b16 %v312
    %v1213 = vunpack.c.l.b16 %v313
    %v1214 = vunpack.c.l.b16 %v314
    %v1215 = vunpack.c.h.b16 %v314
    %v1216 = vunpack.c.l.b16 %v315
    %v1217 = vunpack.c.h.b16 %v315
    %v1218 = vunpack.c.l.b16 %v316
    %v1219 = vunpack.c.h.b16 %v316
    %v1220 = vunpack.c.l.b16 %v317
    %v1221 = vunpack.c.h.b16 %v317
    %v1222 = vunpack.c.l.b16 %v318
    %v1223 = vunpack.c.l.b16 %v319
    %v1224 = vunpack.c.h.b16 %v319
    %v1225 = vunpack.c.l.b16 %v320
    %v1226 = vunpack.c.h.b16 %v320
    %v1227 = vunpack.c.l.b16 %v321
    %v1228 = vunpack.c.h.b16 %v321
    %v1229 = vunpack.c.l.b16 %v322
    %v1230 = vunpack.c.h.b16 %v322
    %v1231 = vunpack.c.l.b16 %v323
    %v1232 = vunpack.c.l.b16 %v324
    %v1233 = vunpack.c.h.b16 %v324
    %v1234 = vunpack.c.l.b16 %v325
    %v1235 = vunpack.c.h.b16 %v325
    %v1236 = vunpack.c.l.b16 %v326
    %v1237 = vunpack.c.h.b16 %v326
    %v1238 = vunpack.c.l.b16 %v327
    %v1239 = vunpack.c.h.b16 %v327
    %v1240 = vunpack.c.l.b16 %v328
    %v1241 = vunpack.c.l.b16 %v329
    %v1242 = vunpack.c.h.b16 %v329
    %v1243 = vunpack.c.l.b16 %v330
    %v1244 = vunpack.c.h.b16 %v330
    %v1245 = vunpack.c.l.b16 %v331
    %v1246 = vunpack.c.h.b16 %v331
    %v1247 = vunpack.c.l.b16 %v332
    %v1248 = vunpack.c.h.b16 %v332
    %v1249 = vunpack.c.l.b16 %v333
    %v1250 = vunpack.c.l.b16 %v334
    %v1251 = vunpack.c.h.b16 %v334
    %v1252 = vunpack.c.l.b16 %v335
    %v1253 = vunpack.c.h.b16 %v335
    %v1254 = vunpack.c.l.b16 %v336
    %v1255 = vunpack.c.h.b16 %v336
    %v1256 = vunpack.c.l.b16 %v337
    %v1257 = vunpack.c.h.b16 %v337
    %v1258 = vunpack.c.l.b16 %v338
    %v1259 = vunpack.c.l.b16 %v339
    %v1260 = vunpack.c.h.b16 %v339
    %v1261 = vunpack.c.l.b16 %v340
    %v1262 = vunpack.c.h.b16 %v340
    %v1263 = vunpack.c.l.b16 %v341
    %v1264 = vunpack.c.h.b16 %v341
    %v1265 = vunpack.c.l.b16 %v342
    %v1266 = vunpack.c.h.b16 %v342
    %v1267 = vunpack.c.l.b16 %v343
    %v1268 = vunpack.c.l.b16 %v344
    %v1269 = vunpack.c.h.b16 %v344
    %v1270 = vunpack.c.l.b16 %v345
    %v1271 = vunpack.c.h.b16 %v345
    %v1272 = vunpack.c.l.b16 %v346
    %v1273 = vunpack.c.h.b16 %v346
    %v1274 = vunpack.c.l.b16 %v347
    %v1275 = vunpack.c.h.b16 %v347
    %v1276 = vunpack.c.l.b16 %v348
    %v1277 = vpack.c.b16 %v854, %v845
    %v1278 = vpack.c.b16 %v855, %v846
    %v1279 = vpack.c.b16 %v856, %v847
    %v1280 = vpack.c.b16 %v857, %v848
    %v1281 = vpack.c.b16 %v858, %v849
    %v1282 = vpack.c.b16 %v859, %v850
    %v1283 = vpack.c.b16 %v860, %v851
    %v1284 = vpack.c.b16 %v861, %v852
    %v1285 = vpack.c.b16 %v862, %v853
    %v1286 = vpack.c.b16 %v872, %v863
    %v1287 = vpack.c.b16 %v873, %v864
    %v1288 = vpack.c.b16 %v874, %v865
    %v1289 = vpack.c.b16 %v875, %v866
    %v1290 = vpack.c.b16 %v876, %v867
    %v1291 = vpack.c.b16 %v877, %v868
    %v1292 = vpack.c.b16 %v878, %v869
    %v1293 = vpack.c.b16 %v879, %v870
    %v1294 = vpack.c.b16 %v880, %v871
    %v1295 = vpack.c.b16 %v890, %v881
    %v1296 = vpack.c.b16 %v891, %v882
    %v1297 = vpack.c.b16 %v892, %v883
    %v1298 = vpack.c.b16 %v893, %v884
    %v1299 = vpack.c.b16 %v894, %v885
    %v1300 = vpack.c.b16 %v895, %v886
    %v1301 = vpack.c.b16 %v896, %v887
    %v1302 = vpack.c.b16 %v897, %v888
    %v1303 = vpack.c.b16 %v898, %v889
    %v1304 = vpack.c.b16 %v908, %v899
    %v1305 = vpack.c.b16 %v909, %v900
    %v1306 = vpack.c.b16 %v910, %v901
    %v1307 = vpack.c.b16 %v911, %v902
    %v1308 = vpack.c.b16 %v912, %v903
    %v1309 = vpack.c.b16 %v913, %v904
    %v1310 = vpack.c.b16 %v914, %v905
    %v1311 = vpack.c.b16 %v915, %v906
    %v1312 = vpack.c.b16 %v916, %v907
    %v1313 = vpack.c.b16 %v926, %v917
    %v1314 = vpack.c.b16 %v927, %v918
    %v1315 = vpack.c.b16 %v928, %v919
    %v1316 = vpack.c.b16 %v929, %v920
    %v1317 = vpack.c.b16 %v930, %v921
    %v1318 = vpack.c.b16 %v931, %v922
    %v1319 = vpack.c.b16 %v932, %v923
    %v1320 = vpack.c.b16 %v933, %v924
    %v1321 = vpack.c.b16 %v934, %v925
    %v1322 = vpack.c.b16 %v944, %v935
    %v1323 = vpack.c.b16 %v945, %v936
    %v1324 = vpack.c.b16 %v946, %v937
    %v1325 = vpack.c.b16 %v947, %v938
    %v1326 = vpack.c.b16 %v948, %v939
    %v1327 = vpack.c.b16 %v949, %v940
    %v1328 = vpack.c.b16 %v950, %v941
    %v1329 = vpack.c.b16 %v951, %v942
    %v1330 = vpack.c.b16 %v952, %v943
    %v1331 = vpack.c.b16 %v962, %v953
    %v1332 = vpack.c.b16 %v963, %v954
    %v1333 = vpack.c.b16 %v964, %v955
    %v1334 = vpack.c.b16 %v965, %v956
    %v1335 = vpack.c.b16 %v966, %v957
    %v1336 = vpack.c.b16 %v967, %v958
    %v1337 = vpack.c.b16 %v968, %v959
    %v1338 = vpack.c.b16 %v969, %v960
    %v1339 = vpack.c.b16 %v970, %v961
    %v1340 = vpack.c.b16 %v980, %v971
    %v1341 = vpack.c.b16 %v981, %v972
    %v1342 = vpack.c.b16 %v982, %v973
    %v1343 = vpack.c.b16 %v983, %v974
    %v1344 = vpack.c.b16 %v984, %v975
    %v1345 = vpack.c.b16 %v985, %v976
    %v1346 = vpack.c.b16 %v986, %v977
    %v1347 = vpack.c.b16 %v987, %v978
    %v1348 = vpack.c.b16 %v988, %v979
    %v1349 = vpack.c.b16 %v998, %v989
    %v1350 = vpack.c.b16 %v999, %v990
    %v1351 = vpack.c.b16 %v1000, %v991
    %v1352 = vpack.c.b16 %v1001, %v992
    %v1353 = vpack.c.b16 %v1002, %v993
    %v1354 = vpack.c.b16 %v1003, %v994
    %v1355 = vpack.c.b16 %v1004, %v995
    %v1356 = vpack.c.b16 %v1005, %v996
    %v1357 = vpack.c.b16 %v1006, %v997
    %v1358 = vpack.c.b16 %v1016, %v1007
    %v1359 = vpack.c.b16 %v1017, %v1008
    %v1360 = vpack.c.b16 %v1018, %v1009
    %v1361 = vpack.c.b16 %v1019, %v1010
    %v1362 = vpack.c.b16 %v1020, %v1011
    %v1363 = vpack.c.b16 %v1021, %v1012
    %v1364 = vpack.c.b16 %v1022, %v1013
    %v1365 = vpack.c.b16 %v1023, %v1014
    %v1366 = vpack.c.b16 %v1024, %v1015
    %v1367 = vpack.c.b16 %v1034, %v1025
    %v1368 = vpack.c.b16 %v1035, %v1026
    %v1369 = vpack.c.b16 %v1036, %v1027
    %v1370 = vpack.c.b16 %v1037, %v1028
    %v1371 = vpack.c.b16 %v1038, %v1029
    %v1372 = vpack.c.b16 %v1039, %v1030
    %v1373 = vpack.c.b16 %v1040, %v1031
    %v1374 = vpack.c.b16 %v1041, %v1032
    %v1375 = vpack.c.b16 %v1042, %v1033
    %v1376 = vpack.c.b16 %v1052, %v1043
    %v1377 = vpack.c.b16 %v1053, %v1044
    %v1378 = vpack.c.b16 %v1054, %v1045
    %v1379 = vpack.c.b16 %v1055, %v1046
    %v1380 = vpack.c.b16 %v1056, %v1047
    %v1381 = vpack.c.b16 %v1057, %v1048
    %v1382 = vpack.c.b16 %v1058, %v1049
    %v1383 = vpack.c.b16 %v1059, %v1050
    %v1384 = vpack.c.b16 %v1060, %v1051
    %v1385 = vpack.c.b16 %v1070, %v1061
    %v1386 = vpack.c.b16 %v1071, %v1062
    %v1387 = vpack.c.b16 %v1072, %v1063
    %v1388 = vpack.c.b16 %v1073, %v1064
    %v1389 = vpack.c.b16 %v1074, %v1065
    %v1390 = vpack.c.b16 %v1075, %v1066
    %v1391 = vpack.c.b16 %v1076, %v1067
    %v1392 = vpack.c.b16 %v1077, %v1068
    %v1393 = vpack.c.b16 %v1078, %v1069
    %v1394 = vpack.c.b16 %v1088, %v1079
    %v1395 = vpack.c.b16 %v1089, %v1080
    %v1396 = vpack.c.b16 %v1090, %v1081
    %v1397 = vpack.c.b16 %v1091, %v1082
    %v1398 = vpack.c.b16 %v1092, %v1083
    %v1399 = vpack.c.b16 %v1093, %v1084
    %v1400 = vpack.c.b16 %v1094, %v1085
    %v1401 = vpack.c.b16 %v1095, %v1086
    %v1402 = vpack.c.b16 %v1096, %v1087
    %v1403 = vpack.c.b16 %v1106, %v1097
    %v1404 = vpack.c.b16 %v1107, %v1098
    %v1405 = vpack.c.b16 %v1108, %v1099
    %v1406 = vpack.c.b16 %v1109, %v1100
    %v1407 = vpack.c.b16 %v1110, %v1101
    %v1408 = vpack.c.b16 %v1111, %v1102
    %v1409 = vpack.c.b16 %v1112, %v1103
    %v1410 = vpack.c.b16 %v1113, %v1104
    %v1411 = vpack.c.b16 %v1114, %v1105
    %v1412 = vpack.c.b16 %v1124, %v1115
    %v1413 = vpack.c.b16 %v1125, %v1116
    %v1414 = vpack.c.b16 %v1126, %v1117
    %v1415 = vpack.c.b16 %v1127, %v1118
    %v1416 = vpack.c.b16 %v1128, %v1119
    %v1417 = vpack.c.b16 %v1129, %v1120
    %v1418 = vpack.c.b16 %v1130, %v1121
    %v1419 = vpack.c.b16 %v1131, %v1122
    %v1420 = vpack.c.b16 %v1132, %v1123
    %v1421 = vpack.c.b16 %v1142, %v1133
    %v1422 = vpack.c.b16 %v1143, %v1134
    %v1423 = vpack.c.b16 %v1144, %v1135
    %v1424 = vpack.c.b16 %v1145, %v1136
    %v1425 = vpack.c.b16 %v1146, %v1137
    %v1426 = vpack.c.b16 %v1147, %v1138
    %v1427 = vpack.c.b16 %v1148, %v1139
    %v1428 = vpack.c.b16 %v1149, %v1140
    %v1429 = vpack.c.b16 %v1150, %v1141
    %v1430 = vpack.c.b16 %v1160, %v1151
    %v1431 = vpack.c.b16 %v1161, %v1152
    %v1432 = vpack.c.b16 %v1162, %v1153
    %v1433 = vpack.c.b16 %v1163, %v1154
    %v1434 = vpack.c.b16 %v1164, %v1155
    %v1435 = vpack.c.b16 %v1165, %v1156
    %v1436 = vpack.c.b16 %v1166, %v1157
    %v1437 = vpack.c.b16 %v1167, %v1158
    %v1438 = vpack.c.b16 %v1168, %v1159
    %v1439 = vpack.c.b16 %v1178, %v1169
    %v1440 = vpack.c.b16 %v1179, %v1170
    %v1441 = vpack.c.b16 %v1180, %v1171
    %v1442 = vpack.c.b16 %v1181, %v1172
    %v1443 = vpack.c.b16 %v1182, %v1173
    %v1444 = vpack.c.b16 %v1183, %v1174
    %v1445 = vpack.c.b16 %v1184, %v1175
    %v1446 = vpack.c.b16 %v1185, %v1176
    %v1447 = vpack.c.b16 %v1186, %v1177
    %v1448 = vpack.c.b16 %v1196, %v1187
    %v1449 = vpack.c.b16 %v1197, %v1188
    %v1450 = vpack.c.b16 %v1198, %v1189
    %v1451 = vpack.c.b16 %v1199, %v1190
    %v1452 = vpack.c.b16 %v1200, %v1191
    %v1453 = vpack.c.b16 %v1201, %v1192
    %v1454 = vpack.c.b16 %v1202, %v1193
    %v1455 = vpack.c.b16 %v1203, %v1194
    %v1456 = vpack.c.b16 %v1204, %v1195
    %v1457 = vpack.c.b16 %v1214, %v1205
    %v1458 = vpack.c.b16 %v1215, %v1206
    %v1459 = vpack.c.b16 %v1216, %v1207
    %v1460 = vpack.c.b16 %v1217, %v1208
    %v1461 = vpack.c.b16 %v1218, %v1209
    %v1462 = vpack.c.b16 %v1219, %v1210
    %v1463 = vpack.c.b16 %v1220, %v1211
    %v1464 = vpack.c.b16 %v1221, %v1212
    %v1465 = vpack.c.b16 %v1222, %v1213
    %v1466 = vpack.c.b16 %v1232, %v1223
    %v1467 = vpack.c.b16 %v1233, %v1224
    %v1468 = vpack.c.b16 %v1234, %v1225
    %v1469 = vpack.c.b16 %v1235, %v1226
    %v1470 = vpack.c.b16 %v1236, %v1227
    %v1471 = vpack.c.b16 %v1237, %v1228
    %v1472 = vpack.c.b16 %v1238, %v1229
    %v1473 = vpack.c.b16 %v1239, %v1230
    %v1474 = vpack.c.b16 %v1240, %v1231
    %v1475 = vpack.c.b16 %v1250, %v1241
    %v1476 = vpack.c.b16 %v1251, %v1242
    %v1477 = vpack.c.b16 %v1252, %v1243
    %v1478 = vpack.c.b16 %v1253, %v1244
    %v1479 = vpack.c.b16 %v1254, %v1245
    %v1480 = vpack.c.b16 %v1255, %v1246
    %v1481 = vpack.c.b16 %v1256, %v1247
    %v1482 = vpack.c.b16 %v1257, %v1248
    %v1483 = vpack.c.b16 %v1258, %v1249
    %v1484 = vpack.c.b16 %v1268, %v1259
    %v1485 = vpack.c.b16 %v1269, %v1260
    %v1486 = vpack.c.b16 %v1270, %v1261
    %v1487 = vpack.c.b16 %v1271, %v1262
    %v1488 = vpack.c.b16 %v1272, %v1263
    %v1489 = vpack.c.b16 %v1273, %v1264
    %v1490 = vpack.c.b16 %v1274, %v1265
    %v1491 = vpack.c.b16 %v1275, %v1266
    %v1492 = vpack.c.b16 %v1276, %v1267
    %1709 = vmatprep.subr.bf16.mxu0 %v1278
    %1710 = vmatpush1.bf16.msra.mxu0 %v1277
    %1711 = vmatprep.subr.bf16.mxu0 %v1287
    %1712 = vmatpush1.bf16.msra.mxu0 %v1286
    %1713 = vmatprep.subr.bf16.mxu0 %v1296
    %1714 = vmatpush1.bf16.msra.mxu0 %v1295
    %1715 = vmatprep.subr.bf16.mxu0 %v1305
    %1716 = vmatpush1.bf16.msra.mxu0 %v1304
    %1717 = vmatprep.subr.bf16.mxu0 %v1314
    %1718 = vmatpush1.bf16.msra.mxu0 %v1313
    %1719 = vmatprep.subr.bf16.mxu0 %v1323
    %1720 = vmatpush1.bf16.msra.mxu0 %v1322
    %1721 = vmatprep.subr.bf16.mxu0 %v1332
    %1722 = vmatpush1.bf16.msra.mxu0 %v1331
    %1723 = vmatprep.subr.bf16.mxu0 %v1341
    %1724 = vmatpush1.bf16.msra.mxu0 %v1340
    %1725 = vmatprep.subr.bf16.mxu0 %v1350
    %1726 = vmatpush1.bf16.msra.mxu0 %v1349
    %1727 = vmatprep.subr.bf16.mxu0 %v1359
    %1728 = vmatpush1.bf16.msra.mxu0 %v1358
    %1729 = vmatprep.subr.bf16.mxu0 %v1368
    %1730 = vmatpush1.bf16.msra.mxu0 %v1367
    %1731 = vmatprep.subr.bf16.mxu0 %v1377
    %1732 = vmatpush1.bf16.msra.mxu0 %v1376
    %1733 = vmatprep.subr.bf16.mxu0 %v1386
    %1734 = vmatpush1.bf16.msra.mxu0 %v1385
    %1735 = vmatprep.subr.bf16.mxu0 %v1395
    %1736 = vmatpush1.bf16.msra.mxu0 %v1394
    %1737 = vmatprep.subr.bf16.mxu0 %v1404
    %1738 = vmatpush1.bf16.msra.mxu0 %v1403
    %1739 = vmatprep.subr.bf16.mxu0 %v1413
    %1740 = vmatpush1.bf16.msra.mxu0 %v1412
    %1741 = vmatprep.mubr.bf16.mxu0 %v510
    %1742 = vmatmul.mubr.bf16.gmra.mrb[0].mxu0 %v509
    %v1743 = vpop.f32.mrb[0].mxu0
    %v1744 = vadd.f32 0.0, %v1743
    %v1745 = vpop.f32.mrb[0].mxu0
    %v1746 = vadd.f32 0.0, %v1745
    %v1747 = vpop.f32.mrb[0].mxu0
    %v1748 = vadd.f32 0.0, %v1747
    %v1749 = vpop.f32.mrb[0].mxu0
    %v1750 = vadd.f32 0.0, %v1749
    %1751 = vmatprep.mubr.bf16.mxu0 %v513
    %1752 = vmatmul.mubr.bf16.gmra.mrb[0].mxu0 %v512
    %v1753 = vpop.f32.mrb[0].mxu0
    %v1754 = vadd.f32 0.0, %v1753
    %v1755 = vpop.f32.mrb[0].mxu0
    %v1756 = vadd.f32 0.0, %v1755
    %v1757 = vpop.f32.mrb[0].mxu0
    %v1758 = vadd.f32 0.0, %v1757
    %v1759 = vpop.f32.mrb[0].mxu0
    %v1760 = vadd.f32 0.0, %v1759
    %1761 = vmatprep.mubr.bf16.mxu0 %v516
    %1762 = vmatmul.mubr.bf16.gmra.mrb[0].mxu0 %v515
    %v1763 = vpop.f32.mrb[0].mxu0
    %v1764 = vadd.f32 0.0, %v1763
    %v1765 = vpop.f32.mrb[0].mxu0
    %v1766 = vadd.f32 0.0, %v1765
    %v1767 = vpop.f32.mrb[0].mxu0
    %v1768 = vadd.f32 0.0, %v1767
    %v1769 = vpop.f32.mrb[0].mxu0
    %v1770 = vadd.f32 0.0, %v1769
    %1771 = vmatprep.mubr.bf16.mxu0 %v519
    %1772 = vmatmul.mubr.bf16.gmra.mrb[0].mxu0 %v518
    %v1773 = vpop.f32.mrb[0].mxu0
    %v1774 = vadd.f32 0.0, %v1773
    %v1775 = vpop.f32.mrb[0].mxu0
    %v1776 = vadd.f32 0.0, %v1775
    %v1777 = vpop.f32.mrb[0].mxu0
    %v1778 = vadd.f32 0.0, %v1777
    %v1779 = vpop.f32.mrb[0].mxu0
    %v1780 = vadd.f32 0.0, %v1779
    %1781 = vmatprep.mubr.bf16.mxu0 %v522
    %1782 = vmatmul.mubr.bf16.gmra.mrb[0].mxu0 %v521
    %v1783 = vpop.f32.mrb[0].mxu0
    %v1784 = vadd.f32 0.0, %v1783
    %v1785 = vpop.f32.mrb[0].mxu0
    %v1786 = vadd.f32 0.0, %v1785
    %v1787 = vpop.f32.mrb[0].mxu0
    %v1788 = vadd.f32 0.0, %v1787
    %v1789 = vpop.f32.mrb[0].mxu0
    %v1790 = vadd.f32 0.0, %v1789
    %1791 = vmatprep.mubr.bf16.mxu0 %v525
    %1792 = vmatmul.mubr.bf16.gmra.mrb[0].mxu0 %v524
    %v1793 = vpop.f32.mrb[0].mxu0
    %v1794 = vadd.f32 0.0, %v1793
    %v1795 = vpop.f32.mrb[0].mxu0
    %v1796 = vadd.f32 0.0, %v1795
    %v1797 = vpop.f32.mrb[0].mxu0
    %v1798 = vadd.f32 0.0, %v1797
    %v1799 = vpop.f32.mrb[0].mxu0
    %v1800 = vadd.f32 0.0, %v1799
    %1801 = vmatprep.mubr.bf16.mxu0 %v528
    %1802 = vmatmul.mubr.bf16.gmra.mrb[0].mxu0 %v527
    %v1803 = vpop.f32.mrb[0].mxu0
    %v1804 = vadd.f32 0.0, %v1803
    %v1805 = vpop.f32.mrb[0].mxu0
    %v1806 = vadd.f32 0.0, %v1805
    %v1807 = vpop.f32.mrb[0].mxu0
    %v1808 = vadd.f32 0.0, %v1807
    %v1809 = vpop.f32.mrb[0].mxu0
    %v1810 = vadd.f32 0.0, %v1809
    %1811 = vmatprep.mubr.bf16.mxu0 %v531
    %1812 = vmatmul.mubr.bf16.gmra.mrb[0].mxu0 %v530
    %v1813 = vpop.f32.mrb[0].mxu0
    %v1814 = vadd.f32 0.0, %v1813
    %v1815 = vpop.f32.mrb[0].mxu0
    %v1816 = vadd.f32 0.0, %v1815
    %v1817 = vpop.f32.mrb[0].mxu0
    %v1818 = vadd.f32 0.0, %v1817
    %v1819 = vpop.f32.mrb[0].mxu0
    %v1820 = vadd.f32 0.0, %v1819
    %1821 = vmatprep.mubr.bf16.mxu0 %v534
    %1822 = vmatmul.mubr.bf16.gmra.mrb[0].mxu0 %v533
    %v1823 = vpop.f32.mrb[0].mxu0
    %v1824 = vadd.f32 0.0, %v1823
    %v1825 = vpop.f32.mrb[0].mxu0
    %v1826 = vadd.f32 0.0, %v1825
    %v1827 = vpop.f32.mrb[0].mxu0
    %v1828 = vadd.f32 0.0, %v1827
    %v1829 = vpop.f32.mrb[0].mxu0
    %v1830 = vadd.f32 0.0, %v1829
    %1831 = vmatprep.mubr.bf16.mxu0 %v537
    %1832 = vmatmul.mubr.bf16.gmra.mrb[0].mxu0 %v536
    %v1833 = vpop.f32.mrb[0].mxu0
    %v1834 = vadd.f32 0.0, %v1833
    %v1835 = vpop.f32.mrb[0].mxu0
    %v1836 = vadd.f32 0.0, %v1835
    %v1837 = vpop.f32.mrb[0].mxu0
    %v1838 = vadd.f32 0.0, %v1837
    %v1839 = vpop.f32.mrb[0].mxu0
    %v1840 = vadd.f32 0.0, %v1839
    %1841 = vmatprep.mubr.bf16.mxu0 %v540
    %1842 = vmatmul.mubr.bf16.gmra.mrb[0].mxu0 %v539
    %v1843 = vpop.f32.mrb[0].mxu0
    %v1844 = vadd.f32 0.0, %v1843
    %v1845 = vpop.f32.mrb[0].mxu0
    %v1846 = vadd.f32 0.0, %v1845
    %v1847 = vpop.f32.mrb[0].mxu0
    %v1848 = vadd.f32 0.0, %v1847
    %v1849 = vpop.f32.mrb[0].mxu0
    %v1850 = vadd.f32 0.0, %v1849
    %1851 = vmatprep.mubr.bf16.mxu0 %v543
    %1852 = vmatmul.mubr.bf16.gmra.mrb[0].mxu0 %v542
    %v1853 = vpop.f32.mrb[0].mxu0
    %v1854 = vadd.f32 0.0, %v1853
    %v1855 = vpop.f32.mrb[0].mxu0
    %v1856 = vadd.f32 0.0, %v1855
    %v1857 = vpop.f32.mrb[0].mxu0
    %v1858 = vadd.f32 0.0, %v1857
    %v1859 = vpop.f32.mrb[0].mxu0
    %v1860 = vadd.f32 0.0, %v1859
    %1861 = vmatprep.mubr.bf16.mxu0 %v546
    %1862 = vmatmul.mubr.bf16.gmra.mrb[0].mxu0 %v545
    %v1863 = vpop.f32.mrb[0].mxu0
    %v1864 = vadd.f32 0.0, %v1863
    %v1865 = vpop.f32.mrb[0].mxu0
    %v1866 = vadd.f32 0.0, %v1865
    %v1867 = vpop.f32.mrb[0].mxu0
    %v1868 = vadd.f32 0.0, %v1867
    %v1869 = vpop.f32.mrb[0].mxu0
    %v1870 = vadd.f32 0.0, %v1869
    %1871 = vmatprep.mubr.bf16.mxu0 %v549
    %1872 = vmatmul.mubr.bf16.gmra.mrb[0].mxu0 %v548
    %v1873 = vpop.f32.mrb[0].mxu0
    %v1874 = vadd.f32 0.0, %v1873
    %v1875 = vpop.f32.mrb[0].mxu0
    %v1876 = vadd.f32 0.0, %v1875
    %v1877 = vpop.f32.mrb[0].mxu0
    %v1878 = vadd.f32 0.0, %v1877
    %v1879 = vpop.f32.mrb[0].mxu0
    %v1880 = vadd.f32 0.0, %v1879
    %1881 = vmatprep.mubr.bf16.mxu0 %v552
    %1882 = vmatmul.mubr.bf16.gmra.mrb[0].mxu0 %v551
    %v1883 = vpop.f32.mrb[0].mxu0
    %v1884 = vadd.f32 0.0, %v1883
    %v1885 = vpop.f32.mrb[0].mxu0
    %v1886 = vadd.f32 0.0, %v1885
    %v1887 = vpop.f32.mrb[0].mxu0
    %v1888 = vadd.f32 0.0, %v1887
    %v1889 = vpop.f32.mrb[0].mxu0
    %v1890 = vadd.f32 0.0, %v1889
    %1891 = vmatprep.mubr.bf16.mxu0 %v555
    %1892 = vmatmul.mubr.bf16.gmra.mrb[0].mxu0 %v554
    %v1893 = vpop.f32.mrb[0].mxu0
    %v1894 = vadd.f32 0.0, %v1893
    %v1895 = vpop.f32.mrb[0].mxu0
    %v1896 = vadd.f32 0.0, %v1895
    %v1897 = vpop.f32.mrb[0].mxu0
    %v1898 = vadd.f32 0.0, %v1897
    %v1899 = vpop.f32.mrb[0].mxu0
    %v1900 = vadd.f32 0.0, %v1899
    %1901 = vdwg.mxu0
    %1902 = vmatprep.subr.bf16.mxu0 %v1422
    %1903 = vmatpush1.bf16.msra.mxu0 %v1421
    %1904 = vmatprep.subr.bf16.mxu0 %v1431
    %1905 = vmatpush1.bf16.msra.mxu0 %v1430
    %1906 = vmatprep.subr.bf16.mxu0 %v1440
    %1907 = vmatpush1.bf16.msra.mxu0 %v1439
    %1908 = vmatprep.subr.bf16.mxu0 %v1449
    %1909 = vmatpush1.bf16.msra.mxu0 %v1448
    %1910 = vmatprep.subr.bf16.mxu0 %v1458
    %1911 = vmatpush1.bf16.msra.mxu0 %v1457
    %1912 = vmatprep.subr.bf16.mxu0 %v1467
    %1913 = vmatpush1.bf16.msra.mxu0 %v1466
    %1914 = vmatprep.subr.bf16.mxu0 %v1476
    %1915 = vmatpush1.bf16.msra.mxu0 %v1475
    %1916 = vmatprep.subr.bf16.mxu0 %v1485
    %1917 = vmatpush1.bf16.msra.mxu0 %v1484
    %1918 = vmatprep.subr.bf16.mxu0 0
    %1919 = vmatpush1.bf16.msra.mxu0 0
    %1920 = vmatprep.subr.bf16.mxu0 0
    %1921 = vmatpush1.bf16.msra.mxu0 0
    %1922 = vmatprep.subr.bf16.mxu0 0
    %1923 = vmatpush1.bf16.msra.mxu0 0
    %1924 = vmatprep.subr.bf16.mxu0 0
    %1925 = vmatpush1.bf16.msra.mxu0 0
    %1926 = vmatprep.subr.bf16.mxu0 0
    %1927 = vmatpush1.bf16.msra.mxu0 0
    %1928 = vmatprep.subr.bf16.mxu0 0
    %1929 = vmatpush1.bf16.msra.mxu0 0
    %1930 = vmatprep.subr.bf16.mxu0 0
    %1931 = vmatpush1.bf16.msra.mxu0 0
    %1932 = vmatprep.subr.bf16.mxu0 0
    %1933 = vmatpush1.bf16.msra.mxu0 0
    %1934 = vmatprep.mubr.bf16.mxu0 0
    %1935 = vmatmul.mubr.bf16.gmra.mrb[0].mxu0 %v511
    %v1936 = vpop.f32.mrb[0].mxu0
    %v1937 = vadd.f32 %v1744, %v1936
    %v1938 = vpop.f32.mrb[0].mxu0
    %v1939 = vadd.f32 %v1746, %v1938
    %v1940 = vpop.f32.mrb[0].mxu0
    %v1941 = vadd.f32 %v1748, %v1940
    %v1942 = vpop.f32.mrb[0].mxu0
    %v1943 = vadd.f32 %v1750, %v1942
    %1944 = vmatprep.mubr.bf16.mxu0 0
    %1945 = vmatmul.mubr.bf16.gmra.mrb[0].mxu0 %v514
    %v1946 = vpop.f32.mrb[0].mxu0
    %v1947 = vadd.f32 %v1754, %v1946
    %v1948 = vpop.f32.mrb[0].mxu0
    %v1949 = vadd.f32 %v1756, %v1948
    %v1950 = vpop.f32.mrb[0].mxu0
    %v1951 = vadd.f32 %v1758, %v1950
    %v1952 = vpop.f32.mrb[0].mxu0
    %v1953 = vadd.f32 %v1760, %v1952
    %1954 = vmatprep.mubr.bf16.mxu0 0
    %1955 = vmatmul.mubr.bf16.gmra.mrb[0].mxu0 %v517
    %v1956 = vpop.f32.mrb[0].mxu0
    %v1957 = vadd.f32 %v1764, %v1956
    %v1958 = vpop.f32.mrb[0].mxu0
    %v1959 = vadd.f32 %v1766, %v1958
    %v1960 = vpop.f32.mrb[0].mxu0
    %v1961 = vadd.f32 %v1768, %v1960
    %v1962 = vpop.f32.mrb[0].mxu0
    %v1963 = vadd.f32 %v1770, %v1962
    %1964 = vmatprep.mubr.bf16.mxu0 0
    %1965 = vmatmul.mubr.bf16.gmra.mrb[0].mxu0 %v520
    %v1966 = vpop.f32.mrb[0].mxu0
    %v1967 = vadd.f32 %v1774, %v1966
    %v1968 = vpop.f32.mrb[0].mxu0
    %v1969 = vadd.f32 %v1776, %v1968
    %v1970 = vpop.f32.mrb[0].mxu0
    %v1971 = vadd.f32 %v1778, %v1970
    %v1972 = vpop.f32.mrb[0].mxu0
    %v1973 = vadd.f32 %v1780, %v1972
    %1974 = vmatprep.mubr.bf16.mxu0 0
    %1975 = vmatmul.mubr.bf16.gmra.mrb[0].mxu0 %v523
    %v1976 = vpop.f32.mrb[0].mxu0
    %v1977 = vadd.f32 %v1784, %v1976
    %v1978 = vpop.f32.mrb[0].mxu0
    %v1979 = vadd.f32 %v1786, %v1978
    %v1980 = vpop.f32.mrb[0].mxu0
    %v1981 = vadd.f32 %v1788, %v1980
    %v1982 = vpop.f32.mrb[0].mxu0
    %v1983 = vadd.f32 %v1790, %v1982
    %1984 = vmatprep.mubr.bf16.mxu0 0
    %1985 = vmatmul.mubr.bf16.gmra.mrb[0].mxu0 %v526
    %v1986 = vpop.f32.mrb[0].mxu0
    %v1987 = vadd.f32 %v1794, %v1986
    %v1988 = vpop.f32.mrb[0].mxu0
    %v1989 = vadd.f32 %v1796, %v1988
    %v1990 = vpop.f32.mrb[0].mxu0
    %v1991 = vadd.f32 %v1798, %v1990
    %v1992 = vpop.f32.mrb[0].mxu0
    %v1993 = vadd.f32 %v1800, %v1992
    %1994 = vmatprep.mubr.bf16.mxu0 0
    %1995 = vmatmul.mubr.bf16.gmra.mrb[0].mxu0 %v529
    %v1996 = vpop.f32.mrb[0].mxu0
    %v1997 = vadd.f32 %v1804, %v1996
    %v1998 = vpop.f32.mrb[0].mxu0
    %v1999 = vadd.f32 %v1806, %v1998
    %v2000 = vpop.f32.mrb[0].mxu0
    %v2001 = vadd.f32 %v1808, %v2000
    %v2002 = vpop.f32.mrb[0].mxu0
    %v2003 = vadd.f32 %v1810, %v2002
    %2004 = vmatprep.mubr.bf16.mxu0 0
    %2005 = vmatmul.mubr.bf16.gmra.mrb[0].mxu0 %v532
    %v2006 = vpop.f32.mrb[0].mxu0
    %v2007 = vadd.f32 %v1814, %v2006
    %v2008 = vpop.f32.mrb[0].mxu0
    %v2009 = vadd.f32 %v1816, %v2008
    %v2010 = vpop.f32.mrb[0].mxu0
    %v2011 = vadd.f32 %v1818, %v2010
    %v2012 = vpop.f32.mrb[0].mxu0
    %v2013 = vadd.f32 %v1820, %v2012
    %2014 = vmatprep.mubr.bf16.mxu0 0
    %2015 = vmatmul.mubr.bf16.gmra.mrb[0].mxu0 %v535
    %v2016 = vpop.f32.mrb[0].mxu0
    %v2017 = vadd.f32 %v1824, %v2016
    %v2018 = vpop.f32.mrb[0].mxu0
    %v2019 = vadd.f32 %v1826, %v2018
    %v2020 = vpop.f32.mrb[0].mxu0
    %v2021 = vadd.f32 %v1828, %v2020
    %v2022 = vpop.f32.mrb[0].mxu0
    %v2023 = vadd.f32 %v1830, %v2022
    %2024 = vmatprep.mubr.bf16.mxu0 0
    %2025 = vmatmul.mubr.bf16.gmra.mrb[0].mxu0 %v538
    %v2026 = vpop.f32.mrb[0].mxu0
    %v2027 = vadd.f32 %v1834, %v2026
    %v2028 = vpop.f32.mrb[0].mxu0
    %v2029 = vadd.f32 %v1836, %v2028
    %v2030 = vpop.f32.mrb[0].mxu0
    %v2031 = vadd.f32 %v1838, %v2030
    %v2032 = vpop.f32.mrb[0].mxu0
    %v2033 = vadd.f32 %v1840, %v2032
    %2034 = vmatprep.mubr.bf16.mxu0 0
    %2035 = vmatmul.mubr.bf16.gmra.mrb[0].mxu0 %v541
    %v2036 = vpop.f32.mrb[0].mxu0
    %v2037 = vadd.f32 %v1844, %v2036
    %v2038 = vpop.f32.mrb[0].mxu0
    %v2039 = vadd.f32 %v1846, %v2038
    %v2040 = vpop.f32.mrb[0].mxu0
    %v2041 = vadd.f32 %v1848, %v2040
    %v2042 = vpop.f32.mrb[0].mxu0
    %v2043 = vadd.f32 %v1850, %v2042
    %2044 = vmatprep.mubr.bf16.mxu0 0
    %2045 = vmatmul.mubr.bf16.gmra.mrb[0].mxu0 %v544
    %v2046 = vpop.f32.mrb[0].mxu0
    %v2047 = vadd.f32 %v1854, %v2046
    %v2048 = vpop.f32.mrb[0].mxu0
    %v2049 = vadd.f32 %v1856, %v2048
    %v2050 = vpop.f32.mrb[0].mxu0
    %v2051 = vadd.f32 %v1858, %v2050
    %v2052 = vpop.f32.mrb[0].mxu0
    %v2053 = vadd.f32 %v1860, %v2052
    %2054 = vmatprep.mubr.bf16.mxu0 0
    %2055 = vmatmul.mubr.bf16.gmra.mrb[0].mxu0 %v547
    %v2056 = vpop.f32.mrb[0].mxu0
    %v2057 = vadd.f32 %v1864, %v2056
    %v2058 = vpop.f32.mrb[0].mxu0
    %v2059 = vadd.f32 %v1866, %v2058
    %v2060 = vpop.f32.mrb[0].mxu0
    %v2061 = vadd.f32 %v1868, %v2060
    %v2062 = vpop.f32.mrb[0].mxu0
    %v2063 = vadd.f32 %v1870, %v2062
    %2064 = vmatprep.mubr.bf16.mxu0 0
    %2065 = vmatmul.mubr.bf16.gmra.mrb[0].mxu0 %v550
    %v2066 = vpop.f32.mrb[0].mxu0
    %v2067 = vadd.f32 %v1874, %v2066
    %v2068 = vpop.f32.mrb[0].mxu0
    %v2069 = vadd.f32 %v1876, %v2068
    %v2070 = vpop.f32.mrb[0].mxu0
    %v2071 = vadd.f32 %v1878, %v2070
    %v2072 = vpop.f32.mrb[0].mxu0
    %v2073 = vadd.f32 %v1880, %v2072
    %2074 = vmatprep.mubr.bf16.mxu0 0
    %2075 = vmatmul.mubr.bf16.gmra.mrb[0].mxu0 %v553
    %v2076 = vpop.f32.mrb[0].mxu0
    %v2077 = vadd.f32 %v1884, %v2076
    %v2078 = vpop.f32.mrb[0].mxu0
    %v2079 = vadd.f32 %v1886, %v2078
    %v2080 = vpop.f32.mrb[0].mxu0
    %v2081 = vadd.f32 %v1888, %v2080
    %v2082 = vpop.f32.mrb[0].mxu0
    %v2083 = vadd.f32 %v1890, %v2082
    %2084 = vmatprep.mubr.bf16.mxu0 0
    %2085 = vmatmul.mubr.bf16.gmra.mrb[0].mxu0 %v556
    %v2086 = vpop.f32.mrb[0].mxu0
    %v2087 = vadd.f32 %v1894, %v2086
    %v2088 = vpop.f32.mrb[0].mxu0
    %v2089 = vadd.f32 %v1896, %v2088
    %v2090 = vpop.f32.mrb[0].mxu0
    %v2091 = vadd.f32 %v1898, %v2090
    %v2092 = vpop.f32.mrb[0].mxu0
    %v2093 = vadd.f32 %v1900, %v2092
    %2094 = vdwg.mxu0
    %2095 = vmatprep.subr.bf16.mxu0 %v1280
    %2096 = vmatpush1.bf16.msra.mxu0 %v1279
    %2097 = vmatprep.subr.bf16.mxu0 %v1289
    %2098 = vmatpush1.bf16.msra.mxu0 %v1288
    %2099 = vmatprep.subr.bf16.mxu0 %v1298
    %2100 = vmatpush1.bf16.msra.mxu0 %v1297
    %2101 = vmatprep.subr.bf16.mxu0 %v1307
    %2102 = vmatpush1.bf16.msra.mxu0 %v1306
    %2103 = vmatprep.subr.bf16.mxu0 %v1316
    %2104 = vmatpush1.bf16.msra.mxu0 %v1315
    %2105 = vmatprep.subr.bf16.mxu0 %v1325
    %2106 = vmatpush1.bf16.msra.mxu0 %v1324
    %2107 = vmatprep.subr.bf16.mxu0 %v1334
    %2108 = vmatpush1.bf16.msra.mxu0 %v1333
    %2109 = vmatprep.subr.bf16.mxu0 %v1343
    %2110 = vmatpush1.bf16.msra.mxu0 %v1342
    %2111 = vmatprep.subr.bf16.mxu0 %v1352
    %2112 = vmatpush1.bf16.msra.mxu0 %v1351
    %2113 = vmatprep.subr.bf16.mxu0 %v1361
    %2114 = vmatpush1.bf16.msra.mxu0 %v1360
    %2115 = vmatprep.subr.bf16.mxu0 %v1370
    %2116 = vmatpush1.bf16.msra.mxu0 %v1369
    %2117 = vmatprep.subr.bf16.mxu0 %v1379
    %2118 = vmatpush1.bf16.msra.mxu0 %v1378
    %2119 = vmatprep.subr.bf16.mxu0 %v1388
    %2120 = vmatpush1.bf16.msra.mxu0 %v1387
    %2121 = vmatprep.subr.bf16.mxu0 %v1397
    %2122 = vmatpush1.bf16.msra.mxu0 %v1396
    %2123 = vmatprep.subr.bf16.mxu0 %v1406
    %2124 = vmatpush1.bf16.msra.mxu0 %v1405
    %2125 = vmatprep.subr.bf16.mxu0 %v1415
    %2126 = vmatpush1.bf16.msra.mxu0 %v1414
    %2127 = vmatprep.mubr.bf16.mxu0 %v510
    %2128 = vmatmul.mubr.bf16.gmra.mrb[0].mxu0 %v509
    %v2129 = vpop.f32.mrb[0].mxu0
    %v2130 = vadd.f32 0.0, %v2129
    %v2131 = vpop.f32.mrb[0].mxu0
    %v2132 = vadd.f32 0.0, %v2131
    %v2133 = vpop.f32.mrb[0].mxu0
    %v2134 = vadd.f32 0.0, %v2133
    %v2135 = vpop.f32.mrb[0].mxu0
    %v2136 = vadd.f32 0.0, %v2135
    %2137 = vmatprep.mubr.bf16.mxu0 %v513
    %2138 = vmatmul.mubr.bf16.gmra.mrb[0].mxu0 %v512
    %v2139 = vpop.f32.mrb[0].mxu0
    %v2140 = vadd.f32 0.0, %v2139
    %v2141 = vpop.f32.mrb[0].mxu0
    %v2142 = vadd.f32 0.0, %v2141
    %v2143 = vpop.f32.mrb[0].mxu0
    %v2144 = vadd.f32 0.0, %v2143
    %v2145 = vpop.f32.mrb[0].mxu0
    %v2146 = vadd.f32 0.0, %v2145
    %2147 = vmatprep.mubr.bf16.mxu0 %v516
    %2148 = vmatmul.mubr.bf16.gmra.mrb[0].mxu0 %v515
    %v2149 = vpop.f32.mrb[0].mxu0
    %v2150 = vadd.f32 0.0, %v2149
    %v2151 = vpop.f32.mrb[0].mxu0
    %v2152 = vadd.f32 0.0, %v2151
    %v2153 = vpop.f32.mrb[0].mxu0
    %v2154 = vadd.f32 0.0, %v2153
    %v2155 = vpop.f32.mrb[0].mxu0
    %v2156 = vadd.f32 0.0, %v2155
    %2157 = vmatprep.mubr.bf16.mxu0 %v519
    %2158 = vmatmul.mubr.bf16.gmra.mrb[0].mxu0 %v518
    %v2159 = vpop.f32.mrb[0].mxu0
    %v2160 = vadd.f32 0.0, %v2159
    %v2161 = vpop.f32.mrb[0].mxu0
    %v2162 = vadd.f32 0.0, %v2161
    %v2163 = vpop.f32.mrb[0].mxu0
    %v2164 = vadd.f32 0.0, %v2163
    %v2165 = vpop.f32.mrb[0].mxu0
    %v2166 = vadd.f32 0.0, %v2165
    %2167 = vmatprep.mubr.bf16.mxu0 %v522
    %2168 = vmatmul.mubr.bf16.gmra.mrb[0].mxu0 %v521
    %v2169 = vpop.f32.mrb[0].mxu0
    %v2170 = vadd.f32 0.0, %v2169
    %v2171 = vpop.f32.mrb[0].mxu0
    %v2172 = vadd.f32 0.0, %v2171
    %v2173 = vpop.f32.mrb[0].mxu0
    %v2174 = vadd.f32 0.0, %v2173
    %v2175 = vpop.f32.mrb[0].mxu0
    %v2176 = vadd.f32 0.0, %v2175
    %2177 = vmatprep.mubr.bf16.mxu0 %v525
    %2178 = vmatmul.mubr.bf16.gmra.mrb[0].mxu0 %v524
    %v2179 = vpop.f32.mrb[0].mxu0
    %v2180 = vadd.f32 0.0, %v2179
    %v2181 = vpop.f32.mrb[0].mxu0
    %v2182 = vadd.f32 0.0, %v2181
    %v2183 = vpop.f32.mrb[0].mxu0
    %v2184 = vadd.f32 0.0, %v2183
    %v2185 = vpop.f32.mrb[0].mxu0
    %v2186 = vadd.f32 0.0, %v2185
    %2187 = vmatprep.mubr.bf16.mxu0 %v528
    %2188 = vmatmul.mubr.bf16.gmra.mrb[0].mxu0 %v527
    %v2189 = vpop.f32.mrb[0].mxu0
    %v2190 = vadd.f32 0.0, %v2189
    %v2191 = vpop.f32.mrb[0].mxu0
    %v2192 = vadd.f32 0.0, %v2191
    %v2193 = vpop.f32.mrb[0].mxu0
    %v2194 = vadd.f32 0.0, %v2193
    %v2195 = vpop.f32.mrb[0].mxu0
    %v2196 = vadd.f32 0.0, %v2195
    %2197 = vmatprep.mubr.bf16.mxu0 %v531
    %2198 = vmatmul.mubr.bf16.gmra.mrb[0].mxu0 %v530
    %v2199 = vpop.f32.mrb[0].mxu0
    %v2200 = vadd.f32 0.0, %v2199
    %v2201 = vpop.f32.mrb[0].mxu0
    %v2202 = vadd.f32 0.0, %v2201
    %v2203 = vpop.f32.mrb[0].mxu0
    %v2204 = vadd.f32 0.0, %v2203
    %v2205 = vpop.f32.mrb[0].mxu0
    %v2206 = vadd.f32 0.0, %v2205
    %2207 = vmatprep.mubr.bf16.mxu0 %v534
    %2208 = vmatmul.mubr.bf16.gmra.mrb[0].mxu0 %v533
    %v2209 = vpop.f32.mrb[0].mxu0
    %v2210 = vadd.f32 0.0, %v2209
    %v2211 = vpop.f32.mrb[0].mxu0
    %v2212 = vadd.f32 0.0, %v2211
    %v2213 = vpop.f32.mrb[0].mxu0
    %v2214 = vadd.f32 0.0, %v2213
    %v2215 = vpop.f32.mrb[0].mxu0
    %v2216 = vadd.f32 0.0, %v2215
    %2217 = vmatprep.mubr.bf16.mxu0 %v537
    %2218 = vmatmul.mubr.bf16.gmra.mrb[0].mxu0 %v536
    %v2219 = vpop.f32.mrb[0].mxu0
    %v2220 = vadd.f32 0.0, %v2219
    %v2221 = vpop.f32.mrb[0].mxu0
    %v2222 = vadd.f32 0.0, %v2221
    %v2223 = vpop.f32.mrb[0].mxu0
    %v2224 = vadd.f32 0.0, %v2223
    %v2225 = vpop.f32.mrb[0].mxu0
    %v2226 = vadd.f32 0.0, %v2225
    %2227 = vmatprep.mubr.bf16.mxu0 %v540
    %2228 = vmatmul.mubr.bf16.gmra.mrb[0].mxu0 %v539
    %v2229 = vpop.f32.mrb[0].mxu0
    %v2230 = vadd.f32 0.0, %v2229
    %v2231 = vpop.f32.mrb[0].mxu0
    %v2232 = vadd.f32 0.0, %v2231
    %v2233 = vpop.f32.mrb[0].mxu0
    %v2234 = vadd.f32 0.0, %v2233
    %v2235 = vpop.f32.mrb[0].mxu0
    %v2236 = vadd.f32 0.0, %v2235
    %2237 = vmatprep.mubr.bf16.mxu0 %v543
    %2238 = vmatmul.mubr.bf16.gmra.mrb[0].mxu0 %v542
    %v2239 = vpop.f32.mrb[0].mxu0
    %v2240 = vadd.f32 0.0, %v2239
    %v2241 = vpop.f32.mrb[0].mxu0
    %v2242 = vadd.f32 0.0, %v2241
    %v2243 = vpop.f32.mrb[0].mxu0
    %v2244 = vadd.f32 0.0, %v2243
    %v2245 = vpop.f32.mrb[0].mxu0
    %v2246 = vadd.f32 0.0, %v2245
    %2247 = vmatprep.mubr.bf16.mxu0 %v546
    %2248 = vmatmul.mubr.bf16.gmra.mrb[0].mxu0 %v545
    %v2249 = vpop.f32.mrb[0].mxu0
    %v2250 = vadd.f32 0.0, %v2249
    %v2251 = vpop.f32.mrb[0].mxu0
    %v2252 = vadd.f32 0.0, %v2251
    %v2253 = vpop.f32.mrb[0].mxu0
    %v2254 = vadd.f32 0.0, %v2253
    %v2255 = vpop.f32.mrb[0].mxu0
    %v2256 = vadd.f32 0.0, %v2255
    %2257 = vmatprep.mubr.bf16.mxu0 %v549
    %2258 = vmatmul.mubr.bf16.gmra.mrb[0].mxu0 %v548
    %v2259 = vpop.f32.mrb[0].mxu0
    %v2260 = vadd.f32 0.0, %v2259
    %v2261 = vpop.f32.mrb[0].mxu0
    %v2262 = vadd.f32 0.0, %v2261
    %v2263 = vpop.f32.mrb[0].mxu0
    %v2264 = vadd.f32 0.0, %v2263
    %v2265 = vpop.f32.mrb[0].mxu0
    %v2266 = vadd.f32 0.0, %v2265
    %2267 = vmatprep.mubr.bf16.mxu0 %v552
    %2268 = vmatmul.mubr.bf16.gmra.mrb[0].mxu0 %v551
    %v2269 = vpop.f32.mrb[0].mxu0
    %v2270 = vadd.f32 0.0, %v2269
    %v2271 = vpop.f32.mrb[0].mxu0
    %v2272 = vadd.f32 0.0, %v2271
    %v2273 = vpop.f32.mrb[0].mxu0
    %v2274 = vadd.f32 0.0, %v2273
    %v2275 = vpop.f32.mrb[0].mxu0
    %v2276 = vadd.f32 0.0, %v2275
    %2277 = vmatprep.mubr.bf16.mxu0 %v555
    %2278 = vmatmul.mubr.bf16.gmra.mrb[0].mxu0 %v554
    %v2279 = vpop.f32.mrb[0].mxu0
    %v2280 = vadd.f32 0.0, %v2279
    %v2281 = vpop.f32.mrb[0].mxu0
    %v2282 = vadd.f32 0.0, %v2281
    %v2283 = vpop.f32.mrb[0].mxu0
    %v2284 = vadd.f32 0.0, %v2283
    %v2285 = vpop.f32.mrb[0].mxu0
    %v2286 = vadd.f32 0.0, %v2285
    %2287 = vdwg.mxu0
    %2288 = vmatprep.subr.bf16.mxu0 %v1424
    %2289 = vmatpush1.bf16.msra.mxu0 %v1423
    %2290 = vmatprep.subr.bf16.mxu0 %v1433
    %2291 = vmatpush1.bf16.msra.mxu0 %v1432
    %2292 = vmatprep.subr.bf16.mxu0 %v1442
    %2293 = vmatpush1.bf16.msra.mxu0 %v1441
    %2294 = vmatprep.subr.bf16.mxu0 %v1451
    %2295 = vmatpush1.bf16.msra.mxu0 %v1450
    %2296 = vmatprep.subr.bf16.mxu0 %v1460
    %2297 = vmatpush1.bf16.msra.mxu0 %v1459
    %2298 = vmatprep.subr.bf16.mxu0 %v1469
    %2299 = vmatpush1.bf16.msra.mxu0 %v1468
    %2300 = vmatprep.subr.bf16.mxu0 %v1478
    %2301 = vmatpush1.bf16.msra.mxu0 %v1477
    %2302 = vmatprep.subr.bf16.mxu0 %v1487
    %2303 = vmatpush1.bf16.msra.mxu0 %v1486
    %2304 = vmatprep.subr.bf16.mxu0 0
    %2305 = vmatpush1.bf16.msra.mxu0 0
    %2306 = vmatprep.subr.bf16.mxu0 0
    %2307 = vmatpush1.bf16.msra.mxu0 0
    %2308 = vmatprep.subr.bf16.mxu0 0
    %2309 = vmatpush1.bf16.msra.mxu0 0
    %2310 = vmatprep.subr.bf16.mxu0 0
    %2311 = vmatpush1.bf16.msra.mxu0 0
    %2312 = vmatprep.subr.bf16.mxu0 0
    %2313 = vmatpush1.bf16.msra.mxu0 0
    %2314 = vmatprep.subr.bf16.mxu0 0
    %2315 = vmatpush1.bf16.msra.mxu0 0
    %2316 = vmatprep.subr.bf16.mxu0 0
    %2317 = vmatpush1.bf16.msra.mxu0 0
    %2318 = vmatprep.subr.bf16.mxu0 0
    %2319 = vmatpush1.bf16.msra.mxu0 0
    %2320 = vmatprep.mubr.bf16.mxu0 0
    %2321 = vmatmul.mubr.bf16.gmra.mrb[0].mxu0 %v511
    %v2322 = vpop.f32.mrb[0].mxu0
    %v2323 = vadd.f32 %v2130, %v2322
    %v2324 = vpop.f32.mrb[0].mxu0
    %v2325 = vadd.f32 %v2132, %v2324
    %v2326 = vpop.f32.mrb[0].mxu0
    %v2327 = vadd.f32 %v2134, %v2326
    %v2328 = vpop.f32.mrb[0].mxu0
    %v2329 = vadd.f32 %v2136, %v2328
    %2330 = vmatprep.mubr.bf16.mxu0 0
    %2331 = vmatmul.mubr.bf16.gmra.mrb[0].mxu0 %v514
    %v2332 = vpop.f32.mrb[0].mxu0
    %v2333 = vadd.f32 %v2140, %v2332
    %v2334 = vpop.f32.mrb[0].mxu0
    %v2335 = vadd.f32 %v2142, %v2334
    %v2336 = vpop.f32.mrb[0].mxu0
    %v2337 = vadd.f32 %v2144, %v2336
    %v2338 = vpop.f32.mrb[0].mxu0
    %v2339 = vadd.f32 %v2146, %v2338
    %2340 = vmatprep.mubr.bf16.mxu0 0
    %2341 = vmatmul.mubr.bf16.gmra.mrb[0].mxu0 %v517
    %v2342 = vpop.f32.mrb[0].mxu0
    %v2343 = vadd.f32 %v2150, %v2342
    %v2344 = vpop.f32.mrb[0].mxu0
    %v2345 = vadd.f32 %v2152, %v2344
    %v2346 = vpop.f32.mrb[0].mxu0
    %v2347 = vadd.f32 %v2154, %v2346
    %v2348 = vpop.f32.mrb[0].mxu0
    %v2349 = vadd.f32 %v2156, %v2348
    %2350 = vmatprep.mubr.bf16.mxu0 0
    %2351 = vmatmul.mubr.bf16.gmra.mrb[0].mxu0 %v520
    %v2352 = vpop.f32.mrb[0].mxu0
    %v2353 = vadd.f32 %v2160, %v2352
    %v2354 = vpop.f32.mrb[0].mxu0
    %v2355 = vadd.f32 %v2162, %v2354
    %v2356 = vpop.f32.mrb[0].mxu0
    %v2357 = vadd.f32 %v2164, %v2356
    %v2358 = vpop.f32.mrb[0].mxu0
    %v2359 = vadd.f32 %v2166, %v2358
    %2360 = vmatprep.mubr.bf16.mxu0 0
    %2361 = vmatmul.mubr.bf16.gmra.mrb[0].mxu0 %v523
    %v2362 = vpop.f32.mrb[0].mxu0
    %v2363 = vadd.f32 %v2170, %v2362
    %v2364 = vpop.f32.mrb[0].mxu0
    %v2365 = vadd.f32 %v2172, %v2364
    %v2366 = vpop.f32.mrb[0].mxu0
    %v2367 = vadd.f32 %v2174, %v2366
    %v2368 = vpop.f32.mrb[0].mxu0
    %v2369 = vadd.f32 %v2176, %v2368
    %2370 = vmatprep.mubr.bf16.mxu0 0
    %2371 = vmatmul.mubr.bf16.gmra.mrb[0].mxu0 %v526
    %v2372 = vpop.f32.mrb[0].mxu0
    %v2373 = vadd.f32 %v2180, %v2372
    %v2374 = vpop.f32.mrb[0].mxu0
    %v2375 = vadd.f32 %v2182, %v2374
    %v2376 = vpop.f32.mrb[0].mxu0
    %v2377 = vadd.f32 %v2184, %v2376
    %v2378 = vpop.f32.mrb[0].mxu0
    %v2379 = vadd.f32 %v2186, %v2378
    %2380 = vmatprep.mubr.bf16.mxu0 0
    %2381 = vmatmul.mubr.bf16.gmra.mrb[0].mxu0 %v529
    %v2382 = vpop.f32.mrb[0].mxu0
    %v2383 = vadd.f32 %v2190, %v2382
    %v2384 = vpop.f32.mrb[0].mxu0
    %v2385 = vadd.f32 %v2192, %v2384
    %v2386 = vpop.f32.mrb[0].mxu0
    %v2387 = vadd.f32 %v2194, %v2386
    %v2388 = vpop.f32.mrb[0].mxu0
    %v2389 = vadd.f32 %v2196, %v2388
    %2390 = vmatprep.mubr.bf16.mxu0 0
    %2391 = vmatmul.mubr.bf16.gmra.mrb[0].mxu0 %v532
    %v2392 = vpop.f32.mrb[0].mxu0
    %v2393 = vadd.f32 %v2200, %v2392
    %v2394 = vpop.f32.mrb[0].mxu0
    %v2395 = vadd.f32 %v2202, %v2394
    %v2396 = vpop.f32.mrb[0].mxu0
    %v2397 = vadd.f32 %v2204, %v2396
    %v2398 = vpop.f32.mrb[0].mxu0
    %v2399 = vadd.f32 %v2206, %v2398
    %2400 = vmatprep.mubr.bf16.mxu0 0
    %2401 = vmatmul.mubr.bf16.gmra.mrb[0].mxu0 %v535
    %v2402 = vpop.f32.mrb[0].mxu0
    %v2403 = vadd.f32 %v2210, %v2402
    %v2404 = vpop.f32.mrb[0].mxu0
    %v2405 = vadd.f32 %v2212, %v2404
    %v2406 = vpop.f32.mrb[0].mxu0
    %v2407 = vadd.f32 %v2214, %v2406
    %v2408 = vpop.f32.mrb[0].mxu0
    %v2409 = vadd.f32 %v2216, %v2408
    %2410 = vmatprep.mubr.bf16.mxu0 0
    %2411 = vmatmul.mubr.bf16.gmra.mrb[0].mxu0 %v538
    %v2412 = vpop.f32.mrb[0].mxu0
    %v2413 = vadd.f32 %v2220, %v2412
    %v2414 = vpop.f32.mrb[0].mxu0
    %v2415 = vadd.f32 %v2222, %v2414
    %v2416 = vpop.f32.mrb[0].mxu0
    %v2417 = vadd.f32 %v2224, %v2416
    %v2418 = vpop.f32.mrb[0].mxu0
    %v2419 = vadd.f32 %v2226, %v2418
    %2420 = vmatprep.mubr.bf16.mxu0 0
    %2421 = vmatmul.mubr.bf16.gmra.mrb[0].mxu0 %v541
    %v2422 = vpop.f32.mrb[0].mxu0
    %v2423 = vadd.f32 %v2230, %v2422
    %v2424 = vpop.f32.mrb[0].mxu0
    %v2425 = vadd.f32 %v2232, %v2424
    %v2426 = vpop.f32.mrb[0].mxu0
    %v2427 = vadd.f32 %v2234, %v2426
    %v2428 = vpop.f32.mrb[0].mxu0
    %v2429 = vadd.f32 %v2236, %v2428
    %2430 = vmatprep.mubr.bf16.mxu0 0
    %2431 = vmatmul.mubr.bf16.gmra.mrb[0].mxu0 %v544
    %v2432 = vpop.f32.mrb[0].mxu0
    %v2433 = vadd.f32 %v2240, %v2432
    %v2434 = vpop.f32.mrb[0].mxu0
    %v2435 = vadd.f32 %v2242, %v2434
    %v2436 = vpop.f32.mrb[0].mxu0
    %v2437 = vadd.f32 %v2244, %v2436
    %v2438 = vpop.f32.mrb[0].mxu0
    %v2439 = vadd.f32 %v2246, %v2438
    %2440 = vmatprep.mubr.bf16.mxu0 0
    %2441 = vmatmul.mubr.bf16.gmra.mrb[0].mxu0 %v547
    %v2442 = vpop.f32.mrb[0].mxu0
    %v2443 = vadd.f32 %v2250, %v2442
    %v2444 = vpop.f32.mrb[0].mxu0
    %v2445 = vadd.f32 %v2252, %v2444
    %v2446 = vpop.f32.mrb[0].mxu0
    %v2447 = vadd.f32 %v2254, %v2446
    %v2448 = vpop.f32.mrb[0].mxu0
    %v2449 = vadd.f32 %v2256, %v2448
    %2450 = vmatprep.mubr.bf16.mxu0 0
    %2451 = vmatmul.mubr.bf16.gmra.mrb[0].mxu0 %v550
    %v2452 = vpop.f32.mrb[0].mxu0
    %v2453 = vadd.f32 %v2260, %v2452
    %v2454 = vpop.f32.mrb[0].mxu0
    %v2455 = vadd.f32 %v2262, %v2454
    %v2456 = vpop.f32.mrb[0].mxu0
    %v2457 = vadd.f32 %v2264, %v2456
    %v2458 = vpop.f32.mrb[0].mxu0
    %v2459 = vadd.f32 %v2266, %v2458
    %2460 = vmatprep.mubr.bf16.mxu0 0
    %2461 = vmatmul.mubr.bf16.gmra.mrb[0].mxu0 %v553
    %v2462 = vpop.f32.mrb[0].mxu0
    %v2463 = vadd.f32 %v2270, %v2462
    %v2464 = vpop.f32.mrb[0].mxu0
    %v2465 = vadd.f32 %v2272, %v2464
    %v2466 = vpop.f32.mrb[0].mxu0
    %v2467 = vadd.f32 %v2274, %v2466
    %v2468 = vpop.f32.mrb[0].mxu0
    %v2469 = vadd.f32 %v2276, %v2468
    %2470 = vmatprep.mubr.bf16.mxu0 0
    %2471 = vmatmul.mubr.bf16.gmra.mrb[0].mxu0 %v556
    %v2472 = vpop.f32.mrb[0].mxu0
    %v2473 = vadd.f32 %v2280, %v2472
    %v2474 = vpop.f32.mrb[0].mxu0
    %v2475 = vadd.f32 %v2282, %v2474
    %v2476 = vpop.f32.mrb[0].mxu0
    %v2477 = vadd.f32 %v2284, %v2476
    %v2478 = vpop.f32.mrb[0].mxu0
    %v2479 = vadd.f32 %v2286, %v2478
    %2480 = vdwg.mxu0
    %2481 = vmatprep.subr.bf16.mxu0 %v1282
    %2482 = vmatpush1.bf16.msra.mxu0 %v1281
    %2483 = vmatprep.subr.bf16.mxu0 %v1291
    %2484 = vmatpush1.bf16.msra.mxu0 %v1290
    %2485 = vmatprep.subr.bf16.mxu0 %v1300
    %2486 = vmatpush1.bf16.msra.mxu0 %v1299
    %2487 = vmatprep.subr.bf16.mxu0 %v1309
    %2488 = vmatpush1.bf16.msra.mxu0 %v1308
    %2489 = vmatprep.subr.bf16.mxu0 %v1318
    %2490 = vmatpush1.bf16.msra.mxu0 %v1317
    %2491 = vmatprep.subr.bf16.mxu0 %v1327
    %2492 = vmatpush1.bf16.msra.mxu0 %v1326
    %2493 = vmatprep.subr.bf16.mxu0 %v1336
    %2494 = vmatpush1.bf16.msra.mxu0 %v1335
    %2495 = vmatprep.subr.bf16.mxu0 %v1345
    %2496 = vmatpush1.bf16.msra.mxu0 %v1344
    %2497 = vmatprep.subr.bf16.mxu0 %v1354
    %2498 = vmatpush1.bf16.msra.mxu0 %v1353
    %2499 = vmatprep.subr.bf16.mxu0 %v1363
    %2500 = vmatpush1.bf16.msra.mxu0 %v1362
    %2501 = vmatprep.subr.bf16.mxu0 %v1372
    %2502 = vmatpush1.bf16.msra.mxu0 %v1371
    %2503 = vmatprep.subr.bf16.mxu0 %v1381
    %2504 = vmatpush1.bf16.msra.mxu0 %v1380
    %2505 = vmatprep.subr.bf16.mxu0 %v1390
    %2506 = vmatpush1.bf16.msra.mxu0 %v1389
    %2507 = vmatprep.subr.bf16.mxu0 %v1399
    %2508 = vmatpush1.bf16.msra.mxu0 %v1398
    %2509 = vmatprep.subr.bf16.mxu0 %v1408
    %2510 = vmatpush1.bf16.msra.mxu0 %v1407
    %2511 = vmatprep.subr.bf16.mxu0 %v1417
    %2512 = vmatpush1.bf16.msra.mxu0 %v1416
    %2513 = vmatprep.mubr.bf16.mxu0 %v510
    %2514 = vmatmul.mubr.bf16.gmra.mrb[0].mxu0 %v509
    %v2515 = vpop.f32.mrb[0].mxu0
    %v2516 = vadd.f32 0.0, %v2515
    %v2517 = vpop.f32.mrb[0].mxu0
    %v2518 = vadd.f32 0.0, %v2517
    %v2519 = vpop.f32.mrb[0].mxu0
    %v2520 = vadd.f32 0.0, %v2519
    %v2521 = vpop.f32.mrb[0].mxu0
    %v2522 = vadd.f32 0.0, %v2521
    %2523 = vmatprep.mubr.bf16.mxu0 %v513
    %2524 = vmatmul.mubr.bf16.gmra.mrb[0].mxu0 %v512
    %v2525 = vpop.f32.mrb[0].mxu0
    %v2526 = vadd.f32 0.0, %v2525
    %v2527 = vpop.f32.mrb[0].mxu0
    %v2528 = vadd.f32 0.0, %v2527
    %v2529 = vpop.f32.mrb[0].mxu0
    %v2530 = vadd.f32 0.0, %v2529
    %v2531 = vpop.f32.mrb[0].mxu0
    %v2532 = vadd.f32 0.0, %v2531
    %2533 = vmatprep.mubr.bf16.mxu0 %v516
    %2534 = vmatmul.mubr.bf16.gmra.mrb[0].mxu0 %v515
    %v2535 = vpop.f32.mrb[0].mxu0
    %v2536 = vadd.f32 0.0, %v2535
    %v2537 = vpop.f32.mrb[0].mxu0
    %v2538 = vadd.f32 0.0, %v2537
    %v2539 = vpop.f32.mrb[0].mxu0
    %v2540 = vadd.f32 0.0, %v2539
    %v2541 = vpop.f32.mrb[0].mxu0
    %v2542 = vadd.f32 0.0, %v2541
    %2543 = vmatprep.mubr.bf16.mxu0 %v519
    %2544 = vmatmul.mubr.bf16.gmra.mrb[0].mxu0 %v518
    %v2545 = vpop.f32.mrb[0].mxu0
    %v2546 = vadd.f32 0.0, %v2545
    %v2547 = vpop.f32.mrb[0].mxu0
    %v2548 = vadd.f32 0.0, %v2547
    %v2549 = vpop.f32.mrb[0].mxu0
    %v2550 = vadd.f32 0.0, %v2549
    %v2551 = vpop.f32.mrb[0].mxu0
    %v2552 = vadd.f32 0.0, %v2551
    %2553 = vmatprep.mubr.bf16.mxu0 %v522
    %2554 = vmatmul.mubr.bf16.gmra.mrb[0].mxu0 %v521
    %v2555 = vpop.f32.mrb[0].mxu0
    %v2556 = vadd.f32 0.0, %v2555
    %v2557 = vpop.f32.mrb[0].mxu0
    %v2558 = vadd.f32 0.0, %v2557
    %v2559 = vpop.f32.mrb[0].mxu0
    %v2560 = vadd.f32 0.0, %v2559
    %v2561 = vpop.f32.mrb[0].mxu0
    %v2562 = vadd.f32 0.0, %v2561
    %2563 = vmatprep.mubr.bf16.mxu0 %v525
    %2564 = vmatmul.mubr.bf16.gmra.mrb[0].mxu0 %v524
    %v2565 = vpop.f32.mrb[0].mxu0
    %v2566 = vadd.f32 0.0, %v2565
    %v2567 = vpop.f32.mrb[0].mxu0
    %v2568 = vadd.f32 0.0, %v2567
    %v2569 = vpop.f32.mrb[0].mxu0
    %v2570 = vadd.f32 0.0, %v2569
    %v2571 = vpop.f32.mrb[0].mxu0
    %v2572 = vadd.f32 0.0, %v2571
    %2573 = vmatprep.mubr.bf16.mxu0 %v528
    %2574 = vmatmul.mubr.bf16.gmra.mrb[0].mxu0 %v527
    %v2575 = vpop.f32.mrb[0].mxu0
    %v2576 = vadd.f32 0.0, %v2575
    %v2577 = vpop.f32.mrb[0].mxu0
    %v2578 = vadd.f32 0.0, %v2577
    %v2579 = vpop.f32.mrb[0].mxu0
    %v2580 = vadd.f32 0.0, %v2579
    %v2581 = vpop.f32.mrb[0].mxu0
    %v2582 = vadd.f32 0.0, %v2581
    %2583 = vmatprep.mubr.bf16.mxu0 %v531
    %2584 = vmatmul.mubr.bf16.gmra.mrb[0].mxu0 %v530
    %v2585 = vpop.f32.mrb[0].mxu0
    %v2586 = vadd.f32 0.0, %v2585
    %v2587 = vpop.f32.mrb[0].mxu0
    %v2588 = vadd.f32 0.0, %v2587
    %v2589 = vpop.f32.mrb[0].mxu0
    %v2590 = vadd.f32 0.0, %v2589
    %v2591 = vpop.f32.mrb[0].mxu0
    %v2592 = vadd.f32 0.0, %v2591
    %2593 = vmatprep.mubr.bf16.mxu0 %v534
    %2594 = vmatmul.mubr.bf16.gmra.mrb[0].mxu0 %v533
    %v2595 = vpop.f32.mrb[0].mxu0
    %v2596 = vadd.f32 0.0, %v2595
    %v2597 = vpop.f32.mrb[0].mxu0
    %v2598 = vadd.f32 0.0, %v2597
    %v2599 = vpop.f32.mrb[0].mxu0
    %v2600 = vadd.f32 0.0, %v2599
    %v2601 = vpop.f32.mrb[0].mxu0
    %v2602 = vadd.f32 0.0, %v2601
    %2603 = vmatprep.mubr.bf16.mxu0 %v537
    %2604 = vmatmul.mubr.bf16.gmra.mrb[0].mxu0 %v536
    %v2605 = vpop.f32.mrb[0].mxu0
    %v2606 = vadd.f32 0.0, %v2605
    %v2607 = vpop.f32.mrb[0].mxu0
    %v2608 = vadd.f32 0.0, %v2607
    %v2609 = vpop.f32.mrb[0].mxu0
    %v2610 = vadd.f32 0.0, %v2609
    %v2611 = vpop.f32.mrb[0].mxu0
    %v2612 = vadd.f32 0.0, %v2611
    %2613 = vmatprep.mubr.bf16.mxu0 %v540
    %2614 = vmatmul.mubr.bf16.gmra.mrb[0].mxu0 %v539
    %v2615 = vpop.f32.mrb[0].mxu0
    %v2616 = vadd.f32 0.0, %v2615
    %v2617 = vpop.f32.mrb[0].mxu0
    %v2618 = vadd.f32 0.0, %v2617
    %v2619 = vpop.f32.mrb[0].mxu0
    %v2620 = vadd.f32 0.0, %v2619
    %v2621 = vpop.f32.mrb[0].mxu0
    %v2622 = vadd.f32 0.0, %v2621
    %2623 = vmatprep.mubr.bf16.mxu0 %v543
    %2624 = vmatmul.mubr.bf16.gmra.mrb[0].mxu0 %v542
    %v2625 = vpop.f32.mrb[0].mxu0
    %v2626 = vadd.f32 0.0, %v2625
    %v2627 = vpop.f32.mrb[0].mxu0
    %v2628 = vadd.f32 0.0, %v2627
    %v2629 = vpop.f32.mrb[0].mxu0
    %v2630 = vadd.f32 0.0, %v2629
    %v2631 = vpop.f32.mrb[0].mxu0
    %v2632 = vadd.f32 0.0, %v2631
    %2633 = vmatprep.mubr.bf16.mxu0 %v546
    %2634 = vmatmul.mubr.bf16.gmra.mrb[0].mxu0 %v545
    %v2635 = vpop.f32.mrb[0].mxu0
    %v2636 = vadd.f32 0.0, %v2635
    %v2637 = vpop.f32.mrb[0].mxu0
    %v2638 = vadd.f32 0.0, %v2637
    %v2639 = vpop.f32.mrb[0].mxu0
    %v2640 = vadd.f32 0.0, %v2639
    %v2641 = vpop.f32.mrb[0].mxu0
    %v2642 = vadd.f32 0.0, %v2641
    %2643 = vmatprep.mubr.bf16.mxu0 %v549
    %2644 = vmatmul.mubr.bf16.gmra.mrb[0].mxu0 %v548
    %v2645 = vpop.f32.mrb[0].mxu0
    %v2646 = vadd.f32 0.0, %v2645
    %v2647 = vpop.f32.mrb[0].mxu0
    %v2648 = vadd.f32 0.0, %v2647
    %v2649 = vpop.f32.mrb[0].mxu0
    %v2650 = vadd.f32 0.0, %v2649
    %v2651 = vpop.f32.mrb[0].mxu0
    %v2652 = vadd.f32 0.0, %v2651
    %2653 = vmatprep.mubr.bf16.mxu0 %v552
    %2654 = vmatmul.mubr.bf16.gmra.mrb[0].mxu0 %v551
    %v2655 = vpop.f32.mrb[0].mxu0
    %v2656 = vadd.f32 0.0, %v2655
    %v2657 = vpop.f32.mrb[0].mxu0
    %v2658 = vadd.f32 0.0, %v2657
    %v2659 = vpop.f32.mrb[0].mxu0
    %v2660 = vadd.f32 0.0, %v2659
    %v2661 = vpop.f32.mrb[0].mxu0
    %v2662 = vadd.f32 0.0, %v2661
    %2663 = vmatprep.mubr.bf16.mxu0 %v555
    %2664 = vmatmul.mubr.bf16.gmra.mrb[0].mxu0 %v554
    %v2665 = vpop.f32.mrb[0].mxu0
    %v2666 = vadd.f32 0.0, %v2665
    %v2667 = vpop.f32.mrb[0].mxu0
    %v2668 = vadd.f32 0.0, %v2667
    %v2669 = vpop.f32.mrb[0].mxu0
    %v2670 = vadd.f32 0.0, %v2669
    %v2671 = vpop.f32.mrb[0].mxu0
    %v2672 = vadd.f32 0.0, %v2671
    %2673 = vdwg.mxu0
    %2674 = vmatprep.subr.bf16.mxu0 %v1426
    %2675 = vmatpush1.bf16.msra.mxu0 %v1425
    %2676 = vmatprep.subr.bf16.mxu0 %v1435
    %2677 = vmatpush1.bf16.msra.mxu0 %v1434
    %2678 = vmatprep.subr.bf16.mxu0 %v1444
    %2679 = vmatpush1.bf16.msra.mxu0 %v1443
    %2680 = vmatprep.subr.bf16.mxu0 %v1453
    %2681 = vmatpush1.bf16.msra.mxu0 %v1452
    %2682 = vmatprep.subr.bf16.mxu0 %v1462
    %2683 = vmatpush1.bf16.msra.mxu0 %v1461
    %2684 = vmatprep.subr.bf16.mxu0 %v1471
    %2685 = vmatpush1.bf16.msra.mxu0 %v1470
    %2686 = vmatprep.subr.bf16.mxu0 %v1480
    %2687 = vmatpush1.bf16.msra.mxu0 %v1479
    %2688 = vmatprep.subr.bf16.mxu0 %v1489
    %2689 = vmatpush1.bf16.msra.mxu0 %v1488
    %2690 = vmatprep.subr.bf16.mxu0 0
    %2691 = vmatpush1.bf16.msra.mxu0 0
    %2692 = vmatprep.subr.bf16.mxu0 0
    %2693 = vmatpush1.bf16.msra.mxu0 0
    %2694 = vmatprep.subr.bf16.mxu0 0
    %2695 = vmatpush1.bf16.msra.mxu0 0
    %2696 = vmatprep.subr.bf16.mxu0 0
    %2697 = vmatpush1.bf16.msra.mxu0 0
    %2698 = vmatprep.subr.bf16.mxu0 0
    %2699 = vmatpush1.bf16.msra.mxu0 0
    %2700 = vmatprep.subr.bf16.mxu0 0
    %2701 = vmatpush1.bf16.msra.mxu0 0
    %2702 = vmatprep.subr.bf16.mxu0 0
    %2703 = vmatpush1.bf16.msra.mxu0 0
    %2704 = vmatprep.subr.bf16.mxu0 0
    %2705 = vmatpush1.bf16.msra.mxu0 0
    %2706 = vmatprep.mubr.bf16.mxu0 0
    %2707 = vmatmul.mubr.bf16.gmra.mrb[0].mxu0 %v511
    %v2708 = vpop.f32.mrb[0].mxu0
    %v2709 = vadd.f32 %v2516, %v2708
    %v2710 = vpop.f32.mrb[0].mxu0
    %v2711 = vadd.f32 %v2518, %v2710
    %v2712 = vpop.f32.mrb[0].mxu0
    %v2713 = vadd.f32 %v2520, %v2712
    %v2714 = vpop.f32.mrb[0].mxu0
    %v2715 = vadd.f32 %v2522, %v2714
    %2716 = vmatprep.mubr.bf16.mxu0 0
    %2717 = vmatmul.mubr.bf16.gmra.mrb[0].mxu0 %v514
    %v2718 = vpop.f32.mrb[0].mxu0
    %v2719 = vadd.f32 %v2526, %v2718
    %v2720 = vpop.f32.mrb[0].mxu0
    %v2721 = vadd.f32 %v2528, %v2720
    %v2722 = vpop.f32.mrb[0].mxu0
    %v2723 = vadd.f32 %v2530, %v2722
    %v2724 = vpop.f32.mrb[0].mxu0
    %v2725 = vadd.f32 %v2532, %v2724
    %2726 = vmatprep.mubr.bf16.mxu0 0
    %2727 = vmatmul.mubr.bf16.gmra.mrb[0].mxu0 %v517
    %v2728 = vpop.f32.mrb[0].mxu0
    %v2729 = vadd.f32 %v2536, %v2728
    %v2730 = vpop.f32.mrb[0].mxu0
    %v2731 = vadd.f32 %v2538, %v2730
    %v2732 = vpop.f32.mrb[0].mxu0
    %v2733 = vadd.f32 %v2540, %v2732
    %v2734 = vpop.f32.mrb[0].mxu0
    %v2735 = vadd.f32 %v2542, %v2734
    %2736 = vmatprep.mubr.bf16.mxu0 0
    %2737 = vmatmul.mubr.bf16.gmra.mrb[0].mxu0 %v520
    %v2738 = vpop.f32.mrb[0].mxu0
    %v2739 = vadd.f32 %v2546, %v2738
    %v2740 = vpop.f32.mrb[0].mxu0
    %v2741 = vadd.f32 %v2548, %v2740
    %v2742 = vpop.f32.mrb[0].mxu0
    %v2743 = vadd.f32 %v2550, %v2742
    %v2744 = vpop.f32.mrb[0].mxu0
    %v2745 = vadd.f32 %v2552, %v2744
    %2746 = vmatprep.mubr.bf16.mxu0 0
    %2747 = vmatmul.mubr.bf16.gmra.mrb[0].mxu0 %v523
    %v2748 = vpop.f32.mrb[0].mxu0
    %v2749 = vadd.f32 %v2556, %v2748
    %v2750 = vpop.f32.mrb[0].mxu0
    %v2751 = vadd.f32 %v2558, %v2750
    %v2752 = vpop.f32.mrb[0].mxu0
    %v2753 = vadd.f32 %v2560, %v2752
    %v2754 = vpop.f32.mrb[0].mxu0
    %v2755 = vadd.f32 %v2562, %v2754
    %2756 = vmatprep.mubr.bf16.mxu0 0
    %2757 = vmatmul.mubr.bf16.gmra.mrb[0].mxu0 %v526
    %v2758 = vpop.f32.mrb[0].mxu0
    %v2759 = vadd.f32 %v2566, %v2758
    %v2760 = vpop.f32.mrb[0].mxu0
    %v2761 = vadd.f32 %v2568, %v2760
    %v2762 = vpop.f32.mrb[0].mxu0
    %v2763 = vadd.f32 %v2570, %v2762
    %v2764 = vpop.f32.mrb[0].mxu0
    %v2765 = vadd.f32 %v2572, %v2764
    %2766 = vmatprep.mubr.bf16.mxu0 0
    %2767 = vmatmul.mubr.bf16.gmra.mrb[0].mxu0 %v529
    %v2768 = vpop.f32.mrb[0].mxu0
    %v2769 = vadd.f32 %v2576, %v2768
    %v2770 = vpop.f32.mrb[0].mxu0
    %v2771 = vadd.f32 %v2578, %v2770
    %v2772 = vpop.f32.mrb[0].mxu0
    %v2773 = vadd.f32 %v2580, %v2772
    %v2774 = vpop.f32.mrb[0].mxu0
    %v2775 = vadd.f32 %v2582, %v2774
    %2776 = vmatprep.mubr.bf16.mxu0 0
    %2777 = vmatmul.mubr.bf16.gmra.mrb[0].mxu0 %v532
    %v2778 = vpop.f32.mrb[0].mxu0
    %v2779 = vadd.f32 %v2586, %v2778
    %v2780 = vpop.f32.mrb[0].mxu0
    %v2781 = vadd.f32 %v2588, %v2780
    %v2782 = vpop.f32.mrb[0].mxu0
    %v2783 = vadd.f32 %v2590, %v2782
    %v2784 = vpop.f32.mrb[0].mxu0
    %v2785 = vadd.f32 %v2592, %v2784
    %2786 = vmatprep.mubr.bf16.mxu0 0
    %2787 = vmatmul.mubr.bf16.gmra.mrb[0].mxu0 %v535
    %v2788 = vpop.f32.mrb[0].mxu0
    %v2789 = vadd.f32 %v2596, %v2788
    %v2790 = vpop.f32.mrb[0].mxu0
    %v2791 = vadd.f32 %v2598, %v2790
    %v2792 = vpop.f32.mrb[0].mxu0
    %v2793 = vadd.f32 %v2600, %v2792
    %v2794 = vpop.f32.mrb[0].mxu0
    %v2795 = vadd.f32 %v2602, %v2794
    %2796 = vmatprep.mubr.bf16.mxu0 0
    %2797 = vmatmul.mubr.bf16.gmra.mrb[0].mxu0 %v538
    %v2798 = vpop.f32.mrb[0].mxu0
    %v2799 = vadd.f32 %v2606, %v2798
    %v2800 = vpop.f32.mrb[0].mxu0
    %v2801 = vadd.f32 %v2608, %v2800
    %v2802 = vpop.f32.mrb[0].mxu0
    %v2803 = vadd.f32 %v2610, %v2802
    %v2804 = vpop.f32.mrb[0].mxu0
    %v2805 = vadd.f32 %v2612, %v2804
    %2806 = vmatprep.mubr.bf16.mxu0 0
    %2807 = vmatmul.mubr.bf16.gmra.mrb[0].mxu0 %v541
    %v2808 = vpop.f32.mrb[0].mxu0
    %v2809 = vadd.f32 %v2616, %v2808
    %v2810 = vpop.f32.mrb[0].mxu0
    %v2811 = vadd.f32 %v2618, %v2810
    %v2812 = vpop.f32.mrb[0].mxu0
    %v2813 = vadd.f32 %v2620, %v2812
    %v2814 = vpop.f32.mrb[0].mxu0
    %v2815 = vadd.f32 %v2622, %v2814
    %2816 = vmatprep.mubr.bf16.mxu0 0
    %2817 = vmatmul.mubr.bf16.gmra.mrb[0].mxu0 %v544
    %v2818 = vpop.f32.mrb[0].mxu0
    %v2819 = vadd.f32 %v2626, %v2818
    %v2820 = vpop.f32.mrb[0].mxu0
    %v2821 = vadd.f32 %v2628, %v2820
    %v2822 = vpop.f32.mrb[0].mxu0
    %v2823 = vadd.f32 %v2630, %v2822
    %v2824 = vpop.f32.mrb[0].mxu0
    %v2825 = vadd.f32 %v2632, %v2824
    %2826 = vmatprep.mubr.bf16.mxu0 0
    %2827 = vmatmul.mubr.bf16.gmra.mrb[0].mxu0 %v547
    %v2828 = vpop.f32.mrb[0].mxu0
    %v2829 = vadd.f32 %v2636, %v2828
    %v2830 = vpop.f32.mrb[0].mxu0
    %v2831 = vadd.f32 %v2638, %v2830
    %v2832 = vpop.f32.mrb[0].mxu0
    %v2833 = vadd.f32 %v2640, %v2832
    %v2834 = vpop.f32.mrb[0].mxu0
    %v2835 = vadd.f32 %v2642, %v2834
    %2836 = vmatprep.mubr.bf16.mxu0 0
    %2837 = vmatmul.mubr.bf16.gmra.mrb[0].mxu0 %v550
    %v2838 = vpop.f32.mrb[0].mxu0
    %v2839 = vadd.f32 %v2646, %v2838
    %v2840 = vpop.f32.mrb[0].mxu0
    %v2841 = vadd.f32 %v2648, %v2840
    %v2842 = vpop.f32.mrb[0].mxu0
    %v2843 = vadd.f32 %v2650, %v2842
    %v2844 = vpop.f32.mrb[0].mxu0
    %v2845 = vadd.f32 %v2652, %v2844
    %2846 = vmatprep.mubr.bf16.mxu0 0
    %2847 = vmatmul.mubr.bf16.gmra.mrb[0].mxu0 %v553
    %v2848 = vpop.f32.mrb[0].mxu0
    %v2849 = vadd.f32 %v2656, %v2848
    %v2850 = vpop.f32.mrb[0].mxu0
    %v2851 = vadd.f32 %v2658, %v2850
    %v2852 = vpop.f32.mrb[0].mxu0
    %v2853 = vadd.f32 %v2660, %v2852
    %v2854 = vpop.f32.mrb[0].mxu0
    %v2855 = vadd.f32 %v2662, %v2854
    %2856 = vmatprep.mubr.bf16.mxu0 0
    %2857 = vmatmul.mubr.bf16.gmra.mrb[0].mxu0 %v556
    %v2858 = vpop.f32.mrb[0].mxu0
    %v2859 = vadd.f32 %v2666, %v2858
    %v2860 = vpop.f32.mrb[0].mxu0
    %v2861 = vadd.f32 %v2668, %v2860
    %v2862 = vpop.f32.mrb[0].mxu0
    %v2863 = vadd.f32 %v2670, %v2862
    %v2864 = vpop.f32.mrb[0].mxu0
    %v2865 = vadd.f32 %v2672, %v2864
    %2866 = vdwg.mxu0
    %2867 = vmatprep.subr.bf16.mxu0 %v1284
    %2868 = vmatpush1.bf16.msra.mxu0 %v1283
    %2869 = vmatprep.subr.bf16.mxu0 %v1293
    %2870 = vmatpush1.bf16.msra.mxu0 %v1292
    %2871 = vmatprep.subr.bf16.mxu0 %v1302
    %2872 = vmatpush1.bf16.msra.mxu0 %v1301
    %2873 = vmatprep.subr.bf16.mxu0 %v1311
    %2874 = vmatpush1.bf16.msra.mxu0 %v1310
    %2875 = vmatprep.subr.bf16.mxu0 %v1320
    %2876 = vmatpush1.bf16.msra.mxu0 %v1319
    %2877 = vmatprep.subr.bf16.mxu0 %v1329
    %2878 = vmatpush1.bf16.msra.mxu0 %v1328
    %2879 = vmatprep.subr.bf16.mxu0 %v1338
    %2880 = vmatpush1.bf16.msra.mxu0 %v1337
    %2881 = vmatprep.subr.bf16.mxu0 %v1347
    %2882 = vmatpush1.bf16.msra.mxu0 %v1346
    %2883 = vmatprep.subr.bf16.mxu0 %v1356
    %2884 = vmatpush1.bf16.msra.mxu0 %v1355
    %2885 = vmatprep.subr.bf16.mxu0 %v1365
    %2886 = vmatpush1.bf16.msra.mxu0 %v1364
    %2887 = vmatprep.subr.bf16.mxu0 %v1374
    %2888 = vmatpush1.bf16.msra.mxu0 %v1373
    %2889 = vmatprep.subr.bf16.mxu0 %v1383
    %2890 = vmatpush1.bf16.msra.mxu0 %v1382
    %2891 = vmatprep.subr.bf16.mxu0 %v1392
    %2892 = vmatpush1.bf16.msra.mxu0 %v1391
    %2893 = vmatprep.subr.bf16.mxu0 %v1401
    %2894 = vmatpush1.bf16.msra.mxu0 %v1400
    %2895 = vmatprep.subr.bf16.mxu0 %v1410
    %2896 = vmatpush1.bf16.msra.mxu0 %v1409
    %2897 = vmatprep.subr.bf16.mxu0 %v1419
    %2898 = vmatpush1.bf16.msra.mxu0 %v1418
    %2899 = vmatprep.mubr.bf16.mxu0 %v510
    %2900 = vmatmul.mubr.bf16.gmra.mrb[0].mxu0 %v509
    %v2901 = vpop.f32.mrb[0].mxu0
    %v2902 = vadd.f32 0.0, %v2901
    %v2903 = vpop.f32.mrb[0].mxu0
    %v2904 = vadd.f32 0.0, %v2903
    %v2905 = vpop.f32.mrb[0].mxu0
    %v2906 = vadd.f32 0.0, %v2905
    %v2907 = vpop.f32.mrb[0].mxu0
    %v2908 = vadd.f32 0.0, %v2907
    %2909 = vmatprep.mubr.bf16.mxu0 %v513
    %2910 = vmatmul.mubr.bf16.gmra.mrb[0].mxu0 %v512
    %v2911 = vpop.f32.mrb[0].mxu0
    %v2912 = vadd.f32 0.0, %v2911
    %v2913 = vpop.f32.mrb[0].mxu0
    %v2914 = vadd.f32 0.0, %v2913
    %v2915 = vpop.f32.mrb[0].mxu0
    %v2916 = vadd.f32 0.0, %v2915
    %v2917 = vpop.f32.mrb[0].mxu0
    %v2918 = vadd.f32 0.0, %v2917
    %2919 = vmatprep.mubr.bf16.mxu0 %v516
    %2920 = vmatmul.mubr.bf16.gmra.mrb[0].mxu0 %v515
    %v2921 = vpop.f32.mrb[0].mxu0
    %v2922 = vadd.f32 0.0, %v2921
    %v2923 = vpop.f32.mrb[0].mxu0
    %v2924 = vadd.f32 0.0, %v2923
    %v2925 = vpop.f32.mrb[0].mxu0
    %v2926 = vadd.f32 0.0, %v2925
    %v2927 = vpop.f32.mrb[0].mxu0
    %v2928 = vadd.f32 0.0, %v2927
    %2929 = vmatprep.mubr.bf16.mxu0 %v519
    %2930 = vmatmul.mubr.bf16.gmra.mrb[0].mxu0 %v518
    %v2931 = vpop.f32.mrb[0].mxu0
    %v2932 = vadd.f32 0.0, %v2931
    %v2933 = vpop.f32.mrb[0].mxu0
    %v2934 = vadd.f32 0.0, %v2933
    %v2935 = vpop.f32.mrb[0].mxu0
    %v2936 = vadd.f32 0.0, %v2935
    %v2937 = vpop.f32.mrb[0].mxu0
    %v2938 = vadd.f32 0.0, %v2937
    %2939 = vmatprep.mubr.bf16.mxu0 %v522
    %2940 = vmatmul.mubr.bf16.gmra.mrb[0].mxu0 %v521
    %v2941 = vpop.f32.mrb[0].mxu0
    %v2942 = vadd.f32 0.0, %v2941
    %v2943 = vpop.f32.mrb[0].mxu0
    %v2944 = vadd.f32 0.0, %v2943
    %v2945 = vpop.f32.mrb[0].mxu0
    %v2946 = vadd.f32 0.0, %v2945
    %v2947 = vpop.f32.mrb[0].mxu0
    %v2948 = vadd.f32 0.0, %v2947
    %2949 = vmatprep.mubr.bf16.mxu0 %v525
    %2950 = vmatmul.mubr.bf16.gmra.mrb[0].mxu0 %v524
    %v2951 = vpop.f32.mrb[0].mxu0
    %v2952 = vadd.f32 0.0, %v2951
    %v2953 = vpop.f32.mrb[0].mxu0
    %v2954 = vadd.f32 0.0, %v2953
    %v2955 = vpop.f32.mrb[0].mxu0
    %v2956 = vadd.f32 0.0, %v2955
    %v2957 = vpop.f32.mrb[0].mxu0
    %v2958 = vadd.f32 0.0, %v2957
    %2959 = vmatprep.mubr.bf16.mxu0 %v528
    %2960 = vmatmul.mubr.bf16.gmra.mrb[0].mxu0 %v527
    %v2961 = vpop.f32.mrb[0].mxu0
    %v2962 = vadd.f32 0.0, %v2961
    %v2963 = vpop.f32.mrb[0].mxu0
    %v2964 = vadd.f32 0.0, %v2963
    %v2965 = vpop.f32.mrb[0].mxu0
    %v2966 = vadd.f32 0.0, %v2965
    %v2967 = vpop.f32.mrb[0].mxu0
    %v2968 = vadd.f32 0.0, %v2967
    %2969 = vmatprep.mubr.bf16.mxu0 %v531
    %2970 = vmatmul.mubr.bf16.gmra.mrb[0].mxu0 %v530
    %v2971 = vpop.f32.mrb[0].mxu0
    %v2972 = vadd.f32 0.0, %v2971
    %v2973 = vpop.f32.mrb[0].mxu0
    %v2974 = vadd.f32 0.0, %v2973
    %v2975 = vpop.f32.mrb[0].mxu0
    %v2976 = vadd.f32 0.0, %v2975
    %v2977 = vpop.f32.mrb[0].mxu0
    %v2978 = vadd.f32 0.0, %v2977
    %2979 = vmatprep.mubr.bf16.mxu0 %v534
    %2980 = vmatmul.mubr.bf16.gmra.mrb[0].mxu0 %v533
    %v2981 = vpop.f32.mrb[0].mxu0
    %v2982 = vadd.f32 0.0, %v2981
    %v2983 = vpop.f32.mrb[0].mxu0
    %v2984 = vadd.f32 0.0, %v2983
    %v2985 = vpop.f32.mrb[0].mxu0
    %v2986 = vadd.f32 0.0, %v2985
    %v2987 = vpop.f32.mrb[0].mxu0
    %v2988 = vadd.f32 0.0, %v2987
    %2989 = vmatprep.mubr.bf16.mxu0 %v537
    %2990 = vmatmul.mubr.bf16.gmra.mrb[0].mxu0 %v536
    %v2991 = vpop.f32.mrb[0].mxu0
    %v2992 = vadd.f32 0.0, %v2991
    %v2993 = vpop.f32.mrb[0].mxu0
    %v2994 = vadd.f32 0.0, %v2993
    %v2995 = vpop.f32.mrb[0].mxu0
    %v2996 = vadd.f32 0.0, %v2995
    %v2997 = vpop.f32.mrb[0].mxu0
    %v2998 = vadd.f32 0.0, %v2997
    %2999 = vmatprep.mubr.bf16.mxu0 %v540
    %3000 = vmatmul.mubr.bf16.gmra.mrb[0].mxu0 %v539
    %v3001 = vpop.f32.mrb[0].mxu0
    %v3002 = vadd.f32 0.0, %v3001
    %v3003 = vpop.f32.mrb[0].mxu0
    %v3004 = vadd.f32 0.0, %v3003
    %v3005 = vpop.f32.mrb[0].mxu0
    %v3006 = vadd.f32 0.0, %v3005
    %v3007 = vpop.f32.mrb[0].mxu0
    %v3008 = vadd.f32 0.0, %v3007
    %3009 = vmatprep.mubr.bf16.mxu0 %v543
    %3010 = vmatmul.mubr.bf16.gmra.mrb[0].mxu0 %v542
    %v3011 = vpop.f32.mrb[0].mxu0
    %v3012 = vadd.f32 0.0, %v3011
    %v3013 = vpop.f32.mrb[0].mxu0
    %v3014 = vadd.f32 0.0, %v3013
    %v3015 = vpop.f32.mrb[0].mxu0
    %v3016 = vadd.f32 0.0, %v3015
    %v3017 = vpop.f32.mrb[0].mxu0
    %v3018 = vadd.f32 0.0, %v3017
    %3019 = vmatprep.mubr.bf16.mxu0 %v546
    %3020 = vmatmul.mubr.bf16.gmra.mrb[0].mxu0 %v545
    %v3021 = vpop.f32.mrb[0].mxu0
    %v3022 = vadd.f32 0.0, %v3021
    %v3023 = vpop.f32.mrb[0].mxu0
    %v3024 = vadd.f32 0.0, %v3023
    %v3025 = vpop.f32.mrb[0].mxu0
    %v3026 = vadd.f32 0.0, %v3025
    %v3027 = vpop.f32.mrb[0].mxu0
    %v3028 = vadd.f32 0.0, %v3027
    %3029 = vmatprep.mubr.bf16.mxu0 %v549
    %3030 = vmatmul.mubr.bf16.gmra.mrb[0].mxu0 %v548
    %v3031 = vpop.f32.mrb[0].mxu0
    %v3032 = vadd.f32 0.0, %v3031
    %v3033 = vpop.f32.mrb[0].mxu0
    %v3034 = vadd.f32 0.0, %v3033
    %v3035 = vpop.f32.mrb[0].mxu0
    %v3036 = vadd.f32 0.0, %v3035
    %v3037 = vpop.f32.mrb[0].mxu0
    %v3038 = vadd.f32 0.0, %v3037
    %3039 = vmatprep.mubr.bf16.mxu0 %v552
    %3040 = vmatmul.mubr.bf16.gmra.mrb[0].mxu0 %v551
    %v3041 = vpop.f32.mrb[0].mxu0
    %v3042 = vadd.f32 0.0, %v3041
    %v3043 = vpop.f32.mrb[0].mxu0
    %v3044 = vadd.f32 0.0, %v3043
    %v3045 = vpop.f32.mrb[0].mxu0
    %v3046 = vadd.f32 0.0, %v3045
    %v3047 = vpop.f32.mrb[0].mxu0
    %v3048 = vadd.f32 0.0, %v3047
    %3049 = vmatprep.mubr.bf16.mxu0 %v555
    %3050 = vmatmul.mubr.bf16.gmra.mrb[0].mxu0 %v554
    %v3051 = vpop.f32.mrb[0].mxu0
    %v3052 = vadd.f32 0.0, %v3051
    %v3053 = vpop.f32.mrb[0].mxu0
    %v3054 = vadd.f32 0.0, %v3053
    %v3055 = vpop.f32.mrb[0].mxu0
    %v3056 = vadd.f32 0.0, %v3055
    %v3057 = vpop.f32.mrb[0].mxu0
    %v3058 = vadd.f32 0.0, %v3057
    %3059 = vdwg.mxu0
    %3060 = vmatprep.subr.bf16.mxu0 %v1428
    %3061 = vmatpush1.bf16.msra.mxu0 %v1427
    %3062 = vmatprep.subr.bf16.mxu0 %v1437
    %3063 = vmatpush1.bf16.msra.mxu0 %v1436
    %3064 = vmatprep.subr.bf16.mxu0 %v1446
    %3065 = vmatpush1.bf16.msra.mxu0 %v1445
    %3066 = vmatprep.subr.bf16.mxu0 %v1455
    %3067 = vmatpush1.bf16.msra.mxu0 %v1454
    %3068 = vmatprep.subr.bf16.mxu0 %v1464
    %3069 = vmatpush1.bf16.msra.mxu0 %v1463
    %3070 = vmatprep.subr.bf16.mxu0 %v1473
    %3071 = vmatpush1.bf16.msra.mxu0 %v1472
    %3072 = vmatprep.subr.bf16.mxu0 %v1482
    %3073 = vmatpush1.bf16.msra.mxu0 %v1481
    %3074 = vmatprep.subr.bf16.mxu0 %v1491
    %3075 = vmatpush1.bf16.msra.mxu0 %v1490
    %3076 = vmatprep.subr.bf16.mxu0 0
    %3077 = vmatpush1.bf16.msra.mxu0 0
    %3078 = vmatprep.subr.bf16.mxu0 0
    %3079 = vmatpush1.bf16.msra.mxu0 0
    %3080 = vmatprep.subr.bf16.mxu0 0
    %3081 = vmatpush1.bf16.msra.mxu0 0
    %3082 = vmatprep.subr.bf16.mxu0 0
    %3083 = vmatpush1.bf16.msra.mxu0 0
    %3084 = vmatprep.subr.bf16.mxu0 0
    %3085 = vmatpush1.bf16.msra.mxu0 0
    %3086 = vmatprep.subr.bf16.mxu0 0
    %3087 = vmatpush1.bf16.msra.mxu0 0
    %3088 = vmatprep.subr.bf16.mxu0 0
    %3089 = vmatpush1.bf16.msra.mxu0 0
    %3090 = vmatprep.subr.bf16.mxu0 0
    %3091 = vmatpush1.bf16.msra.mxu0 0
    %3092 = vmatprep.mubr.bf16.mxu0 0
    %3093 = vmatmul.mubr.bf16.gmra.mrb[0].mxu0 %v511
    %v3094 = vpop.f32.mrb[0].mxu0
    %v3095 = vadd.f32 %v2902, %v3094
    %v3096 = vpop.f32.mrb[0].mxu0
    %v3097 = vadd.f32 %v2904, %v3096
    %v3098 = vpop.f32.mrb[0].mxu0
    %v3099 = vadd.f32 %v2906, %v3098
    %v3100 = vpop.f32.mrb[0].mxu0
    %v3101 = vadd.f32 %v2908, %v3100
    %3102 = vmatprep.mubr.bf16.mxu0 0
    %3103 = vmatmul.mubr.bf16.gmra.mrb[0].mxu0 %v514
    %v3104 = vpop.f32.mrb[0].mxu0
    %v3105 = vadd.f32 %v2912, %v3104
    %v3106 = vpop.f32.mrb[0].mxu0
    %v3107 = vadd.f32 %v2914, %v3106
    %v3108 = vpop.f32.mrb[0].mxu0
    %v3109 = vadd.f32 %v2916, %v3108
    %v3110 = vpop.f32.mrb[0].mxu0
    %v3111 = vadd.f32 %v2918, %v3110
    %3112 = vmatprep.mubr.bf16.mxu0 0
    %3113 = vmatmul.mubr.bf16.gmra.mrb[0].mxu0 %v517
    %v3114 = vpop.f32.mrb[0].mxu0
    %v3115 = vadd.f32 %v2922, %v3114
    %v3116 = vpop.f32.mrb[0].mxu0
    %v3117 = vadd.f32 %v2924, %v3116
    %v3118 = vpop.f32.mrb[0].mxu0
    %v3119 = vadd.f32 %v2926, %v3118
    %v3120 = vpop.f32.mrb[0].mxu0
    %v3121 = vadd.f32 %v2928, %v3120
    %3122 = vmatprep.mubr.bf16.mxu0 0
    %3123 = vmatmul.mubr.bf16.gmra.mrb[0].mxu0 %v520
    %v3124 = vpop.f32.mrb[0].mxu0
    %v3125 = vadd.f32 %v2932, %v3124
    %v3126 = vpop.f32.mrb[0].mxu0
    %v3127 = vadd.f32 %v2934, %v3126
    %v3128 = vpop.f32.mrb[0].mxu0
    %v3129 = vadd.f32 %v2936, %v3128
    %v3130 = vpop.f32.mrb[0].mxu0
    %v3131 = vadd.f32 %v2938, %v3130
    %3132 = vmatprep.mubr.bf16.mxu0 0
    %3133 = vmatmul.mubr.bf16.gmra.mrb[0].mxu0 %v523
    %v3134 = vpop.f32.mrb[0].mxu0
    %v3135 = vadd.f32 %v2942, %v3134
    %v3136 = vpop.f32.mrb[0].mxu0
    %v3137 = vadd.f32 %v2944, %v3136
    %v3138 = vpop.f32.mrb[0].mxu0
    %v3139 = vadd.f32 %v2946, %v3138
    %v3140 = vpop.f32.mrb[0].mxu0
    %v3141 = vadd.f32 %v2948, %v3140
    %3142 = vmatprep.mubr.bf16.mxu0 0
    %3143 = vmatmul.mubr.bf16.gmra.mrb[0].mxu0 %v526
    %v3144 = vpop.f32.mrb[0].mxu0
    %v3145 = vadd.f32 %v2952, %v3144
    %v3146 = vpop.f32.mrb[0].mxu0
    %v3147 = vadd.f32 %v2954, %v3146
    %v3148 = vpop.f32.mrb[0].mxu0
    %v3149 = vadd.f32 %v2956, %v3148
    %v3150 = vpop.f32.mrb[0].mxu0
    %v3151 = vadd.f32 %v2958, %v3150
    %3152 = vmatprep.mubr.bf16.mxu0 0
    %3153 = vmatmul.mubr.bf16.gmra.mrb[0].mxu0 %v529
    %v3154 = vpop.f32.mrb[0].mxu0
    %v3155 = vadd.f32 %v2962, %v3154
    %v3156 = vpop.f32.mrb[0].mxu0
    %v3157 = vadd.f32 %v2964, %v3156
    %v3158 = vpop.f32.mrb[0].mxu0
    %v3159 = vadd.f32 %v2966, %v3158
    %v3160 = vpop.f32.mrb[0].mxu0
    %v3161 = vadd.f32 %v2968, %v3160
    %3162 = vmatprep.mubr.bf16.mxu0 0
    %3163 = vmatmul.mubr.bf16.gmra.mrb[0].mxu0 %v532
    %v3164 = vpop.f32.mrb[0].mxu0
    %v3165 = vadd.f32 %v2972, %v3164
    %v3166 = vpop.f32.mrb[0].mxu0
    %v3167 = vadd.f32 %v2974, %v3166
    %v3168 = vpop.f32.mrb[0].mxu0
    %v3169 = vadd.f32 %v2976, %v3168
    %v3170 = vpop.f32.mrb[0].mxu0
    %v3171 = vadd.f32 %v2978, %v3170
    %3172 = vmatprep.mubr.bf16.mxu0 0
    %3173 = vmatmul.mubr.bf16.gmra.mrb[0].mxu0 %v535
    %v3174 = vpop.f32.mrb[0].mxu0
    %v3175 = vadd.f32 %v2982, %v3174
    %v3176 = vpop.f32.mrb[0].mxu0
    %v3177 = vadd.f32 %v2984, %v3176
    %v3178 = vpop.f32.mrb[0].mxu0
    %v3179 = vadd.f32 %v2986, %v3178
    %v3180 = vpop.f32.mrb[0].mxu0
    %v3181 = vadd.f32 %v2988, %v3180
    %3182 = vmatprep.mubr.bf16.mxu0 0
    %3183 = vmatmul.mubr.bf16.gmra.mrb[0].mxu0 %v538
    %v3184 = vpop.f32.mrb[0].mxu0
    %v3185 = vadd.f32 %v2992, %v3184
    %v3186 = vpop.f32.mrb[0].mxu0
    %v3187 = vadd.f32 %v2994, %v3186
    %v3188 = vpop.f32.mrb[0].mxu0
    %v3189 = vadd.f32 %v2996, %v3188
    %v3190 = vpop.f32.mrb[0].mxu0
    %v3191 = vadd.f32 %v2998, %v3190
    %3192 = vmatprep.mubr.bf16.mxu0 0
    %3193 = vmatmul.mubr.bf16.gmra.mrb[0].mxu0 %v541
    %v3194 = vpop.f32.mrb[0].mxu0
    %v3195 = vadd.f32 %v3002, %v3194
    %v3196 = vpop.f32.mrb[0].mxu0
    %v3197 = vadd.f32 %v3004, %v3196
    %v3198 = vpop.f32.mrb[0].mxu0
    %v3199 = vadd.f32 %v3006, %v3198
    %v3200 = vpop.f32.mrb[0].mxu0
    %v3201 = vadd.f32 %v3008, %v3200
    %3202 = vmatprep.mubr.bf16.mxu0 0
    %3203 = vmatmul.mubr.bf16.gmra.mrb[0].mxu0 %v544
    %v3204 = vpop.f32.mrb[0].mxu0
    %v3205 = vadd.f32 %v3012, %v3204
    %v3206 = vpop.f32.mrb[0].mxu0
    %v3207 = vadd.f32 %v3014, %v3206
    %v3208 = vpop.f32.mrb[0].mxu0
    %v3209 = vadd.f32 %v3016, %v3208
    %v3210 = vpop.f32.mrb[0].mxu0
    %v3211 = vadd.f32 %v3018, %v3210
    %3212 = vmatprep.mubr.bf16.mxu0 0
    %3213 = vmatmul.mubr.bf16.gmra.mrb[0].mxu0 %v547
    %v3214 = vpop.f32.mrb[0].mxu0
    %v3215 = vadd.f32 %v3022, %v3214
    %v3216 = vpop.f32.mrb[0].mxu0
    %v3217 = vadd.f32 %v3024, %v3216
    %v3218 = vpop.f32.mrb[0].mxu0
    %v3219 = vadd.f32 %v3026, %v3218
    %v3220 = vpop.f32.mrb[0].mxu0
    %v3221 = vadd.f32 %v3028, %v3220
    %3222 = vmatprep.mubr.bf16.mxu0 0
    %3223 = vmatmul.mubr.bf16.gmra.mrb[0].mxu0 %v550
    %v3224 = vpop.f32.mrb[0].mxu0
    %v3225 = vadd.f32 %v3032, %v3224
    %v3226 = vpop.f32.mrb[0].mxu0
    %v3227 = vadd.f32 %v3034, %v3226
    %v3228 = vpop.f32.mrb[0].mxu0
    %v3229 = vadd.f32 %v3036, %v3228
    %v3230 = vpop.f32.mrb[0].mxu0
    %v3231 = vadd.f32 %v3038, %v3230
    %3232 = vmatprep.mubr.bf16.mxu0 0
    %3233 = vmatmul.mubr.bf16.gmra.mrb[0].mxu0 %v553
    %v3234 = vpop.f32.mrb[0].mxu0
    %v3235 = vadd.f32 %v3042, %v3234
    %v3236 = vpop.f32.mrb[0].mxu0
    %v3237 = vadd.f32 %v3044, %v3236
    %v3238 = vpop.f32.mrb[0].mxu0
    %v3239 = vadd.f32 %v3046, %v3238
    %v3240 = vpop.f32.mrb[0].mxu0
    %v3241 = vadd.f32 %v3048, %v3240
    %3242 = vmatprep.mubr.bf16.mxu0 0
    %3243 = vmatmul.mubr.bf16.gmra.mrb[0].mxu0 %v556
    %v3244 = vpop.f32.mrb[0].mxu0
    %v3245 = vadd.f32 %v3052, %v3244
    %v3246 = vpop.f32.mrb[0].mxu0
    %v3247 = vadd.f32 %v3054, %v3246
    %v3248 = vpop.f32.mrb[0].mxu0
    %v3249 = vadd.f32 %v3056, %v3248
    %v3250 = vpop.f32.mrb[0].mxu0
    %v3251 = vadd.f32 %v3058, %v3250
    %3252 = vdwg.mxu0
    %3253 = vmatprep.subr.bf16.mxu0 0
    %3254 = vmatpush1.bf16.msra.mxu0 %v1285
    %3255 = vmatprep.subr.bf16.mxu0 0
    %3256 = vmatpush1.bf16.msra.mxu0 %v1294
    %3257 = vmatprep.subr.bf16.mxu0 0
    %3258 = vmatpush1.bf16.msra.mxu0 %v1303
    %3259 = vmatprep.subr.bf16.mxu0 0
    %3260 = vmatpush1.bf16.msra.mxu0 %v1312
    %3261 = vmatprep.subr.bf16.mxu0 0
    %3262 = vmatpush1.bf16.msra.mxu0 %v1321
    %3263 = vmatprep.subr.bf16.mxu0 0
    %3264 = vmatpush1.bf16.msra.mxu0 %v1330
    %3265 = vmatprep.subr.bf16.mxu0 0
    %3266 = vmatpush1.bf16.msra.mxu0 %v1339
    %3267 = vmatprep.subr.bf16.mxu0 0
    %3268 = vmatpush1.bf16.msra.mxu0 %v1348
    %3269 = vmatprep.subr.bf16.mxu0 0
    %3270 = vmatpush1.bf16.msra.mxu0 %v1357
    %3271 = vmatprep.subr.bf16.mxu0 0
    %3272 = vmatpush1.bf16.msra.mxu0 %v1366
    %3273 = vmatprep.subr.bf16.mxu0 0
    %3274 = vmatpush1.bf16.msra.mxu0 %v1375
    %3275 = vmatprep.subr.bf16.mxu0 0
    %3276 = vmatpush1.bf16.msra.mxu0 %v1384
    %3277 = vmatprep.subr.bf16.mxu0 0
    %3278 = vmatpush1.bf16.msra.mxu0 %v1393
    %3279 = vmatprep.subr.bf16.mxu0 0
    %3280 = vmatpush1.bf16.msra.mxu0 %v1402
    %3281 = vmatprep.subr.bf16.mxu0 0
    %3282 = vmatpush1.bf16.msra.mxu0 %v1411
    %3283 = vmatprep.subr.bf16.mxu0 0
    %3284 = vmatpush1.bf16.msra.mxu0 %v1420
    %3285 = vmatprep.mubr.bf16.mxu0 %v510
    %3286 = vmatmul.mubr.bf16.gmra.mrb[0].mxu0 %v509
    %v3287 = vpop.f32.mrb[0].mxu0
    %v3288 = vadd.f32 0.0, %v3287
    %v3289 = vpop.f32.mrb[0].mxu0
    %v3290 = vpop.f32.mrb[0].mxu0
    %v3291 = vadd.f32 0.0, %v3290
    %v3292 = vpop.f32.mrb[0].mxu0
    %3293 = vmatprep.mubr.bf16.mxu0 %v513
    %3294 = vmatmul.mubr.bf16.gmra.mrb[0].mxu0 %v512
    %v3295 = vpop.f32.mrb[0].mxu0
    %v3296 = vadd.f32 0.0, %v3295
    %v3297 = vpop.f32.mrb[0].mxu0
    %v3298 = vpop.f32.mrb[0].mxu0
    %v3299 = vadd.f32 0.0, %v3298
    %v3300 = vpop.f32.mrb[0].mxu0
    %3301 = vmatprep.mubr.bf16.mxu0 %v516
    %3302 = vmatmul.mubr.bf16.gmra.mrb[0].mxu0 %v515
    %v3303 = vpop.f32.mrb[0].mxu0
    %v3304 = vadd.f32 0.0, %v3303
    %v3305 = vpop.f32.mrb[0].mxu0
    %v3306 = vpop.f32.mrb[0].mxu0
    %v3307 = vadd.f32 0.0, %v3306
    %v3308 = vpop.f32.mrb[0].mxu0
    %3309 = vmatprep.mubr.bf16.mxu0 %v519
    %3310 = vmatmul.mubr.bf16.gmra.mrb[0].mxu0 %v518
    %v3311 = vpop.f32.mrb[0].mxu0
    %v3312 = vadd.f32 0.0, %v3311
    %v3313 = vpop.f32.mrb[0].mxu0
    %v3314 = vpop.f32.mrb[0].mxu0
    %v3315 = vadd.f32 0.0, %v3314
    %v3316 = vpop.f32.mrb[0].mxu0
    %3317 = vmatprep.mubr.bf16.mxu0 %v522
    %3318 = vmatmul.mubr.bf16.gmra.mrb[0].mxu0 %v521
    %v3319 = vpop.f32.mrb[0].mxu0
    %v3320 = vadd.f32 0.0, %v3319
    %v3321 = vpop.f32.mrb[0].mxu0
    %v3322 = vpop.f32.mrb[0].mxu0
    %v3323 = vadd.f32 0.0, %v3322
    %v3324 = vpop.f32.mrb[0].mxu0
    %3325 = vmatprep.mubr.bf16.mxu0 %v525
    %3326 = vmatmul.mubr.bf16.gmra.mrb[0].mxu0 %v524
    %v3327 = vpop.f32.mrb[0].mxu0
    %v3328 = vadd.f32 0.0, %v3327
    %v3329 = vpop.f32.mrb[0].mxu0
    %v3330 = vpop.f32.mrb[0].mxu0
    %v3331 = vadd.f32 0.0, %v3330
    %v3332 = vpop.f32.mrb[0].mxu0
    %3333 = vmatprep.mubr.bf16.mxu0 %v528
    %3334 = vmatmul.mubr.bf16.gmra.mrb[0].mxu0 %v527
    %v3335 = vpop.f32.mrb[0].mxu0
    %v3336 = vadd.f32 0.0, %v3335
    %v3337 = vpop.f32.mrb[0].mxu0
    %v3338 = vpop.f32.mrb[0].mxu0
    %v3339 = vadd.f32 0.0, %v3338
    %v3340 = vpop.f32.mrb[0].mxu0
    %3341 = vmatprep.mubr.bf16.mxu0 %v531
    %3342 = vmatmul.mubr.bf16.gmra.mrb[0].mxu0 %v530
    %v3343 = vpop.f32.mrb[0].mxu0
    %v3344 = vadd.f32 0.0, %v3343
    %v3345 = vpop.f32.mrb[0].mxu0
    %v3346 = vpop.f32.mrb[0].mxu0
    %v3347 = vadd.f32 0.0, %v3346
    %v3348 = vpop.f32.mrb[0].mxu0
    %3349 = vmatprep.mubr.bf16.mxu0 %v534
    %3350 = vmatmul.mubr.bf16.gmra.mrb[0].mxu0 %v533
    %v3351 = vpop.f32.mrb[0].mxu0
    %v3352 = vadd.f32 0.0, %v3351
    %v3353 = vpop.f32.mrb[0].mxu0
    %v3354 = vpop.f32.mrb[0].mxu0
    %v3355 = vadd.f32 0.0, %v3354
    %v3356 = vpop.f32.mrb[0].mxu0
    %3357 = vmatprep.mubr.bf16.mxu0 %v537
    %3358 = vmatmul.mubr.bf16.gmra.mrb[0].mxu0 %v536
    %v3359 = vpop.f32.mrb[0].mxu0
    %v3360 = vadd.f32 0.0, %v3359
    %v3361 = vpop.f32.mrb[0].mxu0
    %v3362 = vpop.f32.mrb[0].mxu0
    %v3363 = vadd.f32 0.0, %v3362
    %v3364 = vpop.f32.mrb[0].mxu0
    %3365 = vmatprep.mubr.bf16.mxu0 %v540
    %3366 = vmatmul.mubr.bf16.gmra.mrb[0].mxu0 %v539
    %v3367 = vpop.f32.mrb[0].mxu0
    %v3368 = vadd.f32 0.0, %v3367
    %v3369 = vpop.f32.mrb[0].mxu0
    %v3370 = vpop.f32.mrb[0].mxu0
    %v3371 = vadd.f32 0.0, %v3370
    %v3372 = vpop.f32.mrb[0].mxu0
    %3373 = vmatprep.mubr.bf16.mxu0 %v543
    %3374 = vmatmul.mubr.bf16.gmra.mrb[0].mxu0 %v542
    %v3375 = vpop.f32.mrb[0].mxu0
    %v3376 = vadd.f32 0.0, %v3375
    %v3377 = vpop.f32.mrb[0].mxu0
    %v3378 = vpop.f32.mrb[0].mxu0
    %v3379 = vadd.f32 0.0, %v3378
    %v3380 = vpop.f32.mrb[0].mxu0
    %3381 = vmatprep.mubr.bf16.mxu0 %v546
    %3382 = vmatmul.mubr.bf16.gmra.mrb[0].mxu0 %v545
    %v3383 = vpop.f32.mrb[0].mxu0
    %v3384 = vadd.f32 0.0, %v3383
    %v3385 = vpop.f32.mrb[0].mxu0
    %v3386 = vpop.f32.mrb[0].mxu0
    %v3387 = vadd.f32 0.0, %v3386
    %v3388 = vpop.f32.mrb[0].mxu0
    %3389 = vmatprep.mubr.bf16.mxu0 %v549
    %3390 = vmatmul.mubr.bf16.gmra.mrb[0].mxu0 %v548
    %v3391 = vpop.f32.mrb[0].mxu0
    %v3392 = vadd.f32 0.0, %v3391
    %v3393 = vpop.f32.mrb[0].mxu0
    %v3394 = vpop.f32.mrb[0].mxu0
    %v3395 = vadd.f32 0.0, %v3394
    %v3396 = vpop.f32.mrb[0].mxu0
    %3397 = vmatprep.mubr.bf16.mxu0 %v552
    %3398 = vmatmul.mubr.bf16.gmra.mrb[0].mxu0 %v551
    %v3399 = vpop.f32.mrb[0].mxu0
    %v3400 = vadd.f32 0.0, %v3399
    %v3401 = vpop.f32.mrb[0].mxu0
    %v3402 = vpop.f32.mrb[0].mxu0
    %v3403 = vadd.f32 0.0, %v3402
    %v3404 = vpop.f32.mrb[0].mxu0
    %3405 = vmatprep.mubr.bf16.mxu0 %v555
    %3406 = vmatmul.mubr.bf16.gmra.mrb[0].mxu0 %v554
    %v3407 = vpop.f32.mrb[0].mxu0
    %v3408 = vadd.f32 0.0, %v3407
    %v3409 = vpop.f32.mrb[0].mxu0
    %v3410 = vpop.f32.mrb[0].mxu0
    %v3411 = vadd.f32 0.0, %v3410
    %v3412 = vpop.f32.mrb[0].mxu0
    %3413 = vdwg.mxu0
    %3414 = vmatprep.subr.bf16.mxu0 0
    %3415 = vmatpush1.bf16.msra.mxu0 %v1429
    %3416 = vmatprep.subr.bf16.mxu0 0
    %3417 = vmatpush1.bf16.msra.mxu0 %v1438
    %3418 = vmatprep.subr.bf16.mxu0 0
    %3419 = vmatpush1.bf16.msra.mxu0 %v1447
    %3420 = vmatprep.subr.bf16.mxu0 0
    %3421 = vmatpush1.bf16.msra.mxu0 %v1456
    %3422 = vmatprep.subr.bf16.mxu0 0
    %3423 = vmatpush1.bf16.msra.mxu0 %v1465
    %3424 = vmatprep.subr.bf16.mxu0 0
    %3425 = vmatpush1.bf16.msra.mxu0 %v1474
    %3426 = vmatprep.subr.bf16.mxu0 0
    %3427 = vmatpush1.bf16.msra.mxu0 %v1483
    %3428 = vmatprep.subr.bf16.mxu0 0
    %3429 = vmatpush1.bf16.msra.mxu0 %v1492
    %3430 = vmatprep.subr.bf16.mxu0 0
    %3431 = vmatpush1.bf16.msra.mxu0 0
    %3432 = vmatprep.subr.bf16.mxu0 0
    %3433 = vmatpush1.bf16.msra.mxu0 0
    %3434 = vmatprep.subr.bf16.mxu0 0
    %3435 = vmatpush1.bf16.msra.mxu0 0
    %3436 = vmatprep.subr.bf16.mxu0 0
    %3437 = vmatpush1.bf16.msra.mxu0 0
    %3438 = vmatprep.subr.bf16.mxu0 0
    %3439 = vmatpush1.bf16.msra.mxu0 0
    %3440 = vmatprep.subr.bf16.mxu0 0
    %3441 = vmatpush1.bf16.msra.mxu0 0
    %3442 = vmatprep.subr.bf16.mxu0 0
    %3443 = vmatpush1.bf16.msra.mxu0 0
    %3444 = vmatprep.subr.bf16.mxu0 0
    %3445 = vmatpush1.bf16.msra.mxu0 0
    %3446 = vmatprep.mubr.bf16.mxu0 0
    %3447 = vmatmul.mubr.bf16.gmra.mrb[0].mxu0 %v511
    %v3448 = vpop.f32.mrb[0].mxu0
    %v3449 = vadd.f32 %v3288, %v3448
    %v3450 = vpop.f32.mrb[0].mxu0
    %v3451 = vpop.f32.mrb[0].mxu0
    %v3452 = vadd.f32 %v3291, %v3451
    %v3453 = vpop.f32.mrb[0].mxu0
    %3454 = vmatprep.mubr.bf16.mxu0 0
    %3455 = vmatmul.mubr.bf16.gmra.mrb[0].mxu0 %v514
    %v3456 = vpop.f32.mrb[0].mxu0
    %v3457 = vadd.f32 %v3296, %v3456
    %v3458 = vpop.f32.mrb[0].mxu0
    %v3459 = vpop.f32.mrb[0].mxu0
    %v3460 = vadd.f32 %v3299, %v3459
    %v3461 = vpop.f32.mrb[0].mxu0
    %3462 = vmatprep.mubr.bf16.mxu0 0
    %3463 = vmatmul.mubr.bf16.gmra.mrb[0].mxu0 %v517
    %v3464 = vpop.f32.mrb[0].mxu0
    %v3465 = vadd.f32 %v3304, %v3464
    %v3466 = vpop.f32.mrb[0].mxu0
    %v3467 = vpop.f32.mrb[0].mxu0
    %v3468 = vadd.f32 %v3307, %v3467
    %v3469 = vpop.f32.mrb[0].mxu0
    %3470 = vmatprep.mubr.bf16.mxu0 0
    %3471 = vmatmul.mubr.bf16.gmra.mrb[0].mxu0 %v520
    %v3472 = vpop.f32.mrb[0].mxu0
    %v3473 = vadd.f32 %v3312, %v3472
    %v3474 = vpop.f32.mrb[0].mxu0
    %v3475 = vpop.f32.mrb[0].mxu0
    %v3476 = vadd.f32 %v3315, %v3475
    %v3477 = vpop.f32.mrb[0].mxu0
    %3478 = vmatprep.mubr.bf16.mxu0 0
    %3479 = vmatmul.mubr.bf16.gmra.mrb[0].mxu0 %v523
    %v3480 = vpop.f32.mrb[0].mxu0
    %v3481 = vadd.f32 %v3320, %v3480
    %v3482 = vpop.f32.mrb[0].mxu0
    %v3483 = vpop.f32.mrb[0].mxu0
    %v3484 = vadd.f32 %v3323, %v3483
    %v3485 = vpop.f32.mrb[0].mxu0
    %3486 = vmatprep.mubr.bf16.mxu0 0
    %3487 = vmatmul.mubr.bf16.gmra.mrb[0].mxu0 %v526
    %v3488 = vpop.f32.mrb[0].mxu0
    %v3489 = vadd.f32 %v3328, %v3488
    %v3490 = vpop.f32.mrb[0].mxu0
    %v3491 = vpop.f32.mrb[0].mxu0
    %v3492 = vadd.f32 %v3331, %v3491
    %v3493 = vpop.f32.mrb[0].mxu0
    %3494 = vmatprep.mubr.bf16.mxu0 0
    %3495 = vmatmul.mubr.bf16.gmra.mrb[0].mxu0 %v529
    %v3496 = vpop.f32.mrb[0].mxu0
    %v3497 = vadd.f32 %v3336, %v3496
    %v3498 = vpop.f32.mrb[0].mxu0
    %v3499 = vpop.f32.mrb[0].mxu0
    %v3500 = vadd.f32 %v3339, %v3499
    %v3501 = vpop.f32.mrb[0].mxu0
    %3502 = vmatprep.mubr.bf16.mxu0 0
    %3503 = vmatmul.mubr.bf16.gmra.mrb[0].mxu0 %v532
    %v3504 = vpop.f32.mrb[0].mxu0
    %v3505 = vadd.f32 %v3344, %v3504
    %v3506 = vpop.f32.mrb[0].mxu0
    %v3507 = vpop.f32.mrb[0].mxu0
    %v3508 = vadd.f32 %v3347, %v3507
    %v3509 = vpop.f32.mrb[0].mxu0
    %3510 = vmatprep.mubr.bf16.mxu0 0
    %3511 = vmatmul.mubr.bf16.gmra.mrb[0].mxu0 %v535
    %v3512 = vpop.f32.mrb[0].mxu0
    %v3513 = vadd.f32 %v3352, %v3512
    %v3514 = vpop.f32.mrb[0].mxu0
    %v3515 = vpop.f32.mrb[0].mxu0
    %v3516 = vadd.f32 %v3355, %v3515
    %v3517 = vpop.f32.mrb[0].mxu0
    %3518 = vmatprep.mubr.bf16.mxu0 0
    %3519 = vmatmul.mubr.bf16.gmra.mrb[0].mxu0 %v538
    %v3520 = vpop.f32.mrb[0].mxu0
    %v3521 = vadd.f32 %v3360, %v3520
    %v3522 = vpop.f32.mrb[0].mxu0
    %v3523 = vpop.f32.mrb[0].mxu0
    %v3524 = vadd.f32 %v3363, %v3523
    %v3525 = vpop.f32.mrb[0].mxu0
    %3526 = vmatprep.mubr.bf16.mxu0 0
    %3527 = vmatmul.mubr.bf16.gmra.mrb[0].mxu0 %v541
    %v3528 = vpop.f32.mrb[0].mxu0
    %v3529 = vadd.f32 %v3368, %v3528
    %v3530 = vpop.f32.mrb[0].mxu0
    %v3531 = vpop.f32.mrb[0].mxu0
    %v3532 = vadd.f32 %v3371, %v3531
    %v3533 = vpop.f32.mrb[0].mxu0
    %3534 = vmatprep.mubr.bf16.mxu0 0
    %3535 = vmatmul.mubr.bf16.gmra.mrb[0].mxu0 %v544
    %v3536 = vpop.f32.mrb[0].mxu0
    %v3537 = vadd.f32 %v3376, %v3536
    %v3538 = vpop.f32.mrb[0].mxu0
    %v3539 = vpop.f32.mrb[0].mxu0
    %v3540 = vadd.f32 %v3379, %v3539
    %v3541 = vpop.f32.mrb[0].mxu0
    %3542 = vmatprep.mubr.bf16.mxu0 0
    %3543 = vmatmul.mubr.bf16.gmra.mrb[0].mxu0 %v547
    %v3544 = vpop.f32.mrb[0].mxu0
    %v3545 = vadd.f32 %v3384, %v3544
    %v3546 = vpop.f32.mrb[0].mxu0
    %v3547 = vpop.f32.mrb[0].mxu0
    %v3548 = vadd.f32 %v3387, %v3547
    %v3549 = vpop.f32.mrb[0].mxu0
    %3550 = vmatprep.mubr.bf16.mxu0 0
    %3551 = vmatmul.mubr.bf16.gmra.mrb[0].mxu0 %v550
    %v3552 = vpop.f32.mrb[0].mxu0
    %v3553 = vadd.f32 %v3392, %v3552
    %v3554 = vpop.f32.mrb[0].mxu0
    %v3555 = vpop.f32.mrb[0].mxu0
    %v3556 = vadd.f32 %v3395, %v3555
    %v3557 = vpop.f32.mrb[0].mxu0
    %3558 = vmatprep.mubr.bf16.mxu0 0
    %3559 = vmatmul.mubr.bf16.gmra.mrb[0].mxu0 %v553
    %v3560 = vpop.f32.mrb[0].mxu0
    %v3561 = vadd.f32 %v3400, %v3560
    %v3562 = vpop.f32.mrb[0].mxu0
    %v3563 = vpop.f32.mrb[0].mxu0
    %v3564 = vadd.f32 %v3403, %v3563
    %v3565 = vpop.f32.mrb[0].mxu0
    %3566 = vmatprep.mubr.bf16.mxu0 0
    %3567 = vmatmul.mubr.bf16.gmra.mrb[0].mxu0 %v556
    %v3568 = vpop.f32.mrb[0].mxu0
    %v3569 = vadd.f32 %v3408, %v3568
    %v3570 = vpop.f32.mrb[0].mxu0
    %v3571 = vpop.f32.mrb[0].mxu0
    %v3572 = vadd.f32 %v3411, %v3571
    %v3573 = vpop.f32.mrb[0].mxu0
    %3574 = vdwg.mxu0
    %v3575 = vpack.c.bf16 %v1941, %v1937
    %v3576 = vpack.c.bf16 %v1943, %v1939
    %v3577 = vpack.c.bf16 %v2327, %v2323
    %v3578 = vpack.c.bf16 %v1951, %v1947
    %v3579 = vpack.c.bf16 %v1953, %v1949
    %v3580 = vpack.c.bf16 %v2337, %v2333
    %v3581 = vpack.c.bf16 %v1961, %v1957
    %v3582 = vpack.c.bf16 %v1963, %v1959
    %v3583 = vpack.c.bf16 %v2347, %v2343
    %v3584 = vpack.c.bf16 %v1971, %v1967
    %v3585 = vpack.c.bf16 %v1973, %v1969
    %v3586 = vpack.c.bf16 %v2357, %v2353
    %v3587 = vpack.c.bf16 %v1981, %v1977
    %v3588 = vpack.c.bf16 %v1983, %v1979
    %v3589 = vpack.c.bf16 %v2367, %v2363
    %v3590 = vpack.c.bf16 %v1991, %v1987
    %v3591 = vpack.c.bf16 %v1993, %v1989
    %v3592 = vpack.c.bf16 %v2377, %v2373
    %v3593 = vpack.c.bf16 %v2001, %v1997
    %v3594 = vpack.c.bf16 %v2003, %v1999
    %v3595 = vpack.c.bf16 %v2387, %v2383
    %v3596 = vpack.c.bf16 %v2011, %v2007
    %v3597 = vpack.c.bf16 %v2013, %v2009
    %v3598 = vpack.c.bf16 %v2397, %v2393
    %v3599 = vpack.c.bf16 %v2021, %v2017
    %v3600 = vpack.c.bf16 %v2023, %v2019
    %v3601 = vpack.c.bf16 %v2407, %v2403
    %v3602 = vpack.c.bf16 %v2031, %v2027
    %v3603 = vpack.c.bf16 %v2033, %v2029
    %v3604 = vpack.c.bf16 %v2417, %v2413
    %v3605 = vpack.c.bf16 %v2041, %v2037
    %v3606 = vpack.c.bf16 %v2043, %v2039
    %v3607 = vpack.c.bf16 %v2427, %v2423
    %v3608 = vpack.c.bf16 %v2051, %v2047
    %v3609 = vpack.c.bf16 %v2053, %v2049
    %v3610 = vpack.c.bf16 %v2437, %v2433
    %v3611 = vpack.c.bf16 %v2061, %v2057
    %v3612 = vpack.c.bf16 %v2063, %v2059
    %v3613 = vpack.c.bf16 %v2447, %v2443
    %v3614 = vpack.c.bf16 %v2071, %v2067
    %v3615 = vpack.c.bf16 %v2073, %v2069
    %v3616 = vpack.c.bf16 %v2457, %v2453
    %v3617 = vpack.c.bf16 %v2081, %v2077
    %v3618 = vpack.c.bf16 %v2083, %v2079
    %v3619 = vpack.c.bf16 %v2467, %v2463
    %v3620 = vpack.c.bf16 %v2091, %v2087
    %v3621 = vpack.c.bf16 %v2093, %v2089
    %v3622 = vpack.c.bf16 %v2477, %v2473
    %v3671 = vunpack.c.l.b16 %v3575
    %v3672 = vunpack.c.l.b16 %v3576
    %v3673 = vunpack.c.l.b16 %v3577
    %v3674 = vunpack.c.h.b16 %v3575
    %v3675 = vunpack.c.h.b16 %v3576
    %v3676 = vunpack.c.h.b16 %v3577
    %v3677 = vunpack.c.l.b16 %v3578
    %v3678 = vunpack.c.l.b16 %v3579
    %v3679 = vunpack.c.l.b16 %v3580
    %v3680 = vunpack.c.h.b16 %v3578
    %v3681 = vunpack.c.h.b16 %v3579
    %v3682 = vunpack.c.h.b16 %v3580
    %v3683 = vunpack.c.l.b16 %v3581
    %v3684 = vunpack.c.l.b16 %v3582
    %v3685 = vunpack.c.l.b16 %v3583
    %v3686 = vunpack.c.h.b16 %v3581
    %v3687 = vunpack.c.h.b16 %v3582
    %v3688 = vunpack.c.h.b16 %v3583
    %v3689 = vunpack.c.l.b16 %v3584
    %v3690 = vunpack.c.l.b16 %v3585
    %v3691 = vunpack.c.l.b16 %v3586
    %v3692 = vunpack.c.h.b16 %v3584
    %v3693 = vunpack.c.h.b16 %v3585
    %v3694 = vunpack.c.h.b16 %v3586
    %v3695 = vunpack.c.l.b16 %v3587
    %v3696 = vunpack.c.l.b16 %v3588
    %v3697 = vunpack.c.l.b16 %v3589
    %v3698 = vunpack.c.h.b16 %v3587
    %v3699 = vunpack.c.h.b16 %v3588
    %v3700 = vunpack.c.h.b16 %v3589
    %v3701 = vunpack.c.l.b16 %v3590
    %v3702 = vunpack.c.l.b16 %v3591
    %v3703 = vunpack.c.l.b16 %v3592
    %v3704 = vunpack.c.h.b16 %v3590
    %v3705 = vunpack.c.h.b16 %v3591
    %v3706 = vunpack.c.h.b16 %v3592
    %v3707 = vunpack.c.l.b16 %v3593
    %v3708 = vunpack.c.l.b16 %v3594
    %v3709 = vunpack.c.l.b16 %v3595
    %v3710 = vunpack.c.h.b16 %v3593
    %v3711 = vunpack.c.h.b16 %v3594
    %v3712 = vunpack.c.h.b16 %v3595
    %v3713 = vunpack.c.l.b16 %v3596
    %v3714 = vunpack.c.l.b16 %v3597
    %v3715 = vunpack.c.l.b16 %v3598
    %v3716 = vunpack.c.h.b16 %v3596
    %v3717 = vunpack.c.h.b16 %v3597
    %v3718 = vunpack.c.h.b16 %v3598
    %v3719 = vunpack.c.l.b16 %v3599
    %v3720 = vunpack.c.l.b16 %v3600
    %v3721 = vunpack.c.l.b16 %v3601
    %v3722 = vunpack.c.h.b16 %v3599
    %v3723 = vunpack.c.h.b16 %v3600
    %v3724 = vunpack.c.h.b16 %v3601
    %v3725 = vunpack.c.l.b16 %v3602
    %v3726 = vunpack.c.l.b16 %v3603
    %v3727 = vunpack.c.l.b16 %v3604
    %v3728 = vunpack.c.h.b16 %v3602
    %v3729 = vunpack.c.h.b16 %v3603
    %v3730 = vunpack.c.h.b16 %v3604
    %v3731 = vunpack.c.l.b16 %v3605
    %v3732 = vunpack.c.l.b16 %v3606
    %v3733 = vunpack.c.l.b16 %v3607
    %v3734 = vunpack.c.h.b16 %v3605
    %v3735 = vunpack.c.h.b16 %v3606
    %v3736 = vunpack.c.h.b16 %v3607
    %v3737 = vunpack.c.l.b16 %v3608
    %v3738 = vunpack.c.l.b16 %v3609
    %v3739 = vunpack.c.l.b16 %v3610
    %v3740 = vunpack.c.h.b16 %v3608
    %v3741 = vunpack.c.h.b16 %v3609
    %v3742 = vunpack.c.h.b16 %v3610
    %v3743 = vunpack.c.l.b16 %v3611
    %v3744 = vunpack.c.l.b16 %v3612
    %v3745 = vunpack.c.l.b16 %v3613
    %v3746 = vunpack.c.h.b16 %v3611
    %v3747 = vunpack.c.h.b16 %v3612
    %v3748 = vunpack.c.h.b16 %v3613
    %v3749 = vunpack.c.l.b16 %v3614
    %v3750 = vunpack.c.l.b16 %v3615
    %v3751 = vunpack.c.l.b16 %v3616
    %v3752 = vunpack.c.h.b16 %v3614
    %v3753 = vunpack.c.h.b16 %v3615
    %v3754 = vunpack.c.h.b16 %v3616
    %v3755 = vunpack.c.l.b16 %v3617
    %v3756 = vunpack.c.l.b16 %v3618
    %v3757 = vunpack.c.l.b16 %v3619
    %v3758 = vunpack.c.h.b16 %v3617
    %v3759 = vunpack.c.h.b16 %v3618
    %v3760 = vunpack.c.h.b16 %v3619
    %v3761 = vunpack.c.l.b16 %v3620
    %v3762 = vunpack.c.l.b16 %v3621
    %v3763 = vunpack.c.l.b16 %v3622
    %v3764 = vunpack.c.h.b16 %v3620
    %v3765 = vunpack.c.h.b16 %v3621
    %v3766 = vunpack.c.h.b16 %v3622
    %v3767 = vpack.c.b16 %v3672, %v3671
    %v3768 = vpack.c.b16 %v3673, %v3673
    %v3769 = vpack.c.b16 %v3675, %v3674
    %v3770 = vpack.c.b16 %v3676, %v3676
    %v3771 = vpack.c.b16 %v3678, %v3677
    %v3772 = vpack.c.b16 %v3679, %v3679
    %v3773 = vpack.c.b16 %v3681, %v3680
    %v3774 = vpack.c.b16 %v3682, %v3682
    %v3775 = vpack.c.b16 %v3684, %v3683
    %v3776 = vpack.c.b16 %v3685, %v3685
    %v3777 = vpack.c.b16 %v3687, %v3686
    %v3778 = vpack.c.b16 %v3688, %v3688
    %v3779 = vpack.c.b16 %v3690, %v3689
    %v3780 = vpack.c.b16 %v3691, %v3691
    %v3781 = vpack.c.b16 %v3693, %v3692
    %v3782 = vpack.c.b16 %v3694, %v3694
    %v3783 = vpack.c.b16 %v3696, %v3695
    %v3784 = vpack.c.b16 %v3697, %v3697
    %v3785 = vpack.c.b16 %v3699, %v3698
    %v3786 = vpack.c.b16 %v3700, %v3700
    %v3787 = vpack.c.b16 %v3702, %v3701
    %v3788 = vpack.c.b16 %v3703, %v3703
    %v3789 = vpack.c.b16 %v3705, %v3704
    %v3790 = vpack.c.b16 %v3706, %v3706
    %v3791 = vpack.c.b16 %v3708, %v3707
    %v3792 = vpack.c.b16 %v3709, %v3709
    %v3793 = vpack.c.b16 %v3711, %v3710
    %v3794 = vpack.c.b16 %v3712, %v3712
    %v3795 = vpack.c.b16 %v3714, %v3713
    %v3796 = vpack.c.b16 %v3715, %v3715
    %v3797 = vpack.c.b16 %v3717, %v3716
    %v3798 = vpack.c.b16 %v3718, %v3718
    %v3799 = vpack.c.b16 %v3720, %v3719
    %v3800 = vpack.c.b16 %v3721, %v3721
    %v3801 = vpack.c.b16 %v3723, %v3722
    %v3802 = vpack.c.b16 %v3724, %v3724
    %v3803 = vpack.c.b16 %v3726, %v3725
    %v3804 = vpack.c.b16 %v3727, %v3727
    %v3805 = vpack.c.b16 %v3729, %v3728
    %v3806 = vpack.c.b16 %v3730, %v3730
    %v3807 = vpack.c.b16 %v3732, %v3731
    %v3808 = vpack.c.b16 %v3733, %v3733
    %v3809 = vpack.c.b16 %v3735, %v3734
    %v3810 = vpack.c.b16 %v3736, %v3736
    %v3811 = vpack.c.b16 %v3738, %v3737
    %v3812 = vpack.c.b16 %v3739, %v3739
    %v3813 = vpack.c.b16 %v3741, %v3740
    %v3814 = vpack.c.b16 %v3742, %v3742
    %v3815 = vpack.c.b16 %v3744, %v3743
    %v3816 = vpack.c.b16 %v3745, %v3745
    %v3817 = vpack.c.b16 %v3747, %v3746
    %v3818 = vpack.c.b16 %v3748, %v3748
    %v3819 = vpack.c.b16 %v3750, %v3749
    %v3820 = vpack.c.b16 %v3751, %v3751
    %v3821 = vpack.c.b16 %v3753, %v3752
    %v3822 = vpack.c.b16 %v3754, %v3754
    %v3823 = vpack.c.b16 %v3756, %v3755
    %v3824 = vpack.c.b16 %v3757, %v3757
    %v3825 = vpack.c.b16 %v3759, %v3758
    %v3826 = vpack.c.b16 %v3760, %v3760
    %v3827 = vpack.c.b16 %v3762, %v3761
    %v3828 = vpack.c.b16 %v3763, %v3763
    %v3829 = vpack.c.b16 %v3765, %v3764
    %v3830 = vpack.c.b16 %v3766, %v3766
    %3895 = vst [vmem:[#allocation7] sm:$0xff] %v3767
    %3896 = vst [vmem:[#allocation7 + $0x8] sm:$0xf] %v3768
    %3897 = vst [vmem:[#allocation7 + $0xc] sm:$0xff] %v3769
    %3898 = vst [vmem:[#allocation7 + $0x14] sm:$0xf] %v3770
    %3899 = vst [vmem:[#allocation7 + $0x18] sm:$0xff] %v3771
    %3900 = vst [vmem:[#allocation7 + $0x20] sm:$0xf] %v3772
    %3901 = vst [vmem:[#allocation7 + $0x24] sm:$0xff] %v3773
    %3902 = vst [vmem:[#allocation7 + $0x2c] sm:$0xf] %v3774
    %3903 = vst [vmem:[#allocation7 + $0x30] sm:$0xff] %v3775
    %3904 = vst [vmem:[#allocation7 + $0x38] sm:$0xf] %v3776
    %3905 = vst [vmem:[#allocation7 + $0x3c] sm:$0xff] %v3777
    %3906 = vst [vmem:[#allocation7 + $0x44] sm:$0xf] %v3778
    %3907 = vst [vmem:[#allocation7 + $0x48] sm:$0xff] %v3779
    %3908 = vst [vmem:[#allocation7 + $0x50] sm:$0xf] %v3780
    %3909 = vst [vmem:[#allocation7 + $0x54] sm:$0xff] %v3781
    %3910 = vst [vmem:[#allocation7 + $0x5c] sm:$0xf] %v3782
    %3911 = vst [vmem:[#allocation7 + $0x60] sm:$0xff] %v3783
    %3912 = vst [vmem:[#allocation7 + $0x68] sm:$0xf] %v3784
    %3913 = vst [vmem:[#allocation7 + $0x6c] sm:$0xff] %v3785
    %3914 = vst [vmem:[#allocation7 + $0x74] sm:$0xf] %v3786
    %3915 = vst [vmem:[#allocation7 + $0x78] sm:$0xff] %v3787
    %3916 = vst [vmem:[#allocation7 + $0x80] sm:$0xf] %v3788
    %3917 = vst [vmem:[#allocation7 + $0x84] sm:$0xff] %v3789
    %3918 = vst [vmem:[#allocation7 + $0x8c] sm:$0xf] %v3790
    %3919 = vst [vmem:[#allocation7 + $0x90] sm:$0xff] %v3791
    %3920 = vst [vmem:[#allocation7 + $0x98] sm:$0xf] %v3792
    %3921 = vst [vmem:[#allocation7 + $0x9c] sm:$0xff] %v3793
    %3922 = vst [vmem:[#allocation7 + $0xa4] sm:$0xf] %v3794
    %3923 = vst [vmem:[#allocation7 + $0xa8] sm:$0xff] %v3795
    %3924 = vst [vmem:[#allocation7 + $0xb0] sm:$0xf] %v3796
    %3925 = vst [vmem:[#allocation7 + $0xb4] sm:$0xff] %v3797
    %3926 = vst [vmem:[#allocation7 + $0xbc] sm:$0xf] %v3798
    %3927 = vst [vmem:[#allocation7 + $0xc0] sm:$0xff] %v3799
    %3928 = vst [vmem:[#allocation7 + $0xc8] sm:$0xf] %v3800
    %3929 = vst [vmem:[#allocation7 + $0xcc] sm:$0xff] %v3801
    %3930 = vst [vmem:[#allocation7 + $0xd4] sm:$0xf] %v3802
    %3931 = vst [vmem:[#allocation7 + $0xd8] sm:$0xff] %v3803
    %3932 = vst [vmem:[#allocation7 + $0xe0] sm:$0xf] %v3804
    %3933 = vst [vmem:[#allocation7 + $0xe4] sm:$0xff] %v3805
    %3934 = vst [vmem:[#allocation7 + $0xec] sm:$0xf] %v3806
    %3935 = vst [vmem:[#allocation7 + $0xf0] sm:$0xff] %v3807
    %3936 = vst [vmem:[#allocation7 + $0xf8] sm:$0xf] %v3808
    %3937 = vst [vmem:[#allocation7 + $0xfc] sm:$0xff] %v3809
    %3938 = vst [vmem:[#allocation7 + $0x104] sm:$0xf] %v3810
    %3939 = vst [vmem:[#allocation7 + $0x108] sm:$0xff] %v3811
    %3940 = vst [vmem:[#allocation7 + $0x110] sm:$0xf] %v3812
    %3941 = vst [vmem:[#allocation7 + $0x114] sm:$0xff] %v3813
    %3942 = vst [vmem:[#allocation7 + $0x11c] sm:$0xf] %v3814
    %3943 = vst [vmem:[#allocation7 + $0x120] sm:$0xff] %v3815
    %3944 = vst [vmem:[#allocation7 + $0x128] sm:$0xf] %v3816
    %3945 = vst [vmem:[#allocation7 + $0x12c] sm:$0xff] %v3817
    %3946 = vst [vmem:[#allocation7 + $0x134] sm:$0xf] %v3818
    %3947 = vst [vmem:[#allocation7 + $0x138] sm:$0xff] %v3819
    %3948 = vst [vmem:[#allocation7 + $0x140] sm:$0xf] %v3820
    %3949 = vst [vmem:[#allocation7 + $0x144] sm:$0xff] %v3821
    %3950 = vst [vmem:[#allocation7 + $0x14c] sm:$0xf] %v3822
    %3951 = vst [vmem:[#allocation7 + $0x150] sm:$0xff] %v3823
    %3952 = vst [vmem:[#allocation7 + $0x158] sm:$0xf] %v3824
    %3953 = vst [vmem:[#allocation7 + $0x15c] sm:$0xff] %v3825
    %3954 = vst [vmem:[#allocation7 + $0x164] sm:$0xf] %v3826
    %3955 = vst [vmem:[#allocation7 + $0x168] sm:$0xff] %v3827
    %3956 = vst [vmem:[#allocation7 + $0x170] sm:$0xf] %v3828
    %3957 = vst [vmem:[#allocation7 + $0x174] sm:$0xff] %v3829
    %3958 = vst [vmem:[#allocation7 + $0x17c] sm:$0xf] %v3830
    %v3959 = vpack.c.bf16 %v2329, %v2325
    %v3960 = vpack.c.bf16 %v2713, %v2709
    %v3961 = vpack.c.bf16 %v2715, %v2711
    %v3962 = vpack.c.bf16 %v2339, %v2335
    %v3963 = vpack.c.bf16 %v2723, %v2719
    %v3964 = vpack.c.bf16 %v2725, %v2721
    %v3965 = vpack.c.bf16 %v2349, %v2345
    %v3966 = vpack.c.bf16 %v2733, %v2729
    %v3967 = vpack.c.bf16 %v2735, %v2731
    %v3968 = vpack.c.bf16 %v2359, %v2355
    %v3969 = vpack.c.bf16 %v2743, %v2739
    %v3970 = vpack.c.bf16 %v2745, %v2741
    %v3971 = vpack.c.bf16 %v2369, %v2365
    %v3972 = vpack.c.bf16 %v2753, %v2749
    %v3973 = vpack.c.bf16 %v2755, %v2751
    %v3974 = vpack.c.bf16 %v2379, %v2375
    %v3975 = vpack.c.bf16 %v2763, %v2759
    %v3976 = vpack.c.bf16 %v2765, %v2761
    %v3977 = vpack.c.bf16 %v2389, %v2385
    %v3978 = vpack.c.bf16 %v2773, %v2769
    %v3979 = vpack.c.bf16 %v2775, %v2771
    %v3980 = vpack.c.bf16 %v2399, %v2395
    %v3981 = vpack.c.bf16 %v2783, %v2779
    %v3982 = vpack.c.bf16 %v2785, %v2781
    %v3983 = vpack.c.bf16 %v2409, %v2405
    %v3984 = vpack.c.bf16 %v2793, %v2789
    %v3985 = vpack.c.bf16 %v2795, %v2791
    %v3986 = vpack.c.bf16 %v2419, %v2415
    %v3987 = vpack.c.bf16 %v2803, %v2799
    %v3988 = vpack.c.bf16 %v2805, %v2801
    %v3989 = vpack.c.bf16 %v2429, %v2425
    %v3990 = vpack.c.bf16 %v2813, %v2809
    %v3991 = vpack.c.bf16 %v2815, %v2811
    %v3992 = vpack.c.bf16 %v2439, %v2435
    %v3993 = vpack.c.bf16 %v2823, %v2819
    %v3994 = vpack.c.bf16 %v2825, %v2821
    %v3995 = vpack.c.bf16 %v2449, %v2445
    %v3996 = vpack.c.bf16 %v2833, %v2829
    %v3997 = vpack.c.bf16 %v2835, %v2831
    %v3998 = vpack.c.bf16 %v2459, %v2455
    %v3999 = vpack.c.bf16 %v2843, %v2839
    %v4000 = vpack.c.bf16 %v2845, %v2841
    %v4001 = vpack.c.bf16 %v2469, %v2465
    %v4002 = vpack.c.bf16 %v2853, %v2849
    %v4003 = vpack.c.bf16 %v2855, %v2851
    %v4004 = vpack.c.bf16 %v2479, %v2475
    %v4005 = vpack.c.bf16 %v2863, %v2859
    %v4006 = vpack.c.bf16 %v2865, %v2861
    %v4055 = vunpack.c.l.b16 %v3959
    %v4056 = vunpack.c.l.b16 %v3960
    %v4057 = vunpack.c.l.b16 %v3961
    %v4058 = vunpack.c.h.b16 %v3959
    %v4059 = vunpack.c.h.b16 %v3960
    %v4060 = vunpack.c.h.b16 %v3961
    %v4061 = vunpack.c.l.b16 %v3962
    %v4062 = vunpack.c.l.b16 %v3963
    %v4063 = vunpack.c.l.b16 %v3964
    %v4064 = vunpack.c.h.b16 %v3962
    %v4065 = vunpack.c.h.b16 %v3963
    %v4066 = vunpack.c.h.b16 %v3964
    %v4067 = vunpack.c.l.b16 %v3965
    %v4068 = vunpack.c.l.b16 %v3966
    %v4069 = vunpack.c.l.b16 %v3967
    %v4070 = vunpack.c.h.b16 %v3965
    %v4071 = vunpack.c.h.b16 %v3966
    %v4072 = vunpack.c.h.b16 %v3967
    %v4073 = vunpack.c.l.b16 %v3968
    %v4074 = vunpack.c.l.b16 %v3969
    %v4075 = vunpack.c.l.b16 %v3970
    %v4076 = vunpack.c.h.b16 %v3968
    %v4077 = vunpack.c.h.b16 %v3969
    %v4078 = vunpack.c.h.b16 %v3970
    %v4079 = vunpack.c.l.b16 %v3971
    %v4080 = vunpack.c.l.b16 %v3972
    %v4081 = vunpack.c.l.b16 %v3973
    %v4082 = vunpack.c.h.b16 %v3971
    %v4083 = vunpack.c.h.b16 %v3972
    %v4084 = vunpack.c.h.b16 %v3973
    %v4085 = vunpack.c.l.b16 %v3974
    %v4086 = vunpack.c.l.b16 %v3975
    %v4087 = vunpack.c.l.b16 %v3976
    %v4088 = vunpack.c.h.b16 %v3974
    %v4089 = vunpack.c.h.b16 %v3975
    %v4090 = vunpack.c.h.b16 %v3976
    %v4091 = vunpack.c.l.b16 %v3977
    %v4092 = vunpack.c.l.b16 %v3978
    %v4093 = vunpack.c.l.b16 %v3979
    %v4094 = vunpack.c.h.b16 %v3977
    %v4095 = vunpack.c.h.b16 %v3978
    %v4096 = vunpack.c.h.b16 %v3979
    %v4097 = vunpack.c.l.b16 %v3980
    %v4098 = vunpack.c.l.b16 %v3981
    %v4099 = vunpack.c.l.b16 %v3982
    %v4100 = vunpack.c.h.b16 %v3980
    %v4101 = vunpack.c.h.b16 %v3981
    %v4102 = vunpack.c.h.b16 %v3982
    %v4103 = vunpack.c.l.b16 %v3983
    %v4104 = vunpack.c.l.b16 %v3984
    %v4105 = vunpack.c.l.b16 %v3985
    %v4106 = vunpack.c.h.b16 %v3983
    %v4107 = vunpack.c.h.b16 %v3984
    %v4108 = vunpack.c.h.b16 %v3985
    %v4109 = vunpack.c.l.b16 %v3986
    %v4110 = vunpack.c.l.b16 %v3987
    %v4111 = vunpack.c.l.b16 %v3988
    %v4112 = vunpack.c.h.b16 %v3986
    %v4113 = vunpack.c.h.b16 %v3987
    %v4114 = vunpack.c.h.b16 %v3988
    %v4115 = vunpack.c.l.b16 %v3989
    %v4116 = vunpack.c.l.b16 %v3990
    %v4117 = vunpack.c.l.b16 %v3991
    %v4118 = vunpack.c.h.b16 %v3989
    %v4119 = vunpack.c.h.b16 %v3990
    %v4120 = vunpack.c.h.b16 %v3991
    %v4121 = vunpack.c.l.b16 %v3992
    %v4122 = vunpack.c.l.b16 %v3993
    %v4123 = vunpack.c.l.b16 %v3994
    %v4124 = vunpack.c.h.b16 %v3992
    %v4125 = vunpack.c.h.b16 %v3993
    %v4126 = vunpack.c.h.b16 %v3994
    %v4127 = vunpack.c.l.b16 %v3995
    %v4128 = vunpack.c.l.b16 %v3996
    %v4129 = vunpack.c.l.b16 %v3997
    %v4130 = vunpack.c.h.b16 %v3995
    %v4131 = vunpack.c.h.b16 %v3996
    %v4132 = vunpack.c.h.b16 %v3997
    %v4133 = vunpack.c.l.b16 %v3998
    %v4134 = vunpack.c.l.b16 %v3999
    %v4135 = vunpack.c.l.b16 %v4000
    %v4136 = vunpack.c.h.b16 %v3998
    %v4137 = vunpack.c.h.b16 %v3999
    %v4138 = vunpack.c.h.b16 %v4000
    %v4139 = vunpack.c.l.b16 %v4001
    %v4140 = vunpack.c.l.b16 %v4002
    %v4141 = vunpack.c.l.b16 %v4003
    %v4142 = vunpack.c.h.b16 %v4001
    %v4143 = vunpack.c.h.b16 %v4002
    %v4144 = vunpack.c.h.b16 %v4003
    %v4145 = vunpack.c.l.b16 %v4004
    %v4146 = vunpack.c.l.b16 %v4005
    %v4147 = vunpack.c.l.b16 %v4006
    %v4148 = vunpack.c.h.b16 %v4004
    %v4149 = vunpack.c.h.b16 %v4005
    %v4150 = vunpack.c.h.b16 %v4006
    %v4151 = vpack.c.b16 %v4056, %v4055
    %v4152 = vpack.c.b16 %v4057, %v4057
    %v4153 = vpack.c.b16 %v4059, %v4058
    %v4154 = vpack.c.b16 %v4060, %v4060
    %v4155 = vpack.c.b16 %v4062, %v4061
    %v4156 = vpack.c.b16 %v4063, %v4063
    %v4157 = vpack.c.b16 %v4065, %v4064
    %v4158 = vpack.c.b16 %v4066, %v4066
    %v4159 = vpack.c.b16 %v4068, %v4067
    %v4160 = vpack.c.b16 %v4069, %v4069
    %v4161 = vpack.c.b16 %v4071, %v4070
    %v4162 = vpack.c.b16 %v4072, %v4072
    %v4163 = vpack.c.b16 %v4074, %v4073
    %v4164 = vpack.c.b16 %v4075, %v4075
    %v4165 = vpack.c.b16 %v4077, %v4076
    %v4166 = vpack.c.b16 %v4078, %v4078
    %v4167 = vpack.c.b16 %v4080, %v4079
    %v4168 = vpack.c.b16 %v4081, %v4081
    %v4169 = vpack.c.b16 %v4083, %v4082
    %v4170 = vpack.c.b16 %v4084, %v4084
    %v4171 = vpack.c.b16 %v4086, %v4085
    %v4172 = vpack.c.b16 %v4087, %v4087
    %v4173 = vpack.c.b16 %v4089, %v4088
    %v4174 = vpack.c.b16 %v4090, %v4090
    %v4175 = vpack.c.b16 %v4092, %v4091
    %v4176 = vpack.c.b16 %v4093, %v4093
    %v4177 = vpack.c.b16 %v4095, %v4094
    %v4178 = vpack.c.b16 %v4096, %v4096
    %v4179 = vpack.c.b16 %v4098, %v4097
    %v4180 = vpack.c.b16 %v4099, %v4099
    %v4181 = vpack.c.b16 %v4101, %v4100
    %v4182 = vpack.c.b16 %v4102, %v4102
    %v4183 = vpack.c.b16 %v4104, %v4103
    %v4184 = vpack.c.b16 %v4105, %v4105
    %v4185 = vpack.c.b16 %v4107, %v4106
    %v4186 = vpack.c.b16 %v4108, %v4108
    %v4187 = vpack.c.b16 %v4110, %v4109
    %v4188 = vpack.c.b16 %v4111, %v4111
    %v4189 = vpack.c.b16 %v4113, %v4112
    %v4190 = vpack.c.b16 %v4114, %v4114
    %v4191 = vpack.c.b16 %v4116, %v4115
    %v4192 = vpack.c.b16 %v4117, %v4117
    %v4193 = vpack.c.b16 %v4119, %v4118
    %v4194 = vpack.c.b16 %v4120, %v4120
    %v4195 = vpack.c.b16 %v4122, %v4121
    %v4196 = vpack.c.b16 %v4123, %v4123
    %v4197 = vpack.c.b16 %v4125, %v4124
    %v4198 = vpack.c.b16 %v4126, %v4126
    %v4199 = vpack.c.b16 %v4128, %v4127
    %v4200 = vpack.c.b16 %v4129, %v4129
    %v4201 = vpack.c.b16 %v4131, %v4130
    %v4202 = vpack.c.b16 %v4132, %v4132
    %v4203 = vpack.c.b16 %v4134, %v4133
    %v4204 = vpack.c.b16 %v4135, %v4135
    %v4205 = vpack.c.b16 %v4137, %v4136
    %v4206 = vpack.c.b16 %v4138, %v4138
    %v4207 = vpack.c.b16 %v4140, %v4139
    %v4208 = vpack.c.b16 %v4141, %v4141
    %v4209 = vpack.c.b16 %v4143, %v4142
    %v4210 = vpack.c.b16 %v4144, %v4144
    %v4211 = vpack.c.b16 %v4146, %v4145
    %v4212 = vpack.c.b16 %v4147, %v4147
    %v4213 = vpack.c.b16 %v4149, %v4148
    %v4214 = vpack.c.b16 %v4150, %v4150
    %4279 = vst [vmem:[#allocation8] sm:$0xff] %v4151
    %4280 = vst [vmem:[#allocation8 + $0x8] sm:$0xf] %v4152
    %4281 = vst [vmem:[#allocation8 + $0xc] sm:$0xff] %v4153
    %4282 = vst [vmem:[#allocation8 + $0x14] sm:$0xf] %v4154
    %4283 = vst [vmem:[#allocation8 + $0x18] sm:$0xff] %v4155
    %4284 = vst [vmem:[#allocation8 + $0x20] sm:$0xf] %v4156
    %4285 = vst [vmem:[#allocation8 + $0x24] sm:$0xff] %v4157
    %4286 = vst [vmem:[#allocation8 + $0x2c] sm:$0xf] %v4158
    %4287 = vst [vmem:[#allocation8 + $0x30] sm:$0xff] %v4159
    %4288 = vst [vmem:[#allocation8 + $0x38] sm:$0xf] %v4160
    %4289 = vst [vmem:[#allocation8 + $0x3c] sm:$0xff] %v4161
    %4290 = vst [vmem:[#allocation8 + $0x44] sm:$0xf] %v4162
    %4291 = vst [vmem:[#allocation8 + $0x48] sm:$0xff] %v4163
    %4292 = vst [vmem:[#allocation8 + $0x50] sm:$0xf] %v4164
    %4293 = vst [vmem:[#allocation8 + $0x54] sm:$0xff] %v4165
    %4294 = vst [vmem:[#allocation8 + $0x5c] sm:$0xf] %v4166
    %4295 = vst [vmem:[#allocation8 + $0x60] sm:$0xff] %v4167
    %4296 = vst [vmem:[#allocation8 + $0x68] sm:$0xf] %v4168
    %4297 = vst [vmem:[#allocation8 + $0x6c] sm:$0xff] %v4169
    %4298 = vst [vmem:[#allocation8 + $0x74] sm:$0xf] %v4170
    %4299 = vst [vmem:[#allocation8 + $0x78] sm:$0xff] %v4171
    %4300 = vst [vmem:[#allocation8 + $0x80] sm:$0xf] %v4172
    %4301 = vst [vmem:[#allocation8 + $0x84] sm:$0xff] %v4173
    %4302 = vst [vmem:[#allocation8 + $0x8c] sm:$0xf] %v4174
    %4303 = vst [vmem:[#allocation8 + $0x90] sm:$0xff] %v4175
    %4304 = vst [vmem:[#allocation8 + $0x98] sm:$0xf] %v4176
    %4305 = vst [vmem:[#allocation8 + $0x9c] sm:$0xff] %v4177
    %4306 = vst [vmem:[#allocation8 + $0xa4] sm:$0xf] %v4178
    %4307 = vst [vmem:[#allocation8 + $0xa8] sm:$0xff] %v4179
    %4308 = vst [vmem:[#allocation8 + $0xb0] sm:$0xf] %v4180
    %4309 = vst [vmem:[#allocation8 + $0xb4] sm:$0xff] %v4181
    %4310 = vst [vmem:[#allocation8 + $0xbc] sm:$0xf] %v4182
    %4311 = vst [vmem:[#allocation8 + $0xc0] sm:$0xff] %v4183
    %4312 = vst [vmem:[#allocation8 + $0xc8] sm:$0xf] %v4184
    %4313 = vst [vmem:[#allocation8 + $0xcc] sm:$0xff] %v4185
    %4314 = vst [vmem:[#allocation8 + $0xd4] sm:$0xf] %v4186
    %4315 = vst [vmem:[#allocation8 + $0xd8] sm:$0xff] %v4187
    %4316 = vst [vmem:[#allocation8 + $0xe0] sm:$0xf] %v4188
    %4317 = vst [vmem:[#allocation8 + $0xe4] sm:$0xff] %v4189
    %4318 = vst [vmem:[#allocation8 + $0xec] sm:$0xf] %v4190
    %4319 = vst [vmem:[#allocation8 + $0xf0] sm:$0xff] %v4191
    %4320 = vst [vmem:[#allocation8 + $0xf8] sm:$0xf] %v4192
    %4321 = vst [vmem:[#allocation8 + $0xfc] sm:$0xff] %v4193
    %4322 = vst [vmem:[#allocation8 + $0x104] sm:$0xf] %v4194
    %4323 = vst [vmem:[#allocation8 + $0x108] sm:$0xff] %v4195
    %4324 = vst [vmem:[#allocation8 + $0x110] sm:$0xf] %v4196
    %4325 = vst [vmem:[#allocation8 + $0x114] sm:$0xff] %v4197
    %4326 = vst [vmem:[#allocation8 + $0x11c] sm:$0xf] %v4198
    %4327 = vst [vmem:[#allocation8 + $0x120] sm:$0xff] %v4199
    %4328 = vst [vmem:[#allocation8 + $0x128] sm:$0xf] %v4200
    %4329 = vst [vmem:[#allocation8 + $0x12c] sm:$0xff] %v4201
    %4330 = vst [vmem:[#allocation8 + $0x134] sm:$0xf] %v4202
    %4331 = vst [vmem:[#allocation8 + $0x138] sm:$0xff] %v4203
    %4332 = vst [vmem:[#allocation8 + $0x140] sm:$0xf] %v4204
    %4333 = vst [vmem:[#allocation8 + $0x144] sm:$0xff] %v4205
    %4334 = vst [vmem:[#allocation8 + $0x14c] sm:$0xf] %v4206
    %4335 = vst [vmem:[#allocation8 + $0x150] sm:$0xff] %v4207
    %4336 = vst [vmem:[#allocation8 + $0x158] sm:$0xf] %v4208
    %4337 = vst [vmem:[#allocation8 + $0x15c] sm:$0xff] %v4209
    %4338 = vst [vmem:[#allocation8 + $0x164] sm:$0xf] %v4210
    %4339 = vst [vmem:[#allocation8 + $0x168] sm:$0xff] %v4211
    %4340 = vst [vmem:[#allocation8 + $0x170] sm:$0xf] %v4212
    %4341 = vst [vmem:[#allocation8 + $0x174] sm:$0xff] %v4213
    %4342 = vst [vmem:[#allocation8 + $0x17c] sm:$0xf] %v4214
    %v4343 = vpack.c.bf16 %v3099, %v3095
    %v4344 = vpack.c.bf16 %v3101, %v3097
    %v4345 = vpack.c.bf16 %v3452, %v3449
    %v4346 = vpack.c.bf16 %v3109, %v3105
    %v4347 = vpack.c.bf16 %v3111, %v3107
    %v4348 = vpack.c.bf16 %v3460, %v3457
    %v4349 = vpack.c.bf16 %v3119, %v3115
    %v4350 = vpack.c.bf16 %v3121, %v3117
    %v4351 = vpack.c.bf16 %v3468, %v3465
    %v4352 = vpack.c.bf16 %v3129, %v3125
    %v4353 = vpack.c.bf16 %v3131, %v3127
    %v4354 = vpack.c.bf16 %v3476, %v3473
    %v4355 = vpack.c.bf16 %v3139, %v3135
    %v4356 = vpack.c.bf16 %v3141, %v3137
    %v4357 = vpack.c.bf16 %v3484, %v3481
    %v4358 = vpack.c.bf16 %v3149, %v3145
    %v4359 = vpack.c.bf16 %v3151, %v3147
    %v4360 = vpack.c.bf16 %v3492, %v3489
    %v4361 = vpack.c.bf16 %v3159, %v3155
    %v4362 = vpack.c.bf16 %v3161, %v3157
    %v4363 = vpack.c.bf16 %v3500, %v3497
    %v4364 = vpack.c.bf16 %v3169, %v3165
    %v4365 = vpack.c.bf16 %v3171, %v3167
    %v4366 = vpack.c.bf16 %v3508, %v3505
    %v4367 = vpack.c.bf16 %v3179, %v3175
    %v4368 = vpack.c.bf16 %v3181, %v3177
    %v4369 = vpack.c.bf16 %v3516, %v3513
    %v4370 = vpack.c.bf16 %v3189, %v3185
    %v4371 = vpack.c.bf16 %v3191, %v3187
    %v4372 = vpack.c.bf16 %v3524, %v3521
    %v4373 = vpack.c.bf16 %v3199, %v3195
    %v4374 = vpack.c.bf16 %v3201, %v3197
    %v4375 = vpack.c.bf16 %v3532, %v3529
    %v4376 = vpack.c.bf16 %v3209, %v3205
    %v4377 = vpack.c.bf16 %v3211, %v3207
    %v4378 = vpack.c.bf16 %v3540, %v3537
    %v4379 = vpack.c.bf16 %v3219, %v3215
    %v4380 = vpack.c.bf16 %v3221, %v3217
    %v4381 = vpack.c.bf16 %v3548, %v3545
    %v4382 = vpack.c.bf16 %v3229, %v3225
    %v4383 = vpack.c.bf16 %v3231, %v3227
    %v4384 = vpack.c.bf16 %v3556, %v3553
    %v4385 = vpack.c.bf16 %v3239, %v3235
    %v4386 = vpack.c.bf16 %v3241, %v3237
    %v4387 = vpack.c.bf16 %v3564, %v3561
    %v4388 = vpack.c.bf16 %v3249, %v3245
    %v4389 = vpack.c.bf16 %v3251, %v3247
    %v4390 = vpack.c.bf16 %v3572, %v3569
    %v4439 = vunpack.c.l.b16 %v4343
    %v4440 = vunpack.c.l.b16 %v4344
    %v4441 = vunpack.c.l.b16 %v4345
    %v4442 = vunpack.c.h.b16 %v4343
    %v4443 = vunpack.c.h.b16 %v4344
    %v4444 = vunpack.c.h.b16 %v4345
    %v4445 = vunpack.c.l.b16 %v4346
    %v4446 = vunpack.c.l.b16 %v4347
    %v4447 = vunpack.c.l.b16 %v4348
    %v4448 = vunpack.c.h.b16 %v4346
    %v4449 = vunpack.c.h.b16 %v4347
    %v4450 = vunpack.c.h.b16 %v4348
    %v4451 = vunpack.c.l.b16 %v4349
    %v4452 = vunpack.c.l.b16 %v4350
    %v4453 = vunpack.c.l.b16 %v4351
    %v4454 = vunpack.c.h.b16 %v4349
    %v4455 = vunpack.c.h.b16 %v4350
    %v4456 = vunpack.c.h.b16 %v4351
    %v4457 = vunpack.c.l.b16 %v4352
    %v4458 = vunpack.c.l.b16 %v4353
    %v4459 = vunpack.c.l.b16 %v4354
    %v4460 = vunpack.c.h.b16 %v4352
    %v4461 = vunpack.c.h.b16 %v4353
    %v4462 = vunpack.c.h.b16 %v4354
    %v4463 = vunpack.c.l.b16 %v4355
    %v4464 = vunpack.c.l.b16 %v4356
    %v4465 = vunpack.c.l.b16 %v4357
    %v4466 = vunpack.c.h.b16 %v4355
    %v4467 = vunpack.c.h.b16 %v4356
    %v4468 = vunpack.c.h.b16 %v4357
    %v4469 = vunpack.c.l.b16 %v4358
    %v4470 = vunpack.c.l.b16 %v4359
    %v4471 = vunpack.c.l.b16 %v4360
    %v4472 = vunpack.c.h.b16 %v4358
    %v4473 = vunpack.c.h.b16 %v4359
    %v4474 = vunpack.c.h.b16 %v4360
    %v4475 = vunpack.c.l.b16 %v4361
    %v4476 = vunpack.c.l.b16 %v4362
    %v4477 = vunpack.c.l.b16 %v4363
    %v4478 = vunpack.c.h.b16 %v4361
    %v4479 = vunpack.c.h.b16 %v4362
    %v4480 = vunpack.c.h.b16 %v4363
    %v4481 = vunpack.c.l.b16 %v4364
    %v4482 = vunpack.c.l.b16 %v4365
    %v4483 = vunpack.c.l.b16 %v4366
    %v4484 = vunpack.c.h.b16 %v4364
    %v4485 = vunpack.c.h.b16 %v4365
    %v4486 = vunpack.c.h.b16 %v4366
    %v4487 = vunpack.c.l.b16 %v4367
    %v4488 = vunpack.c.l.b16 %v4368
    %v4489 = vunpack.c.l.b16 %v4369
    %v4490 = vunpack.c.h.b16 %v4367
    %v4491 = vunpack.c.h.b16 %v4368
    %v4492 = vunpack.c.h.b16 %v4369
    %v4493 = vunpack.c.l.b16 %v4370
    %v4494 = vunpack.c.l.b16 %v4371
    %v4495 = vunpack.c.l.b16 %v4372
    %v4496 = vunpack.c.h.b16 %v4370
    %v4497 = vunpack.c.h.b16 %v4371
    %v4498 = vunpack.c.h.b16 %v4372
    %v4499 = vunpack.c.l.b16 %v4373
    %v4500 = vunpack.c.l.b16 %v4374
    %v4501 = vunpack.c.l.b16 %v4375
    %v4502 = vunpack.c.h.b16 %v4373
    %v4503 = vunpack.c.h.b16 %v4374
    %v4504 = vunpack.c.h.b16 %v4375
    %v4505 = vunpack.c.l.b16 %v4376
    %v4506 = vunpack.c.l.b16 %v4377
    %v4507 = vunpack.c.l.b16 %v4378
    %v4508 = vunpack.c.h.b16 %v4376
    %v4509 = vunpack.c.h.b16 %v4377
    %v4510 = vunpack.c.h.b16 %v4378
    %v4511 = vunpack.c.l.b16 %v4379
    %v4512 = vunpack.c.l.b16 %v4380
    %v4513 = vunpack.c.l.b16 %v4381
    %v4514 = vunpack.c.h.b16 %v4379
    %v4515 = vunpack.c.h.b16 %v4380
    %v4516 = vunpack.c.h.b16 %v4381
    %v4517 = vunpack.c.l.b16 %v4382
    %v4518 = vunpack.c.l.b16 %v4383
    %v4519 = vunpack.c.l.b16 %v4384
    %v4520 = vunpack.c.h.b16 %v4382
    %v4521 = vunpack.c.h.b16 %v4383
    %v4522 = vunpack.c.h.b16 %v4384
    %v4523 = vunpack.c.l.b16 %v4385
    %v4524 = vunpack.c.l.b16 %v4386
    %v4525 = vunpack.c.l.b16 %v4387
    %v4526 = vunpack.c.h.b16 %v4385
    %v4527 = vunpack.c.h.b16 %v4386
    %v4528 = vunpack.c.h.b16 %v4387
    %v4529 = vunpack.c.l.b16 %v4388
    %v4530 = vunpack.c.l.b16 %v4389
    %v4531 = vunpack.c.l.b16 %v4390
    %v4532 = vunpack.c.h.b16 %v4388
    %v4533 = vunpack.c.h.b16 %v4389
    %v4534 = vunpack.c.h.b16 %v4390
    %v4535 = vpack.c.b16 %v4440, %v4439
    %v4536 = vpack.c.b16 %v4441, %v4441
    %v4537 = vpack.c.b16 %v4443, %v4442
    %v4538 = vpack.c.b16 %v4444, %v4444
    %v4539 = vpack.c.b16 %v4446, %v4445
    %v4540 = vpack.c.b16 %v4447, %v4447
    %v4541 = vpack.c.b16 %v4449, %v4448
    %v4542 = vpack.c.b16 %v4450, %v4450
    %v4543 = vpack.c.b16 %v4452, %v4451
    %v4544 = vpack.c.b16 %v4453, %v4453
    %v4545 = vpack.c.b16 %v4455, %v4454
    %v4546 = vpack.c.b16 %v4456, %v4456
    %v4547 = vpack.c.b16 %v4458, %v4457
    %v4548 = vpack.c.b16 %v4459, %v4459
    %v4549 = vpack.c.b16 %v4461, %v4460
    %v4550 = vpack.c.b16 %v4462, %v4462
    %v4551 = vpack.c.b16 %v4464, %v4463
    %v4552 = vpack.c.b16 %v4465, %v4465
    %v4553 = vpack.c.b16 %v4467, %v4466
    %v4554 = vpack.c.b16 %v4468, %v4468
    %v4555 = vpack.c.b16 %v4470, %v4469
    %v4556 = vpack.c.b16 %v4471, %v4471
    %v4557 = vpack.c.b16 %v4473, %v4472
    %v4558 = vpack.c.b16 %v4474, %v4474
    %v4559 = vpack.c.b16 %v4476, %v4475
    %v4560 = vpack.c.b16 %v4477, %v4477
    %v4561 = vpack.c.b16 %v4479, %v4478
    %v4562 = vpack.c.b16 %v4480, %v4480
    %v4563 = vpack.c.b16 %v4482, %v4481
    %v4564 = vpack.c.b16 %v4483, %v4483
    %v4565 = vpack.c.b16 %v4485, %v4484
    %v4566 = vpack.c.b16 %v4486, %v4486
    %v4567 = vpack.c.b16 %v4488, %v4487
    %v4568 = vpack.c.b16 %v4489, %v4489
    %v4569 = vpack.c.b16 %v4491, %v4490
    %v4570 = vpack.c.b16 %v4492, %v4492
    %v4571 = vpack.c.b16 %v4494, %v4493
    %v4572 = vpack.c.b16 %v4495, %v4495
    %v4573 = vpack.c.b16 %v4497, %v4496
    %v4574 = vpack.c.b16 %v4498, %v4498
    %v4575 = vpack.c.b16 %v4500, %v4499
    %v4576 = vpack.c.b16 %v4501, %v4501
    %v4577 = vpack.c.b16 %v4503, %v4502
    %v4578 = vpack.c.b16 %v4504, %v4504
    %v4579 = vpack.c.b16 %v4506, %v4505
    %v4580 = vpack.c.b16 %v4507, %v4507
    %v4581 = vpack.c.b16 %v4509, %v4508
    %v4582 = vpack.c.b16 %v4510, %v4510
    %v4583 = vpack.c.b16 %v4512, %v4511
    %v4584 = vpack.c.b16 %v4513, %v4513
    %v4585 = vpack.c.b16 %v4515, %v4514
    %v4586 = vpack.c.b16 %v4516, %v4516
    %v4587 = vpack.c.b16 %v4518, %v4517
    %v4588 = vpack.c.b16 %v4519, %v4519
    %v4589 = vpack.c.b16 %v4521, %v4520
    %v4590 = vpack.c.b16 %v4522, %v4522
    %v4591 = vpack.c.b16 %v4524, %v4523
    %v4592 = vpack.c.b16 %v4525, %v4525
    %v4593 = vpack.c.b16 %v4527, %v4526
    %v4594 = vpack.c.b16 %v4528, %v4528
    %v4595 = vpack.c.b16 %v4530, %v4529
    %v4596 = vpack.c.b16 %v4531, %v4531
    %v4597 = vpack.c.b16 %v4533, %v4532
    %v4598 = vpack.c.b16 %v4534, %v4534
    %4663 = vst [vmem:[#allocation10] sm:$0xff] %v4535
    %4664 = vst [vmem:[#allocation10 + $0x8] sm:$0xf] %v4536
    %4665 = vst [vmem:[#allocation10 + $0xc] sm:$0xff] %v4537
    %4666 = vst [vmem:[#allocation10 + $0x14] sm:$0xf] %v4538
    %4667 = vst [vmem:[#allocation10 + $0x18] sm:$0xff] %v4539
    %4668 = vst [vmem:[#allocation10 + $0x20] sm:$0xf] %v4540
    %4669 = vst [vmem:[#allocation10 + $0x24] sm:$0xff] %v4541
    %4670 = vst [vmem:[#allocation10 + $0x2c] sm:$0xf] %v4542
    %4671 = vst [vmem:[#allocation10 + $0x30] sm:$0xff] %v4543
    %4672 = vst [vmem:[#allocation10 + $0x38] sm:$0xf] %v4544
    %4673 = vst [vmem:[#allocation10 + $0x3c] sm:$0xff] %v4545
    %4674 = vst [vmem:[#allocation10 + $0x44] sm:$0xf] %v4546
    %4675 = vst [vmem:[#allocation10 + $0x48] sm:$0xff] %v4547
    %4676 = vst [vmem:[#allocation10 + $0x50] sm:$0xf] %v4548
    %4677 = vst [vmem:[#allocation10 + $0x54] sm:$0xff] %v4549
    %4678 = vst [vmem:[#allocation10 + $0x5c] sm:$0xf] %v4550
    %4679 = vst [vmem:[#allocation10 + $0x60] sm:$0xff] %v4551
    %4680 = vst [vmem:[#allocation10 + $0x68] sm:$0xf] %v4552
    %4681 = vst [vmem:[#allocation10 + $0x6c] sm:$0xff] %v4553
    %4682 = vst [vmem:[#allocation10 + $0x74] sm:$0xf] %v4554
    %4683 = vst [vmem:[#allocation10 + $0x78] sm:$0xff] %v4555
    %4684 = vst [vmem:[#allocation10 + $0x80] sm:$0xf] %v4556
    %4685 = vst [vmem:[#allocation10 + $0x84] sm:$0xff] %v4557
    %4686 = vst [vmem:[#allocation10 + $0x8c] sm:$0xf] %v4558
    %4687 = vst [vmem:[#allocation10 + $0x90] sm:$0xff] %v4559
    %4688 = vst [vmem:[#allocation10 + $0x98] sm:$0xf] %v4560
    %4689 = vst [vmem:[#allocation10 + $0x9c] sm:$0xff] %v4561
    %4690 = vst [vmem:[#allocation10 + $0xa4] sm:$0xf] %v4562
    %4691 = vst [vmem:[#allocation10 + $0xa8] sm:$0xff] %v4563
    %4692 = vst [vmem:[#allocation10 + $0xb0] sm:$0xf] %v4564
    %4693 = vst [vmem:[#allocation10 + $0xb4] sm:$0xff] %v4565
    %4694 = vst [vmem:[#allocation10 + $0xbc] sm:$0xf] %v4566
    %4695 = vst [vmem:[#allocation10 + $0xc0] sm:$0xff] %v4567
    %4696 = vst [vmem:[#allocation10 + $0xc8] sm:$0xf] %v4568
    %4697 = vst [vmem:[#allocation10 + $0xcc] sm:$0xff] %v4569
    %4698 = vst [vmem:[#allocation10 + $0xd4] sm:$0xf] %v4570
    %4699 = vst [vmem:[#allocation10 + $0xd8] sm:$0xff] %v4571
    %4700 = vst [vmem:[#allocation10 + $0xe0] sm:$0xf] %v4572
    %4701 = vst [vmem:[#allocation10 + $0xe4] sm:$0xff] %v4573
    %4702 = vst [vmem:[#allocation10 + $0xec] sm:$0xf] %v4574
    %4703 = vst [vmem:[#allocation10 + $0xf0] sm:$0xff] %v4575
    %4704 = vst [vmem:[#allocation10 + $0xf8] sm:$0xf] %v4576
    %4705 = vst [vmem:[#allocation10 + $0xfc] sm:$0xff] %v4577
    %4706 = vst [vmem:[#allocation10 + $0x104] sm:$0xf] %v4578
    %4707 = vst [vmem:[#allocation10 + $0x108] sm:$0xff] %v4579
    %4708 = vst [vmem:[#allocation10 + $0x110] sm:$0xf] %v4580
    %4709 = vst [vmem:[#allocation10 + $0x114] sm:$0xff] %v4581
    %4710 = vst [vmem:[#allocation10 + $0x11c] sm:$0xf] %v4582
    %4711 = vst [vmem:[#allocation10 + $0x120] sm:$0xff] %v4583
    %4712 = vst [vmem:[#allocation10 + $0x128] sm:$0xf] %v4584
    %4713 = vst [vmem:[#allocation10 + $0x12c] sm:$0xff] %v4585
    %4714 = vst [vmem:[#allocation10 + $0x134] sm:$0xf] %v4586
    %4715 = vst [vmem:[#allocation10 + $0x138] sm:$0xff] %v4587
    %4716 = vst [vmem:[#allocation10 + $0x140] sm:$0xf] %v4588
    %4717 = vst [vmem:[#allocation10 + $0x144] sm:$0xff] %v4589
    %4718 = vst [vmem:[#allocation10 + $0x14c] sm:$0xf] %v4590
    %4719 = vst [vmem:[#allocation10 + $0x150] sm:$0xff] %v4591
    %4720 = vst [vmem:[#allocation10 + $0x158] sm:$0xf] %v4592
    %4721 = vst [vmem:[#allocation10 + $0x15c] sm:$0xff] %v4593
    %4722 = vst [vmem:[#allocation10 + $0x164] sm:$0xf] %v4594
    %4723 = vst [vmem:[#allocation10 + $0x168] sm:$0xff] %v4595
    %4724 = vst [vmem:[#allocation10 + $0x170] sm:$0xf] %v4596
    %4725 = vst [vmem:[#allocation10 + $0x174] sm:$0xff] %v4597
    %4726 = vst [vmem:[#allocation10 + $0x17c] sm:$0xf] %v4598
    // Predicated region
    $region18: #{tpu_custom_call.1} parent=1 // pred_check
      _
    $region19: #{tpu_custom_call.1} parent=1 // pred_check_branch
      %4728 = sbr.rel (0) target = $region21
    $region20: #{tpu_custom_call.1} parent=1 // pred_region
      %s4730 = ssub.s32 6144, 6144
      %4731 = vsyncadd [#allocation4], %s4730
      %s4732 = sshll.u32 [#allocation7], 4
      %s4733 = int_to_ptr.vmem [resolvable:$true] %s4732
      %4738 = dma.vmem_to_hbm [thread:$0]  %s4733, 6144, %s2, [#allocation4], 192, 192, 12
    $region21: #{tpu_custom_call.1} parent=1 // pred_fallthru
      _
    // Predicated region
    $region22: #{tpu_custom_call.1} parent=1 // pred_check
      _
    $region23: #{tpu_custom_call.1} parent=1 // pred_check_branch
      %4740 = sbr.rel (0) target = $region25
    $region24: #{tpu_custom_call.1} parent=1 // pred_region
      %s4742 = ssub.s32 6144, 6144
      %4743 = vsyncadd [#allocation9], %s4742
      %s4744 = sshll.u32 [#allocation8], 4
      %s4745 = int_to_ptr.vmem [resolvable:$true] %s4744
      %4750 = dma.vmem_to_hbm [thread:$0]  %s4745, 6144, %s3, [#allocation9], 192, 192, 12
    $region25: #{tpu_custom_call.1} parent=1 // pred_fallthru
      _
    // Predicated region
    $region26: #{tpu_custom_call.1} parent=1 // pred_check
      _
    $region27: #{tpu_custom_call.1} parent=1 // pred_check_branch
      %4752 = sbr.rel (0) target = $region29
    $region28: #{tpu_custom_call.1} parent=1 // pred_region
      %s4754 = ssub.s32 6144, 6144
      %4755 = vsyncadd [#allocation9], %s4754
      %s4756 = sshll.u32 [#allocation10], 4
      %s4757 = int_to_ptr.vmem [resolvable:$true] %s4756
      %4762 = dma.vmem_to_hbm [thread:$0]  %s4757, 6144, %s4, [#allocation9], 192, 192, 12
    $region29: #{tpu_custom_call.1} parent=1 // pred_fallthru
      _
    // Predicated region
    $region30: #{tpu_custom_call.1} parent=1 // pred_check
      _
    $region31: #{tpu_custom_call.1} parent=1 // pred_check_branch
      %4764 = sbr.rel (0) target = $region33
    $region32: #{tpu_custom_call.1} parent=1 // pred_region
      %4765 = dma.done [#allocation4], 6144
    $region33: #{tpu_custom_call.1} parent=1 // pred_fallthru
      _
    // Predicated region
    $region34: #{tpu_custom_call.1} parent=1 // pred_check
      _
    $region35: #{tpu_custom_call.1} parent=1 // pred_check_branch
      %4767 = sbr.rel (0) target = $region37
    $region36: #{tpu_custom_call.1} parent=1 // pred_region
      %4768 = dma.done [#allocation9], 6144
    $region37: #{tpu_custom_call.1} parent=1 // pred_fallthru
      _
    // Predicated region
    $region38: #{tpu_custom_call.1} parent=1 // pred_check
      _
    $region39: #{tpu_custom_call.1} parent=1 // pred_check_branch
      %4770 = sbr.rel (0) target = $region41
    $region40: #{tpu_custom_call.1} parent=1 // pred_region
      %4771 = dma.done [#allocation9], 6144
    $region41: #{tpu_custom_call.1} parent=1 // pred_fallthru
      _
    %4772 = vsyncpa [#allocation3], 1
    %4773 = vsyncpa [#allocation6], 1
    %4774 = vsyncpa [#allocation4], 1
    %4775 = vsyncpa [#allocation9], 1

</llo_original>
